<compile_context>
chip_gen: v7x
topology: tpu7x:2x2x1
jax: 0.10.0
libtpu: 0.0.40
codegen_flags: <defaults>
</compile_context>

<pallas_src>
import functools

import jax
import jax.numpy as jnp
import numpy as np
from jax.experimental import pallas as pl
from jax.experimental.pallas import tpu as pltpu

BN_EPS = 1e-5


def _round_up(x, m):
    return ((x + m - 1) // m) * m


def _pick_tm(m):
    """Largest M tile with >=2 tiles on the 'parallel' axis and bounded pad waste."""
    m8 = _round_up(max(m, 1), 8)
    for tm in (512, 256, 128, 64, 32, 16, 8):
        if m8 // tm >= 2 and _round_up(m8, tm) - m8 <= tm // 2:
            return tm
    return m8


def _pick_apply_tm(mp):
    """Largest divisor of an already-padded Mp, preferring >=2 tiles (v7x 2-TC)."""
    for want_two in (True, False):
        for tm in (512, 256, 128, 64, 32, 16, 8):
            if mp % tm == 0 and (not want_two or mp // tm >= 2):
                return tm
    return mp


# -----------------------------------------------------------------------------
# In-kernel math helpers
# -----------------------------------------------------------------------------
def _gelu(x):
    # tanh-form GELU: tanh runs on the EUP slot (nearly free behind MXU/VPU work).
    # |err| vs exact erf-GELU ~1e-3; covered by validation tolerance.
    c = 0.7978845608028654
    return 0.5 * x * (1.0 + jnp.tanh(c * (x + 0.044715 * x * x * x)))


# -----------------------------------------------------------------------------
# Pallas kernels
# -----------------------------------------------------------------------------
def _conv_gemm_kernel(x_ref, w_ref, b_ref, *rest, fuse_gelu, with_stats):
    """K-tiled GEMM with f32 accumulator.

    Epilogue fuses bias (+ optional GELU) and, for BN layers, per-tile channel
    sum / sumsq computed directly from the f32 accumulator (no extra slab read).
    """
    if with_stats:
        o_ref, stat_ref, acc_ref = rest
    else:
        o_ref, acc_ref = rest

    @pl.when(pl.program_id(2) == 0)
    def _init():
        acc_ref[...] = jnp.zeros_like(acc_ref)

    acc_ref[...] += jnp.dot(x_ref[...], w_ref[...],
                            preferred_element_type=jnp.float32)

    @pl.when(pl.program_id(2) == pl.num_programs(2) - 1)
    def _fin():
        acc = acc_ref[...]
        y = acc + b_ref[...]
        if fuse_gelu:
            y = _gelu(y)
        o_ref[...] = y.astype(o_ref.dtype)
        if with_stats:
            # bias is guaranteed zero here, so padded rows contribute exactly 0.
            s1 = jnp.sum(acc, axis=0, keepdims=True)          # (1, TN)
            s2 = jnp.sum(acc * acc, axis=0, keepdims=True)    # (1, TN)
            stat_ref[:, 0:1, :] = s1[None]
            stat_ref[:, 1:2, :] = s2[None]


def _bn_finalize_kernel(part_ref, stat_ref, *, inv_m):
    """Reduce per-M-tile partial [2, Cp] sums -> [mean; rsqrt(var+eps)]."""
    @pl.when(pl.program_id(0) == 0)
    def _init():
        stat_ref[...] = jnp.zeros_like(stat_ref)

    stat_ref[...] += part_ref[0]                              # (2, Cp)

    @pl.when(pl.program_id(0) == pl.num_programs(0) - 1)
    def _fin():
        mean = stat_ref[0:1, :] * inv_m
        # NOTE: E[x^2]-mean^2 in f32; guarded against tiny negative cancellation.
        var = jnp.maximum(stat_ref[1:2, :] * inv_m - mean * mean, 0.0)
        stat_ref[0:1, :] = mean
        stat_ref[1:2, :] = jax.lax.rsqrt(var + BN_EPS)


def _bn_apply_kernel(x_ref, stat_ref, g_ref, b_ref, o_ref):
    """Normalize + affine + GELU, tiled over M (in-place over the slab)."""
    x = x_ref[...].astype(jnp.float32)
    y = (x - stat_ref[0:1, :]) * (stat_ref[1:2, :] * g_ref[...]) + b_ref[...]
    o_ref[...] = _gelu(y).astype(o_ref.dtype)


def _spatial_mean_kernel(x_ref, o_ref):
    # [1, P, Cp] -> mean over P -> [1, 1, Cp]  (lane-dense output)
    o_ref[...] = jnp.mean(x_ref[...].astype(jnp.float32), axis=1, keepdims=True)


# -----------------------------------------------------------------------------
# Kernel wrappers
# -----------------------------------------------------------------------------
def conv_gemm(patches, w2d, bias, *, fuse_gelu, with_stats, out_dtype):
    """patches [M, K] (bf16), w2d [K, Cout], bias [Cout] -> padded slab [Mp, Cp].

    When with_stats: also returns per-M-tile partial BN sums [Gm, 2, Cp] computed
    from the f32 accumulator (requires bias == 0 and fuse_gelu == False).
    """
    assert not (with_stats and fuse_gelu), "BN stats must be taken pre-GELU"

    M, K = patches.shape
    Cout = w2d.shape[1]

    TM = _pick_tm(M)
    Mp = _round_up(M, TM)
    if Cout <= 128:
        Cp, TN = 128, 128
    else:
        # TN=256 matches the 256-wide MXU on v6e/v7x (v5e would prefer 128).
        Cp, TN = _round_up(Cout, 256), 256
    if K <= 1024:
        Kp, TK = K, K          # full-K block: no reduction grid axis, no K padding
    else:
        Kp = _round_up(K, 128)
        TK = max(d for d in range(128, 1025, 128) if Kp % d == 0)

    xp = patches if (Mp == M and Kp == K) else jnp.pad(patches,
                                                       ((0, Mp - M), (0, Kp - K)))
    xp = xp.astype(jnp.bfloat16)
    wp = jnp.pad(w2d.astype(jnp.bfloat16), ((0, Kp - K), (0, Cp - Cout)))
    bp = jnp.pad(bias.reshape(1, Cout).astype(jnp.float32),
                 ((0, 0), (0, Cp - Cout)))

    Gm, Gn, Gk = Mp // TM, Cp // TN, Kp // TK

    out_shape = [jax.ShapeDtypeStruct((Mp, Cp), out_dtype)]
    out_specs = [pl.BlockSpec((TM, TN), lambda i, j, k: (i, j))]
    if with_stats:
        out_shape.append(jax.ShapeDtypeStruct((Gm, 2, Cp), jnp.float32))
        out_specs.append(pl.BlockSpec((1, 2, TN), lambda i, j, k: (i, 0, j)))

    outs = pl.pallas_call(
        functools.partial(_conv_gemm_kernel, fuse_gelu=fuse_gelu,
                          with_stats=with_stats),
        out_shape=tuple(out_shape) if with_stats else out_shape[0],
        grid=(Gm, Gn, Gk),
        in_specs=[
            pl.BlockSpec((TM, TK), lambda i, j, k: (i, k)),
            pl.BlockSpec((TK, TN), lambda i, j, k: (k, j)),
            pl.BlockSpec((1, TN), lambda i, j, k: (0, j)),
        ],
        out_specs=tuple(out_specs) if with_stats else out_specs[0],
        scratch_shapes=[pltpu.VMEM((TM, TN), jnp.float32)],
        compiler_params=pltpu.CompilerParams(
            dimension_semantics=("parallel", "parallel", "arbitrary")),
    )(xp, wp, bp)

    if with_stats:
        return outs[0], outs[1]
    return outs, None


def bn_gelu(slab, part, gamma, beta, m_real):
    """Finalize fused BN partial sums, then normalize + affine + GELU in place."""
    Mp, Cp = slab.shape
    Gm = part.shape[0]
    C = gamma.shape[0]
    gp = jnp.pad(gamma.reshape(1, C).astype(jnp.float32), ((0, 0), (0, Cp - C)))
    bp = jnp.pad(beta.reshape(1, C).astype(jnp.float32), ((0, 0), (0, Cp - C)))

    stats = pl.pallas_call(
        functools.partial(_bn_finalize_kernel, inv_m=1.0 / float(m_real)),
        out_shape=jax.ShapeDtypeStruct((2, Cp), jnp.float32),
        grid=(Gm,),
        in_specs=[pl.BlockSpec((1, 2, Cp), lambda i: (i, 0, 0))],
        out_specs=pl.BlockSpec((2, Cp), lambda i: (0, 0)),
        compiler_params=pltpu.CompilerParams(dimension_semantics=("arbitrary",)),
    )(part)

    TM = _pick_apply_tm(Mp)
    out = pl.pallas_call(
        _bn_apply_kernel,
        out_shape=jax.ShapeDtypeStruct((Mp, Cp), slab.dtype),
        grid=(Mp // TM,),
        in_specs=[
            pl.BlockSpec((TM, Cp), lambda i: (i, 0)),
            pl.BlockSpec((2, Cp), lambda i: (0, 0)),
            pl.BlockSpec((1, Cp), lambda i: (0, 0)),
            pl.BlockSpec((1, Cp), lambda i: (0, 0)),
        ],
        out_specs=pl.BlockSpec((TM, Cp), lambda i: (i, 0)),
        input_output_aliases={0: 0},   # write the normalized slab in place
        compiler_params=pltpu.CompilerParams(dimension_semantics=("parallel",)),
    )(slab, stats, gp, bp)
    return out


def spatial_mean(x):
    """x: [N, P, Cp] -> mean over P -> [N, Cp] (tiled over N, lane-dense)."""
    N, P, Cp = x.shape
    out = pl.pallas_call(
        _spatial_mean_kernel,
        out_shape=jax.ShapeDtypeStruct((N, 1, Cp), jnp.float32),
        grid=(N,),
        in_specs=[pl.BlockSpec((1, P, Cp), lambda i: (i, 0, 0))],
        out_specs=pl.BlockSpec((1, 1, Cp), lambda i: (i, 0, 0)),
        compiler_params=pltpu.CompilerParams(dimension_semantics=("parallel",)),
    )(x)
    return out[:, 0, :]


# -----------------------------------------------------------------------------
# JAX glue: NHWC im2col (bf16), parameter init, full forward
# -----------------------------------------------------------------------------
def im2col_nhwc(x, k, stride, pad):
    """x: [N, H, W, C] (bf16) -> patches [N*Ho*Wo, k*k*C] with (kh, kw, C) K-order."""
    N, H, W, C = x.shape
    xp = jnp.pad(x, ((0, 0), (pad, pad), (pad, pad), (0, 0)))
    Ho = (H + 2 * pad - k) // stride + 1
    Wo = (W + 2 * pad - k) // stride + 1
    cols = []
    for i in range(k):
        for j in range(k):
            cols.append(xp[:, i:i + stride * (Ho - 1) + 1:stride,
                           j:j + stride * (Wo - 1) + 1:stride, :])
    patches = jnp.stack(cols, axis=3)            # [N, Ho, Wo, k*k, C]
    return patches.reshape(N * Ho * Wo, k * k * C), Ho, Wo


def init_params(key, input_ch, hidden_channels, max_hidden_channels, n_layers):
    def conv_init(k, cin, cout):
        k1, k2 = jax.random.split(k)
        w = jax.random.normal(k1, (cout, cin, 4, 4), jnp.float32) * 0.1
        b = jax.random.normal(k2, (cout,), jnp.float32) * 0.1
        return w, b

    keys = jax.random.split(key, n_layers + 2)
    layers = []
    w, b = conv_init(keys[0], input_ch, hidden_channels)
    layers.append(dict(w=w, b=b, stride=2, bn=None, gelu=True))
    cur = hidden_channels
    for i in range(1, n_layers):
        out = min(cur, max_hidden_channels)
        w, b = conv_init(keys[i], cur, out)
        layers.append(dict(w=w, b=b, stride=2,
                           bn=(jnp.ones((out,), jnp.float32),
                               jnp.zeros((out,), jnp.float32)),
                           gelu=True))
        cur = out
    w, b = conv_init(keys[n_layers], cur, cur)
    layers.append(dict(w=w, b=b, stride=1,
                       bn=(jnp.ones((cur,), jnp.float32),
                           jnp.zeros((cur,), jnp.float32)),
                       gelu=True))
    w, b = conv_init(keys[n_layers + 1], cur, 1)
    layers.append(dict(w=w, b=b, stride=1, bn=None, gelu=False))
    return layers


def discriminator_forward(layers, sketch_images, target_images, predicted_image=None,
                          true=True, detach=False):
    # torch.cat((sketch, target if true else predicted), dim=1)
    other = target_images if true else predicted_image
    x = jnp.concatenate([sketch_images, other], axis=1)          # NCHW f32
    if detach:
        x = jax.lax.stop_gradient(x)  # detach is an autograd no-op in this forward
    # Single NCHW->NHWC transpose and a single f32->bf16 cast; activations stay
    # NHWC bf16 (channels on the 128-lane axis) for the whole network.
    x = jnp.transpose(x, (0, 2, 3, 1)).astype(jnp.bfloat16)

    n_total = len(layers)
    for li, L in enumerate(layers):
        cout, cin, k, _ = L["w"].shape
        N = x.shape[0]
        patches, Ho, Wo = im2col_nhwc(x, k, L["stride"], 1)      # bf16 slab, one pass
        w2d = jnp.transpose(L["w"], (2, 3, 1, 0)).reshape(k * k * cin, cout)
        M = N * Ho * Wo

        is_last = li == n_total - 1
        has_bn = L["bn"] is not None
        # Conv bias cancels exactly inside BatchNorm -> dropped for BN layers. This
        # also keeps padded GEMM rows/channels at exactly zero, which the fused BN
        # statistics in the GEMM epilogue rely on.
        bias = jnp.zeros((cout,), jnp.float32) if has_bn else L["b"]
        fuse_gelu = L["gelu"] and not has_bn
        out_dtype = jnp.float32 if is_last else jnp.bfloat16

        slab, part = conv_gemm(patches, w2d, bias, fuse_gelu=fuse_gelu,
                               with_stats=has_bn, out_dtype=out_dtype)  # [Mp, Cp]
        if has_bn:
            slab = bn_gelu(slab, part, L["bn"][0], L["bn"][1], M)       # BN + GELU, in place

        Mp, Cp = slab.shape
        act = slab if Mp == M else slab[:M]
        if is_last:
            x = act.reshape(N, Ho * Wo, Cp)      # keep lane-dense (only channel 0 real)
        else:
            if Cp != cout:                       # keep padded slab when Cout % 128 == 0
                act = act[:, :cout]
            x = act.reshape(N, Ho, Wo, -1)       # NHWC, bf16

    # .mean(dim=-1).mean(dim=-1) -> [N, 1]
    out = spatial_mean(x)
    return out[:, :1]


# -----------------------------------------------------------------------------
# Pure-JAX reference (f32, exact erf GELU) for numerical validation
# -----------------------------------------------------------------------------
def reference_forward(layers, x):
    for L in layers:
        y = jax.lax.conv_general_dilated(
            x, L["w"], (L["stride"], L["stride"]), [(1, 1), (1, 1)],
            dimension_numbers=("NCHW", "OIHW", "NCHW"),
            precision=jax.lax.Precision.HIGHEST,
        )
        y = y + L["b"][None, :, None, None]
        if L["bn"] is not None:
            m = y.mean(axis=(0, 2, 3), keepdims=True)
            v = ((y - m) ** 2).mean(axis=(0, 2, 3), keepdims=True)
            y = (y - m) / jnp.sqrt(v + BN_EPS) * L["bn"][0][None, :, None, None] \
                + L["bn"][1][None, :, None, None]
        if L["gelu"]:
            y = jax.nn.gelu(y, approximate=False)
        x = y
    return x.mean(axis=-1).mean(axis=-1)


if __name__ == "__main__":
    key = jax.random.PRNGKey(0)
    k_params, k_sketch, k_target, k_pred = jax.random.split(key, 4)

    # Small, module-consistent shapes: sketch 1ch + target 3ch -> input_ch_size = 4
    N, C_SKETCH, C_IMG, HW = 2, 1, 3, 16
    INPUT_CH = C_SKETCH + C_IMG
    HIDDEN, MAX_HIDDEN, N_LAYERS = 8, 16, 2

    params = init_params(k_params, INPUT_CH, HIDDEN, MAX_HIDDEN, N_LAYERS)
    sketch = jax.random.normal(k_sketch, (N, C_SKETCH, HW, HW), jnp.float32)
    target = jax.random.normal(k_target, (N, C_IMG, HW, HW), jnp.float32)
    predicted = jax.random.normal(k_pred, (N, C_IMG, HW, HW), jnp.float32)

    fwd = jax.jit(functools.partial(discriminator_forward, params,
                                    true=True, detach=False))
    out = jax.block_until_ready(fwd(sketch, target, predicted))
    assert out.shape == (N, 1)

    ref = reference_forward(params, jnp.concatenate([sketch, target], axis=1))
    # Tolerance covers bf16 GEMM operands (f32 accumulation) and tanh-form GELU.
    np.testing.assert_allclose(np.asarray(out), np.asarray(ref), rtol=5e-2, atol=5e-2)

    print("KERNEL_OK")
</pallas_src>

<mosaic_0001>
module attributes {stable_mosaic.version = 11 : i64} {
  func.func @_conv_gemm_kernel(%arg0: i32, %arg1: i32, %arg2: i32, %arg3: memref<64x64xbf16, #tpu.memory_space<vmem>>, %arg4: memref<64x128xbf16, #tpu.memory_space<vmem>>, %arg5: memref<1x128xf32, #tpu.memory_space<vmem>>, %arg6: memref<64x128xbf16, #tpu.memory_space<vmem>>, %arg7: memref<64x128xf32, #tpu.memory_space<vmem>>) attributes {dimension_semantics = [#tpu.dimension_semantics<parallel>, #tpu.dimension_semantics<parallel>, #tpu.dimension_semantics<arbitrary>], iteration_bounds = array<i64: 2, 1, 1>, scalar_prefetch = 0 : i64, scratch_operands = 1 : i64, tpu.core_type = #tpu.core_type<tc>, window_params = [{transform_indices = @transform_0, window_bounds = array<i64: 64, 64>}, {transform_indices = @transform_1, window_bounds = array<i64: 64, 128>}, {transform_indices = @transform_2, window_bounds = array<i64: 1, 128>}, {transform_indices = @transform_3, window_bounds = array<i64: 64, 128>}]} {
    %c0_i32 = arith.constant 0 : i32
    %0 = arith.cmpi eq, %arg2, %c0_i32 : i32
    %1 = arith.extui %0 : i1 to i32
    %c0_i32_0 = arith.constant 0 : i32
    %2 = arith.cmpi ne, %1, %c0_i32_0 : i32
    scf.if %2 {
      %cst_10 = arith.constant 0.000000e+00 : f32
      %12 = vector.broadcast %cst_10 : f32 to vector<64x128xf32>
      %c0_11 = arith.constant 0 : index
      %c0_12 = arith.constant 0 : index
      %13 = vector.load %arg7[%c0_11, %c0_12] : memref<64x128xf32, #tpu.memory_space<vmem>>, vector<64x128xf32>
      tpu.vector_store %arg7[%c0_11, %c0_12], %12 {strides = array<i32>} : memref<64x128xf32, #tpu.memory_space<vmem>>, vector<64x128xf32>,
    } else {
    }
    %c0 = arith.constant 0 : index
    %c0_1 = arith.constant 0 : index
    %3 = vector.load %arg7[%c0, %c0_1] : memref<64x128xf32, #tpu.memory_space<vmem>>, vector<64x128xf32>
    %c0_2 = arith.constant 0 : index
    %c0_3 = arith.constant 0 : index
    %4 = vector.load %arg3[%c0_2, %c0_3] : memref<64x64xbf16, #tpu.memory_space<vmem>>, vector<64x64xbf16>
    %c0_4 = arith.constant 0 : index
    %c0_5 = arith.constant 0 : index
    %5 = vector.load %arg4[%c0_4, %c0_5] : memref<64x128xbf16, #tpu.memory_space<vmem>>, vector<64x128xbf16>
    %cst = arith.constant dense<0.000000e+00> : vector<64x128xf32>
    %6 = tpu.matmul %4, %5, %cst {dimension_numbers = #tpu.dot_dimension_numbers<[1], [0], [0], [1], [0, 0, 1, 1], [], []>} : vector<64x64xbf16>, vector<64x128xbf16>, vector<64x128xf32> -> vector<64x128xf32>
    %7 = arith.addf %3, %6 : vector<64x128xf32>
    %c0_6 = arith.constant 0 : index
    %c0_7 = arith.constant 0 : index
    %8 = vector.load %arg7[%c0_6, %c0_7] : memref<64x128xf32, #tpu.memory_space<vmem>>, vector<64x128xf32>
    tpu.vector_store %arg7[%c0_6, %c0_7], %7 {strides = array<i32>} : memref<64x128xf32, #tpu.memory_space<vmem>>, vector<64x128xf32>,
    %c0_i32_8 = arith.constant 0 : i32
    %9 = arith.cmpi eq, %arg2, %c0_i32_8 : i32
    %10 = arith.extui %9 : i1 to i32
    %c0_i32_9 = arith.constant 0 : i32
    %11 = arith.cmpi ne, %10, %c0_i32_9 : i32
    scf.if %11 {
      %c0_10 = arith.constant 0 : index
      %c0_11 = arith.constant 0 : index
      %12 = vector.load %arg7[%c0_10, %c0_11] : memref<64x128xf32, #tpu.memory_space<vmem>>, vector<64x128xf32>
      %c0_12 = arith.constant 0 : index
      %c0_13 = arith.constant 0 : index
      %13 = vector.load %arg5[%c0_12, %c0_13] : memref<1x128xf32, #tpu.memory_space<vmem>>, vector<1x128xf32>
      %14 = vector.broadcast %13 : vector<1x128xf32> to vector<64x128xf32>
      %15 = arith.addf %12, %14 : vector<64x128xf32>
      %cst_14 = arith.constant 5.000000e-01 : f32
      %16 = vector.broadcast %cst_14 : f32 to vector<64x128xf32>
      %17 = arith.mulf %16, %15 : vector<64x128xf32>
      %cst_15 = arith.constant 4.471500e-02 : f32
      %18 = vector.broadcast %cst_15 : f32 to vector<64x128xf32>
      %19 = arith.mulf %18, %15 : vector<64x128xf32>
      %20 = arith.mulf %19, %15 : vector<64x128xf32>
      %21 = arith.mulf %20, %15 : vector<64x128xf32>
      %22 = arith.addf %15, %21 : vector<64x128xf32>
      %cst_16 = arith.constant 0.797884583 : f32
      %23 = vector.broadcast %cst_16 : f32 to vector<64x128xf32>
      %24 = arith.mulf %23, %22 : vector<64x128xf32>
      %25 = math.tanh %24 : vector<64x128xf32>
      %cst_17 = arith.constant 1.000000e+00 : f32
      %26 = vector.broadcast %cst_17 : f32 to vector<64x128xf32>
      %27 = arith.addf %26, %25 : vector<64x128xf32>
      %28 = arith.mulf %17, %27 : vector<64x128xf32>
      %29 = arith.truncf %28 : vector<64x128xf32> to vector<64x128xbf16>
      %c0_18 = arith.constant 0 : index
      %c0_19 = arith.constant 0 : index
      %30 = vector.load %arg6[%c0_18, %c0_19] : memref<64x128xbf16, #tpu.memory_space<vmem>>, vector<64x128xbf16>
      tpu.vector_store %arg6[%c0_18, %c0_19], %29 {strides = array<i32>} : memref<64x128xbf16, #tpu.memory_space<vmem>>, vector<64x128xbf16>,
    } else {
    }
    return
  }
  func.func @transform_0(%arg0: i32, %arg1: i32, %arg2: i32) -> (i32, i32) {
    %c0_i32 = arith.constant 0 : i32
    return %arg0, %arg2 : i32, i32
  }
  func.func @transform_1(%arg0: i32, %arg1: i32, %arg2: i32) -> (i32, i32) {
    %c0_i32 = arith.constant 0 : i32
    return %arg2, %arg1 : i32, i32
  }
  func.func @transform_2(%arg0: i32, %arg1: i32, %arg2: i32) -> (i32, i32) {
    %c0_i32 = arith.constant 0 : i32
    %c0_i32_0 = arith.constant 0 : i32
    return %c0_i32, %arg1 : i32, i32
  }
  func.func @transform_3(%arg0: i32, %arg1: i32, %arg2: i32) -> (i32, i32) {
    %c0_i32 = arith.constant 0 : i32
    return %arg0, %arg1 : i32, i32
  }
}

module attributes {stable_mosaic.version = 11 : i64} {
  func.func @_conv_gemm_kernel(%arg0: i32, %arg1: i32, %arg2: i32, %arg3: memref<16x128xbf16, #tpu.memory_space<vmem>>, %arg4: memref<128x128xbf16, #tpu.memory_space<vmem>>, %arg5: memref<1x128xf32, #tpu.memory_space<vmem>>, %arg6: memref<16x128xbf16, #tpu.memory_space<vmem>>, %arg7: memref<1x2x128xf32, #tpu.memory_space<vmem>>, %arg8: memref<16x128xf32, #tpu.memory_space<vmem>>) attributes {dimension_semantics = [#tpu.dimension_semantics<parallel>, #tpu.dimension_semantics<parallel>, #tpu.dimension_semantics<arbitrary>], iteration_bounds = array<i64: 2, 1, 1>, scalar_prefetch = 0 : i64, scratch_operands = 1 : i64, tpu.core_type = #tpu.core_type<tc>, window_params = [{transform_indices = @transform_0, window_bounds = array<i64: 16, 128>}, {transform_indices = @transform_1, window_bounds = array<i64: 128, 128>}, {transform_indices = @transform_2, window_bounds = array<i64: 1, 128>}, {transform_indices = @transform_3, window_bounds = array<i64: 16, 128>}, {transform_indices = @transform_4, window_bounds = array<i64: 1, 2, 128>}]} {
    %c0_i32 = arith.constant 0 : i32
    %0 = arith.cmpi eq, %arg2, %c0_i32 : i32
    %1 = arith.extui %0 : i1 to i32
    %c0_i32_0 = arith.constant 0 : i32
    %2 = arith.cmpi ne, %1, %c0_i32_0 : i32
    scf.if %2 {
      %cst_10 = arith.constant 0.000000e+00 : f32
      %12 = vector.broadcast %cst_10 : f32 to vector<16x128xf32>
      %c0_11 = arith.constant 0 : index
      %c0_12 = arith.constant 0 : index
      %13 = vector.load %arg8[%c0_11, %c0_12] : memref<16x128xf32, #tpu.memory_space<vmem>>, vector<16x128xf32>
      tpu.vector_store %arg8[%c0_11, %c0_12], %12 {strides = array<i32>} : memref<16x128xf32, #tpu.memory_space<vmem>>, vector<16x128xf32>,
    } else {
    }
    %c0 = arith.constant 0 : index
    %c0_1 = arith.constant 0 : index
    %3 = vector.load %arg8[%c0, %c0_1] : memref<16x128xf32, #tpu.memory_space<vmem>>, vector<16x128xf32>
    %c0_2 = arith.constant 0 : index
    %c0_3 = arith.constant 0 : index
    %4 = vector.load %arg3[%c0_2, %c0_3] : memref<16x128xbf16, #tpu.memory_space<vmem>>, vector<16x128xbf16>
    %c0_4 = arith.constant 0 : index
    %c0_5 = arith.constant 0 : index
    %5 = vector.load %arg4[%c0_4, %c0_5] : memref<128x128xbf16, #tpu.memory_space<vmem>>, vector<128x128xbf16>
    %cst = arith.constant dense<0.000000e+00> : vector<16x128xf32>
    %6 = tpu.matmul %4, %5, %cst {dimension_numbers = #tpu.dot_dimension_numbers<[1], [0], [0], [1], [0, 0, 1, 1], [], []>} : vector<16x128xbf16>, vector<128x128xbf16>, vector<16x128xf32> -> vector<16x128xf32>
    %7 = arith.addf %3, %6 : vector<16x128xf32>
    %c0_6 = arith.constant 0 : index
    %c0_7 = arith.constant 0 : index
    %8 = vector.load %arg8[%c0_6, %c0_7] : memref<16x128xf32, #tpu.memory_space<vmem>>, vector<16x128xf32>
    tpu.vector_store %arg8[%c0_6, %c0_7], %7 {strides = array<i32>} : memref<16x128xf32, #tpu.memory_space<vmem>>, vector<16x128xf32>,
    %c0_i32_8 = arith.constant 0 : i32
    %9 = arith.cmpi eq, %arg2, %c0_i32_8 : i32
    %10 = arith.extui %9 : i1 to i32
    %c0_i32_9 = arith.constant 0 : i32
    %11 = arith.cmpi ne, %10, %c0_i32_9 : i32
    scf.if %11 {
      %c0_10 = arith.constant 0 : index
      %c0_11 = arith.constant 0 : index
      %12 = vector.load %arg8[%c0_10, %c0_11] : memref<16x128xf32, #tpu.memory_space<vmem>>, vector<16x128xf32>
      %c0_12 = arith.constant 0 : index
      %c0_13 = arith.constant 0 : index
      %13 = vector.load %arg5[%c0_12, %c0_13] : memref<1x128xf32, #tpu.memory_space<vmem>>, vector<1x128xf32>
      %14 = vector.broadcast %13 : vector<1x128xf32> to vector<16x128xf32>
      %15 = arith.addf %12, %14 : vector<16x128xf32>
      %16 = arith.truncf %15 : vector<16x128xf32> to vector<16x128xbf16>
      %c0_14 = arith.constant 0 : index
      %c0_15 = arith.constant 0 : index
      %17 = vector.load %arg6[%c0_14, %c0_15] : memref<16x128xbf16, #tpu.memory_space<vmem>>, vector<16x128xbf16>
      tpu.vector_store %arg6[%c0_14, %c0_15], %16 {strides = array<i32>} : memref<16x128xbf16, #tpu.memory_space<vmem>>, vector<16x128xbf16>,
      %cst_16 = arith.constant dense<0.000000e+00> : vector<128xf32>
      %18 = vector.multi_reduction <add>, %12, %cst_16 [0] : vector<16x128xf32> to vector<128xf32>
      %19 = vector.shape_cast %18 : vector<128xf32> to vector<1x128xf32>
      %20 = arith.mulf %12, %12 : vector<16x128xf32>
      %cst_17 = arith.constant dense<0.000000e+00> : vector<128xf32>
      %21 = vector.multi_reduction <add>, %20, %cst_17 [0] : vector<16x128xf32> to vector<128xf32>
      %22 = vector.shape_cast %21 : vector<128xf32> to vector<1x128xf32>
      %23 = vector.shape_cast %19 : vector<1x128xf32> to vector<1x1x128xf32>
      %c0_18 = arith.constant 0 : index
      %c0_19 = arith.constant 0 : index
      %c0_20 = arith.constant 0 : index
      %24 = vector.load %arg7[%c0_18, %c0_19, %c0_20] : memref<1x2x128xf32, #tpu.memory_space<vmem>>, vector<1x1x128xf32>
      tpu.vector_store %arg7[%c0_18, %c0_19, %c0_20], %23 {strides = array<i32>} : memref<1x2x128xf32, #tpu.memory_space<vmem>>, vector<1x1x128xf32>,
      %25 = vector.shape_cast %22 : vector<1x128xf32> to vector<1x1x128xf32>
      %c0_21 = arith.constant 0 : index
      %c1 = arith.constant 1 : index
      %c0_22 = arith.constant 0 : index
      %26 = vector.load %arg7[%c0_21, %c1, %c0_22] : memref<1x2x128xf32, #tpu.memory_space<vmem>>, vector<1x1x128xf32>
      tpu.vector_store %arg7[%c0_21, %c1, %c0_22], %25 {strides = array<i32>} : memref<1x2x128xf32, #tpu.memory_space<vmem>>, vector<1x1x128xf32>,
    } else {
    }
    return
  }
  func.func @transform_0(%arg0: i32, %arg1: i32, %arg2: i32) -> (i32, i32) {
    %c0_i32 = arith.constant 0 : i32
    return %arg0, %arg2 : i32, i32
  }
  func.func @transform_1(%arg0: i32, %arg1: i32, %arg2: i32) -> (i32, i32) {
    %c0_i32 = arith.constant 0 : i32
    return %arg2, %arg1 : i32, i32
  }
  func.func @transform_2(%arg0: i32, %arg1: i32, %arg2: i32) -> (i32, i32) {
    %c0_i32 = arith.constant 0 : i32
    %c0_i32_0 = arith.constant 0 : i32
    return %c0_i32, %arg1 : i32, i32
  }
  func.func @transform_3(%arg0: i32, %arg1: i32, %arg2: i32) -> (i32, i32) {
    %c0_i32 = arith.constant 0 : i32
    return %arg0, %arg1 : i32, i32
  }
  func.func @transform_4(%arg0: i32, %arg1: i32, %arg2: i32) -> (i32, i32, i32) {
    %c0_i32 = arith.constant 0 : i32
    %c0_i32_0 = arith.constant 0 : i32
    return %arg0, %c0_i32, %arg1 : i32, i32, i32
  }
}

module attributes {stable_mosaic.version = 11 : i64} {
  func.func @_bn_finalize_kernel(%arg0: i32, %arg1: memref<1x2x128xf32, #tpu.memory_space<vmem>>, %arg2: memref<2x128xf32, #tpu.memory_space<vmem>>) attributes {dimension_semantics = [#tpu.dimension_semantics<arbitrary>], iteration_bounds = array<i64: 2>, scalar_prefetch = 0 : i64, scratch_operands = 0 : i64, tpu.core_type = #tpu.core_type<tc>, window_params = [{transform_indices = @transform_0, window_bounds = array<i64: 1, 2, 128>}, {pipeline_mode = #tpu.pipeline_mode<synchronous>, transform_indices = @transform_1, window_bounds = array<i64: 2, 128>}]} {
    %c0_i32 = arith.constant 0 : i32
    %0 = arith.cmpi eq, %arg0, %c0_i32 : i32
    %1 = arith.extui %0 : i1 to i32
    %c0_i32_0 = arith.constant 0 : i32
    %2 = arith.cmpi ne, %1, %c0_i32_0 : i32
    scf.if %2 {
      %cst = arith.constant 0.000000e+00 : f32
      %11 = vector.broadcast %cst : f32 to vector<2x128xf32>
      %c0_8 = arith.constant 0 : index
      %c0_9 = arith.constant 0 : index
      %12 = vector.load %arg2[%c0_8, %c0_9] : memref<2x128xf32, #tpu.memory_space<vmem>>, vector<2x128xf32>
      tpu.vector_store %arg2[%c0_8, %c0_9], %11 {strides = array<i32>} : memref<2x128xf32, #tpu.memory_space<vmem>>, vector<2x128xf32>,
    } else {
    }
    %c0 = arith.constant 0 : index
    %c0_1 = arith.constant 0 : index
    %3 = vector.load %arg2[%c0, %c0_1] : memref<2x128xf32, #tpu.memory_space<vmem>>, vector<2x128xf32>
    %c0_2 = arith.constant 0 : index
    %c0_3 = arith.constant 0 : index
    %c0_4 = arith.constant 0 : index
    %4 = vector.load %arg1[%c0_2, %c0_3, %c0_4] : memref<1x2x128xf32, #tpu.memory_space<vmem>>, vector<1x2x128xf32>
    %5 = vector.shape_cast %4 : vector<1x2x128xf32> to vector<2x128xf32>
    %6 = arith.addf %3, %5 : vector<2x128xf32>
    %c0_5 = arith.constant 0 : index
    %c0_6 = arith.constant 0 : index
    %7 = vector.load %arg2[%c0_5, %c0_6] : memref<2x128xf32, #tpu.memory_space<vmem>>, vector<2x128xf32>
    tpu.vector_store %arg2[%c0_5, %c0_6], %6 {strides = array<i32>} : memref<2x128xf32, #tpu.memory_space<vmem>>, vector<2x128xf32>,
    %c1_i32 = arith.constant 1 : i32
    %8 = arith.cmpi eq, %arg0, %c1_i32 : i32
    %9 = arith.extui %8 : i1 to i32
    %c0_i32_7 = arith.constant 0 : i32
    %10 = arith.cmpi ne, %9, %c0_i32_7 : i32
    scf.if %10 {
      %c0_8 = arith.constant 0 : index
      %c0_9 = arith.constant 0 : index
      %11 = vector.load %arg2[%c0_8, %c0_9] : memref<2x128xf32, #tpu.memory_space<vmem>>, vector<1x128xf32>
      %cst = arith.constant 3.125000e-02 : f32
      %12 = vector.broadcast %cst : f32 to vector<1x128xf32>
      %13 = arith.mulf %11, %12 : vector<1x128xf32>
      %c1 = arith.constant 1 : index
      %c0_10 = arith.constant 0 : index
      %14 = vector.load %arg2[%c1, %c0_10] : memref<2x128xf32, #tpu.memory_space<vmem>>, vector<1x128xf32>
      %cst_11 = arith.constant 3.125000e-02 : f32
      %15 = vector.broadcast %cst_11 : f32 to vector<1x128xf32>
      %16 = arith.mulf %14, %15 : vector<1x128xf32>
      %17 = arith.mulf %13, %13 : vector<1x128xf32>
      %18 = arith.subf %16, %17 : vector<1x128xf32>
      %cst_12 = arith.constant 0.000000e+00 : f32
      %19 = vector.broadcast %cst_12 : f32 to vector<1x128xf32>
      %20 = arith.maximumf %18, %19 : vector<1x128xf32>
      %c0_13 = arith.constant 0 : index
      %c0_14 = arith.constant 0 : index
      %21 = vector.load %arg2[%c0_13, %c0_14] : memref<2x128xf32, #tpu.memory_space<vmem>>, vector<1x128xf32>
      tpu.vector_store %arg2[%c0_13, %c0_14], %13 {strides = array<i32>} : memref<2x128xf32, #tpu.memory_space<vmem>>, vector<1x128xf32>,
      %cst_15 = arith.constant 9.99999974E-6 : f32
      %22 = vector.broadcast %cst_15 : f32 to vector<1x128xf32>
      %23 = arith.addf %20, %22 : vector<1x128xf32>
      %24 = math.rsqrt %23 : vector<1x128xf32>
      %c1_16 = arith.constant 1 : index
      %c0_17 = arith.constant 0 : index
      %25 = vector.load %arg2[%c1_16, %c0_17] : memref<2x128xf32, #tpu.memory_space<vmem>>, vector<1x128xf32>
      tpu.vector_store %arg2[%c1_16, %c0_17], %24 {strides = array<i32>} : memref<2x128xf32, #tpu.memory_space<vmem>>, vector<1x128xf32>,
    } else {
    }
    return
  }
  func.func @transform_0(%arg0: i32) -> (i32, i32, i32) {
    %c0_i32 = arith.constant 0 : i32
    %c0_i32_0 = arith.constant 0 : i32
    %c0_i32_1 = arith.constant 0 : i32
    return %arg0, %c0_i32, %c0_i32_0 : i32, i32, i32
  }
  func.func @transform_1(%arg0: i32) -> (i32, i32) {
    %c0_i32 = arith.constant 0 : i32
    %c0_i32_0 = arith.constant 0 : i32
    %c0_i32_1 = arith.constant 0 : i32
    return %c0_i32, %c0_i32_0 : i32, i32
  }
}

module attributes {stable_mosaic.version = 11 : i64} {
  func.func @_bn_apply_kernel(%arg0: i32, %arg1: memref<16x128xbf16, #tpu.memory_space<vmem>>, %arg2: memref<2x128xf32, #tpu.memory_space<vmem>>, %arg3: memref<1x128xf32, #tpu.memory_space<vmem>>, %arg4: memref<1x128xf32, #tpu.memory_space<vmem>>, %arg5: memref<16x128xbf16, #tpu.memory_space<vmem>>) attributes {dimension_semantics = [#tpu.dimension_semantics<parallel>], iteration_bounds = array<i64: 2>, scalar_prefetch = 0 : i64, scratch_operands = 0 : i64, tpu.core_type = #tpu.core_type<tc>, window_params = [{transform_indices = @transform_0, window_bounds = array<i64: 16, 128>}, {pipeline_mode = #tpu.pipeline_mode<synchronous>, transform_indices = @transform_1, window_bounds = array<i64: 2, 128>}, {pipeline_mode = #tpu.pipeline_mode<synchronous>, transform_indices = @transform_2, window_bounds = array<i64: 1, 128>}, {pipeline_mode = #tpu.pipeline_mode<synchronous>, transform_indices = @transform_3, window_bounds = array<i64: 1, 128>}, {transform_indices = @transform_4, window_bounds = array<i64: 16, 128>}]} {
    %c0 = arith.constant 0 : index
    %c0_0 = arith.constant 0 : index
    %0 = vector.load %arg1[%c0, %c0_0] : memref<16x128xbf16, #tpu.memory_space<vmem>>, vector<16x128xbf16>
    %1 = arith.extf %0 : vector<16x128xbf16> to vector<16x128xf32>
    %c0_1 = arith.constant 0 : index
    %c0_2 = arith.constant 0 : index
    %2 = vector.load %arg2[%c0_1, %c0_2] : memref<2x128xf32, #tpu.memory_space<vmem>>, vector<1x128xf32>
    %3 = vector.broadcast %2 : vector<1x128xf32> to vector<16x128xf32>
    %4 = arith.subf %1, %3 : vector<16x128xf32>
    %c1 = arith.constant 1 : index
    %c0_3 = arith.constant 0 : index
    %5 = vector.load %arg2[%c1, %c0_3] : memref<2x128xf32, #tpu.memory_space<vmem>>, vector<1x128xf32>
    %c0_4 = arith.constant 0 : index
    %c0_5 = arith.constant 0 : index
    %6 = vector.load %arg3[%c0_4, %c0_5] : memref<1x128xf32, #tpu.memory_space<vmem>>, vector<1x128xf32>
    %7 = arith.mulf %5, %6 : vector<1x128xf32>
    %8 = vector.broadcast %7 : vector<1x128xf32> to vector<16x128xf32>
    %9 = arith.mulf %4, %8 : vector<16x128xf32>
    %c0_6 = arith.constant 0 : index
    %c0_7 = arith.constant 0 : index
    %10 = vector.load %arg4[%c0_6, %c0_7] : memref<1x128xf32, #tpu.memory_space<vmem>>, vector<1x128xf32>
    %11 = vector.broadcast %10 : vector<1x128xf32> to vector<16x128xf32>
    %12 = arith.addf %9, %11 : vector<16x128xf32>
    %cst = arith.constant 5.000000e-01 : f32
    %13 = vector.broadcast %cst : f32 to vector<16x128xf32>
    %14 = arith.mulf %13, %12 : vector<16x128xf32>
    %cst_8 = arith.constant 4.471500e-02 : f32
    %15 = vector.broadcast %cst_8 : f32 to vector<16x128xf32>
    %16 = arith.mulf %15, %12 : vector<16x128xf32>
    %17 = arith.mulf %16, %12 : vector<16x128xf32>
    %18 = arith.mulf %17, %12 : vector<16x128xf32>
    %19 = arith.addf %12, %18 : vector<16x128xf32>
    %cst_9 = arith.constant 0.797884583 : f32
    %20 = vector.broadcast %cst_9 : f32 to vector<16x128xf32>
    %21 = arith.mulf %20, %19 : vector<16x128xf32>
    %22 = math.tanh %21 : vector<16x128xf32>
    %cst_10 = arith.constant 1.000000e+00 : f32
    %23 = vector.broadcast %cst_10 : f32 to vector<16x128xf32>
    %24 = arith.addf %23, %22 : vector<16x128xf32>
    %25 = arith.mulf %14, %24 : vector<16x128xf32>
    %26 = arith.truncf %25 : vector<16x128xf32> to vector<16x128xbf16>
    %c0_11 = arith.constant 0 : index
    %c0_12 = arith.constant 0 : index
    %27 = vector.load %arg5[%c0_11, %c0_12] : memref<16x128xbf16, #tpu.memory_space<vmem>>, vector<16x128xbf16>
    tpu.vector_store %arg5[%c0_11, %c0_12], %26 {strides = array<i32>} : memref<16x128xbf16, #tpu.memory_space<vmem>>, vector<16x128xbf16>,
    return
  }
  func.func @transform_0(%arg0: i32) -> (i32, i32) {
    %c0_i32 = arith.constant 0 : i32
    %c0_i32_0 = arith.constant 0 : i32
    return %arg0, %c0_i32 : i32, i32
  }
  func.func @transform_1(%arg0: i32) -> (i32, i32) {
    %c0_i32 = arith.constant 0 : i32
    %c0_i32_0 = arith.constant 0 : i32
    %c0_i32_1 = arith.constant 0 : i32
    return %c0_i32, %c0_i32_0 : i32, i32
  }
  func.func @transform_2(%arg0: i32) -> (i32, i32) {
    %c0_i32 = arith.constant 0 : i32
    %c0_i32_0 = arith.constant 0 : i32
    %c0_i32_1 = arith.constant 0 : i32
    return %c0_i32, %c0_i32_0 : i32, i32
  }
  func.func @transform_3(%arg0: i32) -> (i32, i32) {
    %c0_i32 = arith.constant 0 : i32
    %c0_i32_0 = arith.constant 0 : i32
    %c0_i32_1 = arith.constant 0 : i32
    return %c0_i32, %c0_i32_0 : i32, i32
  }
  func.func @transform_4(%arg0: i32) -> (i32, i32) {
    %c0_i32 = arith.constant 0 : i32
    %c0_i32_0 = arith.constant 0 : i32
    return %arg0, %c0_i32 : i32, i32
  }
}

module attributes {stable_mosaic.version = 11 : i64} {
  func.func @_conv_gemm_kernel(%arg0: i32, %arg1: i32, %arg2: i32, %arg3: memref<8x128xbf16, #tpu.memory_space<vmem>>, %arg4: memref<128x128xbf16, #tpu.memory_space<vmem>>, %arg5: memref<1x128xf32, #tpu.memory_space<vmem>>, %arg6: memref<8x128xbf16, #tpu.memory_space<vmem>>, %arg7: memref<1x2x128xf32, #tpu.memory_space<vmem>>, %arg8: memref<8x128xf32, #tpu.memory_space<vmem>>) attributes {dimension_semantics = [#tpu.dimension_semantics<parallel>, #tpu.dimension_semantics<parallel>, #tpu.dimension_semantics<arbitrary>], iteration_bounds = array<i64: 3, 1, 1>, scalar_prefetch = 0 : i64, scratch_operands = 1 : i64, tpu.core_type = #tpu.core_type<tc>, window_params = [{transform_indices = @transform_0, window_bounds = array<i64: 8, 128>}, {transform_indices = @transform_1, window_bounds = array<i64: 128, 128>}, {transform_indices = @transform_2, window_bounds = array<i64: 1, 128>}, {transform_indices = @transform_3, window_bounds = array<i64: 8, 128>}, {transform_indices = @transform_4, window_bounds = array<i64: 1, 2, 128>}]} {
    %c0_i32 = arith.constant 0 : i32
    %0 = arith.cmpi eq, %arg2, %c0_i32 : i32
    %1 = arith.extui %0 : i1 to i32
    %c0_i32_0 = arith.constant 0 : i32
    %2 = arith.cmpi ne, %1, %c0_i32_0 : i32
    scf.if %2 {
      %cst_10 = arith.constant 0.000000e+00 : f32
      %12 = vector.broadcast %cst_10 : f32 to vector<8x128xf32>
      %c0_11 = arith.constant 0 : index
      %c0_12 = arith.constant 0 : index
      %13 = vector.load %arg8[%c0_11, %c0_12] : memref<8x128xf32, #tpu.memory_space<vmem>>, vector<8x128xf32>
      tpu.vector_store %arg8[%c0_11, %c0_12], %12 {strides = array<i32>} : memref<8x128xf32, #tpu.memory_space<vmem>>, vector<8x128xf32>,
    } else {
    }
    %c0 = arith.constant 0 : index
    %c0_1 = arith.constant 0 : index
    %3 = vector.load %arg8[%c0, %c0_1] : memref<8x128xf32, #tpu.memory_space<vmem>>, vector<8x128xf32>
    %c0_2 = arith.constant 0 : index
    %c0_3 = arith.constant 0 : index
    %4 = vector.load %arg3[%c0_2, %c0_3] : memref<8x128xbf16, #tpu.memory_space<vmem>>, vector<8x128xbf16>
    %c0_4 = arith.constant 0 : index
    %c0_5 = arith.constant 0 : index
    %5 = vector.load %arg4[%c0_4, %c0_5] : memref<128x128xbf16, #tpu.memory_space<vmem>>, vector<128x128xbf16>
    %cst = arith.constant dense<0.000000e+00> : vector<8x128xf32>
    %6 = tpu.matmul %4, %5, %cst {dimension_numbers = #tpu.dot_dimension_numbers<[1], [0], [0], [1], [0, 0, 1, 1], [], []>} : vector<8x128xbf16>, vector<128x128xbf16>, vector<8x128xf32> -> vector<8x128xf32>
    %7 = arith.addf %3, %6 : vector<8x128xf32>
    %c0_6 = arith.constant 0 : index
    %c0_7 = arith.constant 0 : index
    %8 = vector.load %arg8[%c0_6, %c0_7] : memref<8x128xf32, #tpu.memory_space<vmem>>, vector<8x128xf32>
    tpu.vector_store %arg8[%c0_6, %c0_7], %7 {strides = array<i32>} : memref<8x128xf32, #tpu.memory_space<vmem>>, vector<8x128xf32>,
    %c0_i32_8 = arith.constant 0 : i32
    %9 = arith.cmpi eq, %arg2, %c0_i32_8 : i32
    %10 = arith.extui %9 : i1 to i32
    %c0_i32_9 = arith.constant 0 : i32
    %11 = arith.cmpi ne, %10, %c0_i32_9 : i32
    scf.if %11 {
      %c0_10 = arith.constant 0 : index
      %c0_11 = arith.constant 0 : index
      %12 = vector.load %arg8[%c0_10, %c0_11] : memref<8x128xf32, #tpu.memory_space<vmem>>, vector<8x128xf32>
      %c0_12 = arith.constant 0 : index
      %c0_13 = arith.constant 0 : index
      %13 = vector.load %arg5[%c0_12, %c0_13] : memref<1x128xf32, #tpu.memory_space<vmem>>, vector<1x128xf32>
      %14 = vector.broadcast %13 : vector<1x128xf32> to vector<8x128xf32>
      %15 = arith.addf %12, %14 : vector<8x128xf32>
      %16 = arith.truncf %15 : vector<8x128xf32> to vector<8x128xbf16>
      %c0_14 = arith.constant 0 : index
      %c0_15 = arith.constant 0 : index
      %17 = vector.load %arg6[%c0_14, %c0_15] : memref<8x128xbf16, #tpu.memory_space<vmem>>, vector<8x128xbf16>
      tpu.vector_store %arg6[%c0_14, %c0_15], %16 {strides = array<i32>} : memref<8x128xbf16, #tpu.memory_space<vmem>>, vector<8x128xbf16>,
      %cst_16 = arith.constant dense<0.000000e+00> : vector<128xf32>
      %18 = vector.multi_reduction <add>, %12, %cst_16 [0] : vector<8x128xf32> to vector<128xf32>
      %19 = vector.shape_cast %18 : vector<128xf32> to vector<1x128xf32>
      %20 = arith.mulf %12, %12 : vector<8x128xf32>
      %cst_17 = arith.constant dense<0.000000e+00> : vector<128xf32>
      %21 = vector.multi_reduction <add>, %20, %cst_17 [0] : vector<8x128xf32> to vector<128xf32>
      %22 = vector.shape_cast %21 : vector<128xf32> to vector<1x128xf32>
      %23 = vector.shape_cast %19 : vector<1x128xf32> to vector<1x1x128xf32>
      %c0_18 = arith.constant 0 : index
      %c0_19 = arith.constant 0 : index
      %c0_20 = arith.constant 0 : index
      %24 = vector.load %arg7[%c0_18, %c0_19, %c0_20] : memref<1x2x128xf32, #tpu.memory_space<vmem>>, vector<1x1x128xf32>
      tpu.vector_store %arg7[%c0_18, %c0_19, %c0_20], %23 {strides = array<i32>} : memref<1x2x128xf32, #tpu.memory_space<vmem>>, vector<1x1x128xf32>,
      %25 = vector.shape_cast %22 : vector<1x128xf32> to vector<1x1x128xf32>
      %c0_21 = arith.constant 0 : index
      %c1 = arith.constant 1 : index
      %c0_22 = arith.constant 0 : index
      %26 = vector.load %arg7[%c0_21, %c1, %c0_22] : memref<1x2x128xf32, #tpu.memory_space<vmem>>, vector<1x1x128xf32>
      tpu.vector_store %arg7[%c0_21, %c1, %c0_22], %25 {strides = array<i32>} : memref<1x2x128xf32, #tpu.memory_space<vmem>>, vector<1x1x128xf32>,
    } else {
    }
    return
  }
  func.func @transform_0(%arg0: i32, %arg1: i32, %arg2: i32) -> (i32, i32) {
    %c0_i32 = arith.constant 0 : i32
    return %arg0, %arg2 : i32, i32
  }
  func.func @transform_1(%arg0: i32, %arg1: i32, %arg2: i32) -> (i32, i32) {
    %c0_i32 = arith.constant 0 : i32
    return %arg2, %arg1 : i32, i32
  }
  func.func @transform_2(%arg0: i32, %arg1: i32, %arg2: i32) -> (i32, i32) {
    %c0_i32 = arith.constant 0 : i32
    %c0_i32_0 = arith.constant 0 : i32
    return %c0_i32, %arg1 : i32, i32
  }
  func.func @transform_3(%arg0: i32, %arg1: i32, %arg2: i32) -> (i32, i32) {
    %c0_i32 = arith.constant 0 : i32
    return %arg0, %arg1 : i32, i32
  }
  func.func @transform_4(%arg0: i32, %arg1: i32, %arg2: i32) -> (i32, i32, i32) {
    %c0_i32 = arith.constant 0 : i32
    %c0_i32_0 = arith.constant 0 : i32
    return %arg0, %c0_i32, %arg1 : i32, i32, i32
  }
}

module attributes {stable_mosaic.version = 11 : i64} {
  func.func @_bn_finalize_kernel(%arg0: i32, %arg1: memref<1x2x128xf32, #tpu.memory_space<vmem>>, %arg2: memref<2x128xf32, #tpu.memory_space<vmem>>) attributes {dimension_semantics = [#tpu.dimension_semantics<arbitrary>], iteration_bounds = array<i64: 3>, scalar_prefetch = 0 : i64, scratch_operands = 0 : i64, tpu.core_type = #tpu.core_type<tc>, window_params = [{transform_indices = @transform_0, window_bounds = array<i64: 1, 2, 128>}, {pipeline_mode = #tpu.pipeline_mode<synchronous>, transform_indices = @transform_1, window_bounds = array<i64: 2, 128>}]} {
    %c0_i32 = arith.constant 0 : i32
    %0 = arith.cmpi eq, %arg0, %c0_i32 : i32
    %1 = arith.extui %0 : i1 to i32
    %c0_i32_0 = arith.constant 0 : i32
    %2 = arith.cmpi ne, %1, %c0_i32_0 : i32
    scf.if %2 {
      %cst = arith.constant 0.000000e+00 : f32
      %11 = vector.broadcast %cst : f32 to vector<2x128xf32>
      %c0_8 = arith.constant 0 : index
      %c0_9 = arith.constant 0 : index
      %12 = vector.load %arg2[%c0_8, %c0_9] : memref<2x128xf32, #tpu.memory_space<vmem>>, vector<2x128xf32>
      tpu.vector_store %arg2[%c0_8, %c0_9], %11 {strides = array<i32>} : memref<2x128xf32, #tpu.memory_space<vmem>>, vector<2x128xf32>,
    } else {
    }
    %c0 = arith.constant 0 : index
    %c0_1 = arith.constant 0 : index
    %3 = vector.load %arg2[%c0, %c0_1] : memref<2x128xf32, #tpu.memory_space<vmem>>, vector<2x128xf32>
    %c0_2 = arith.constant 0 : index
    %c0_3 = arith.constant 0 : index
    %c0_4 = arith.constant 0 : index
    %4 = vector.load %arg1[%c0_2, %c0_3, %c0_4] : memref<1x2x128xf32, #tpu.memory_space<vmem>>, vector<1x2x128xf32>
    %5 = vector.shape_cast %4 : vector<1x2x128xf32> to vector<2x128xf32>
    %6 = arith.addf %3, %5 : vector<2x128xf32>
    %c0_5 = arith.constant 0 : index
    %c0_6 = arith.constant 0 : index
    %7 = vector.load %arg2[%c0_5, %c0_6] : memref<2x128xf32, #tpu.memory_space<vmem>>, vector<2x128xf32>
    tpu.vector_store %arg2[%c0_5, %c0_6], %6 {strides = array<i32>} : memref<2x128xf32, #tpu.memory_space<vmem>>, vector<2x128xf32>,
    %c2_i32 = arith.constant 2 : i32
    %8 = arith.cmpi eq, %arg0, %c2_i32 : i32
    %9 = arith.extui %8 : i1 to i32
    %c0_i32_7 = arith.constant 0 : i32
    %10 = arith.cmpi ne, %9, %c0_i32_7 : i32
    scf.if %10 {
      %c0_8 = arith.constant 0 : index
      %c0_9 = arith.constant 0 : index
      %11 = vector.load %arg2[%c0_8, %c0_9] : memref<2x128xf32, #tpu.memory_space<vmem>>, vector<1x128xf32>
      %cst = arith.constant 0.055555556 : f32
      %12 = vector.broadcast %cst : f32 to vector<1x128xf32>
      %13 = arith.mulf %11, %12 : vector<1x128xf32>
      %c1 = arith.constant 1 : index
      %c0_10 = arith.constant 0 : index
      %14 = vector.load %arg2[%c1, %c0_10] : memref<2x128xf32, #tpu.memory_space<vmem>>, vector<1x128xf32>
      %cst_11 = arith.constant 0.055555556 : f32
      %15 = vector.broadcast %cst_11 : f32 to vector<1x128xf32>
      %16 = arith.mulf %14, %15 : vector<1x128xf32>
      %17 = arith.mulf %13, %13 : vector<1x128xf32>
      %18 = arith.subf %16, %17 : vector<1x128xf32>
      %cst_12 = arith.constant 0.000000e+00 : f32
      %19 = vector.broadcast %cst_12 : f32 to vector<1x128xf32>
      %20 = arith.maximumf %18, %19 : vector<1x128xf32>
      %c0_13 = arith.constant 0 : index
      %c0_14 = arith.constant 0 : index
      %21 = vector.load %arg2[%c0_13, %c0_14] : memref<2x128xf32, #tpu.memory_space<vmem>>, vector<1x128xf32>
      tpu.vector_store %arg2[%c0_13, %c0_14], %13 {strides = array<i32>} : memref<2x128xf32, #tpu.memory_space<vmem>>, vector<1x128xf32>,
      %cst_15 = arith.constant 9.99999974E-6 : f32
      %22 = vector.broadcast %cst_15 : f32 to vector<1x128xf32>
      %23 = arith.addf %20, %22 : vector<1x128xf32>
      %24 = math.rsqrt %23 : vector<1x128xf32>
      %c1_16 = arith.constant 1 : index
      %c0_17 = arith.constant 0 : index
      %25 = vector.load %arg2[%c1_16, %c0_17] : memref<2x128xf32, #tpu.memory_space<vmem>>, vector<1x128xf32>
      tpu.vector_store %arg2[%c1_16, %c0_17], %24 {strides = array<i32>} : memref<2x128xf32, #tpu.memory_space<vmem>>, vector<1x128xf32>,
    } else {
    }
    return
  }
  func.func @transform_0(%arg0: i32) -> (i32, i32, i32) {
    %c0_i32 = arith.constant 0 : i32
    %c0_i32_0 = arith.constant 0 : i32
    %c0_i32_1 = arith.constant 0 : i32
    return %arg0, %c0_i32, %c0_i32_0 : i32, i32, i32
  }
  func.func @transform_1(%arg0: i32) -> (i32, i32) {
    %c0_i32 = arith.constant 0 : i32
    %c0_i32_0 = arith.constant 0 : i32
    %c0_i32_1 = arith.constant 0 : i32
    return %c0_i32, %c0_i32_0 : i32, i32
  }
}

module attributes {stable_mosaic.version = 11 : i64} {
  func.func @_bn_apply_kernel(%arg0: i32, %arg1: memref<8x128xbf16, #tpu.memory_space<vmem>>, %arg2: memref<2x128xf32, #tpu.memory_space<vmem>>, %arg3: memref<1x128xf32, #tpu.memory_space<vmem>>, %arg4: memref<1x128xf32, #tpu.memory_space<vmem>>, %arg5: memref<8x128xbf16, #tpu.memory_space<vmem>>) attributes {dimension_semantics = [#tpu.dimension_semantics<parallel>], iteration_bounds = array<i64: 3>, scalar_prefetch = 0 : i64, scratch_operands = 0 : i64, tpu.core_type = #tpu.core_type<tc>, window_params = [{transform_indices = @transform_0, window_bounds = array<i64: 8, 128>}, {pipeline_mode = #tpu.pipeline_mode<synchronous>, transform_indices = @transform_1, window_bounds = array<i64: 2, 128>}, {pipeline_mode = #tpu.pipeline_mode<synchronous>, transform_indices = @transform_2, window_bounds = array<i64: 1, 128>}, {pipeline_mode = #tpu.pipeline_mode<synchronous>, transform_indices = @transform_3, window_bounds = array<i64: 1, 128>}, {transform_indices = @transform_4, window_bounds = array<i64: 8, 128>}]} {
    %c0 = arith.constant 0 : index
    %c0_0 = arith.constant 0 : index
    %0 = vector.load %arg1[%c0, %c0_0] : memref<8x128xbf16, #tpu.memory_space<vmem>>, vector<8x128xbf16>
    %1 = arith.extf %0 : vector<8x128xbf16> to vector<8x128xf32>
    %c0_1 = arith.constant 0 : index
    %c0_2 = arith.constant 0 : index
    %2 = vector.load %arg2[%c0_1, %c0_2] : memref<2x128xf32, #tpu.memory_space<vmem>>, vector<1x128xf32>
    %3 = vector.broadcast %2 : vector<1x128xf32> to vector<8x128xf32>
    %4 = arith.subf %1, %3 : vector<8x128xf32>
    %c1 = arith.constant 1 : index
    %c0_3 = arith.constant 0 : index
    %5 = vector.load %arg2[%c1, %c0_3] : memref<2x128xf32, #tpu.memory_space<vmem>>, vector<1x128xf32>
    %c0_4 = arith.constant 0 : index
    %c0_5 = arith.constant 0 : index
    %6 = vector.load %arg3[%c0_4, %c0_5] : memref<1x128xf32, #tpu.memory_space<vmem>>, vector<1x128xf32>
    %7 = arith.mulf %5, %6 : vector<1x128xf32>
    %8 = vector.broadcast %7 : vector<1x128xf32> to vector<8x128xf32>
    %9 = arith.mulf %4, %8 : vector<8x128xf32>
    %c0_6 = arith.constant 0 : index
    %c0_7 = arith.constant 0 : index
    %10 = vector.load %arg4[%c0_6, %c0_7] : memref<1x128xf32, #tpu.memory_space<vmem>>, vector<1x128xf32>
    %11 = vector.broadcast %10 : vector<1x128xf32> to vector<8x128xf32>
    %12 = arith.addf %9, %11 : vector<8x128xf32>
    %cst = arith.constant 5.000000e-01 : f32
    %13 = vector.broadcast %cst : f32 to vector<8x128xf32>
    %14 = arith.mulf %13, %12 : vector<8x128xf32>
    %cst_8 = arith.constant 4.471500e-02 : f32
    %15 = vector.broadcast %cst_8 : f32 to vector<8x128xf32>
    %16 = arith.mulf %15, %12 : vector<8x128xf32>
    %17 = arith.mulf %16, %12 : vector<8x128xf32>
    %18 = arith.mulf %17, %12 : vector<8x128xf32>
    %19 = arith.addf %12, %18 : vector<8x128xf32>
    %cst_9 = arith.constant 0.797884583 : f32
    %20 = vector.broadcast %cst_9 : f32 to vector<8x128xf32>
    %21 = arith.mulf %20, %19 : vector<8x128xf32>
    %22 = math.tanh %21 : vector<8x128xf32>
    %cst_10 = arith.constant 1.000000e+00 : f32
    %23 = vector.broadcast %cst_10 : f32 to vector<8x128xf32>
    %24 = arith.addf %23, %22 : vector<8x128xf32>
    %25 = arith.mulf %14, %24 : vector<8x128xf32>
    %26 = arith.truncf %25 : vector<8x128xf32> to vector<8x128xbf16>
    %c0_11 = arith.constant 0 : index
    %c0_12 = arith.constant 0 : index
    %27 = vector.load %arg5[%c0_11, %c0_12] : memref<8x128xbf16, #tpu.memory_space<vmem>>, vector<8x128xbf16>
    tpu.vector_store %arg5[%c0_11, %c0_12], %26 {strides = array<i32>} : memref<8x128xbf16, #tpu.memory_space<vmem>>, vector<8x128xbf16>,
    return
  }
  func.func @transform_0(%arg0: i32) -> (i32, i32) {
    %c0_i32 = arith.constant 0 : i32
    %c0_i32_0 = arith.constant 0 : i32
    return %arg0, %c0_i32 : i32, i32
  }
  func.func @transform_1(%arg0: i32) -> (i32, i32) {
    %c0_i32 = arith.constant 0 : i32
    %c0_i32_0 = arith.constant 0 : i32
    %c0_i32_1 = arith.constant 0 : i32
    return %c0_i32, %c0_i32_0 : i32, i32
  }
  func.func @transform_2(%arg0: i32) -> (i32, i32) {
    %c0_i32 = arith.constant 0 : i32
    %c0_i32_0 = arith.constant 0 : i32
    %c0_i32_1 = arith.constant 0 : i32
    return %c0_i32, %c0_i32_0 : i32, i32
  }
  func.func @transform_3(%arg0: i32) -> (i32, i32) {
    %c0_i32 = arith.constant 0 : i32
    %c0_i32_0 = arith.constant 0 : i32
    %c0_i32_1 = arith.constant 0 : i32
    return %c0_i32, %c0_i32_0 : i32, i32
  }
  func.func @transform_4(%arg0: i32) -> (i32, i32) {
    %c0_i32 = arith.constant 0 : i32
    %c0_i32_0 = arith.constant 0 : i32
    return %arg0, %c0_i32 : i32, i32
  }
}

module attributes {stable_mosaic.version = 11 : i64} {
  func.func @_spatial_mean_kernel(%arg0: i32, %arg1: memref<1x4x128xf32, #tpu.memory_space<vmem>>, %arg2: memref<1x1x128xf32, #tpu.memory_space<vmem>>) attributes {dimension_semantics = [#tpu.dimension_semantics<parallel>], iteration_bounds = array<i64: 2>, scalar_prefetch = 0 : i64, scratch_operands = 0 : i64, tpu.core_type = #tpu.core_type<tc>, window_params = [{transform_indices = @transform_0, window_bounds = array<i64: 1, 4, 128>}, {transform_indices = @transform_1, window_bounds = array<i64: 1, 1, 128>}]} {
    %c0 = arith.constant 0 : index
    %c0_0 = arith.constant 0 : index
    %c0_1 = arith.constant 0 : index
    %0 = vector.load %arg1[%c0, %c0_0, %c0_1] : memref<1x4x128xf32, #tpu.memory_space<vmem>>, vector<1x4x128xf32>
    %cst = arith.constant dense<0.000000e+00> : vector<1x128xf32>
    %1 = vector.multi_reduction <add>, %0, %cst [1] : vector<1x4x128xf32> to vector<1x128xf32>
    %2 = vector.shape_cast %1 : vector<1x128xf32> to vector<1x1x128xf32>
    %cst_2 = arith.constant 4.000000e+00 : f32
    %3 = vector.broadcast %cst_2 : f32 to vector<1x1x128xf32>
    %4 = arith.divf %2, %3 : vector<1x1x128xf32>
    %c0_3 = arith.constant 0 : index
    %c0_4 = arith.constant 0 : index
    %c0_5 = arith.constant 0 : index
    %5 = vector.load %arg2[%c0_3, %c0_4, %c0_5] : memref<1x1x128xf32, #tpu.memory_space<vmem>>, vector<1x1x128xf32>
    tpu.vector_store %arg2[%c0_3, %c0_4, %c0_5], %4 {strides = array<i32>} : memref<1x1x128xf32, #tpu.memory_space<vmem>>, vector<1x1x128xf32>,
    return
  }
  func.func @transform_0(%arg0: i32) -> (i32, i32, i32) {
    %c0_i32 = arith.constant 0 : i32
    %c0_i32_0 = arith.constant 0 : i32
    %c0_i32_1 = arith.constant 0 : i32
    return %arg0, %c0_i32, %c0_i32_0 : i32, i32, i32
  }
  func.func @transform_1(%arg0: i32) -> (i32, i32, i32) {
    %c0_i32 = arith.constant 0 : i32
    %c0_i32_0 = arith.constant 0 : i32
    %c0_i32_1 = arith.constant 0 : i32
    return %arg0, %c0_i32, %c0_i32_0 : i32, i32, i32
  }
}

module attributes {stable_mosaic.version = 11 : i64} {
  func.func @_conv_gemm_kernel(%arg0: i32, %arg1: i32, %arg2: i32, %arg3: memref<8x128xbf16, #tpu.memory_space<vmem>>, %arg4: memref<128x128xbf16, #tpu.memory_space<vmem>>, %arg5: memref<1x128xf32, #tpu.memory_space<vmem>>, %arg6: memref<8x128xf32, #tpu.memory_space<vmem>>, %arg7: memref<8x128xf32, #tpu.memory_space<vmem>>) attributes {dimension_semantics = [#tpu.dimension_semantics<parallel>, #tpu.dimension_semantics<parallel>, #tpu.dimension_semantics<arbitrary>], iteration_bounds = array<i64: 1, 1, 1>, scalar_prefetch = 0 : i64, scratch_operands = 1 : i64, tpu.core_type = #tpu.core_type<tc>, window_params = [{transform_indices = @transform_0, window_bounds = array<i64: 8, 128>}, {transform_indices = @transform_1, window_bounds = array<i64: 128, 128>}, {transform_indices = @transform_2, window_bounds = array<i64: 1, 128>}, {transform_indices = @transform_3, window_bounds = array<i64: 8, 128>}]} {
    %c0_i32 = arith.constant 0 : i32
    %0 = arith.cmpi eq, %arg2, %c0_i32 : i32
    %1 = arith.extui %0 : i1 to i32
    %c0_i32_0 = arith.constant 0 : i32
    %2 = arith.cmpi ne, %1, %c0_i32_0 : i32
    scf.if %2 {
      %cst_10 = arith.constant 0.000000e+00 : f32
      %12 = vector.broadcast %cst_10 : f32 to vector<8x128xf32>
      %c0_11 = arith.constant 0 : index
      %c0_12 = arith.constant 0 : index
      %13 = vector.load %arg7[%c0_11, %c0_12] : memref<8x128xf32, #tpu.memory_space<vmem>>, vector<8x128xf32>
      tpu.vector_store %arg7[%c0_11, %c0_12], %12 {strides = array<i32>} : memref<8x128xf32, #tpu.memory_space<vmem>>, vector<8x128xf32>,
    } else {
    }
    %c0 = arith.constant 0 : index
    %c0_1 = arith.constant 0 : index
    %3 = vector.load %arg7[%c0, %c0_1] : memref<8x128xf32, #tpu.memory_space<vmem>>, vector<8x128xf32>
    %c0_2 = arith.constant 0 : index
    %c0_3 = arith.constant 0 : index
    %4 = vector.load %arg3[%c0_2, %c0_3] : memref<8x128xbf16, #tpu.memory_space<vmem>>, vector<8x128xbf16>
    %c0_4 = arith.constant 0 : index
    %c0_5 = arith.constant 0 : index
    %5 = vector.load %arg4[%c0_4, %c0_5] : memref<128x128xbf16, #tpu.memory_space<vmem>>, vector<128x128xbf16>
    %cst = arith.constant dense<0.000000e+00> : vector<8x128xf32>
    %6 = tpu.matmul %4, %5, %cst {dimension_numbers = #tpu.dot_dimension_numbers<[1], [0], [0], [1], [0, 0, 1, 1], [], []>} : vector<8x128xbf16>, vector<128x128xbf16>, vector<8x128xf32> -> vector<8x128xf32>
    %7 = arith.addf %3, %6 : vector<8x128xf32>
    %c0_6 = arith.constant 0 : index
    %c0_7 = arith.constant 0 : index
    %8 = vector.load %arg7[%c0_6, %c0_7] : memref<8x128xf32, #tpu.memory_space<vmem>>, vector<8x128xf32>
    tpu.vector_store %arg7[%c0_6, %c0_7], %7 {strides = array<i32>} : memref<8x128xf32, #tpu.memory_space<vmem>>, vector<8x128xf32>,
    %c0_i32_8 = arith.constant 0 : i32
    %9 = arith.cmpi eq, %arg2, %c0_i32_8 : i32
    %10 = arith.extui %9 : i1 to i32
    %c0_i32_9 = arith.constant 0 : i32
    %11 = arith.cmpi ne, %10, %c0_i32_9 : i32
    scf.if %11 {
      %c0_10 = arith.constant 0 : index
      %c0_11 = arith.constant 0 : index
      %12 = vector.load %arg7[%c0_10, %c0_11] : memref<8x128xf32, #tpu.memory_space<vmem>>, vector<8x128xf32>
      %c0_12 = arith.constant 0 : index
      %c0_13 = arith.constant 0 : index
      %13 = vector.load %arg5[%c0_12, %c0_13] : memref<1x128xf32, #tpu.memory_space<vmem>>, vector<1x128xf32>
      %14 = vector.broadcast %13 : vector<1x128xf32> to vector<8x128xf32>
      %15 = arith.addf %12, %14 : vector<8x128xf32>
      %c0_14 = arith.constant 0 : index
      %c0_15 = arith.constant 0 : index
      %16 = vector.load %arg6[%c0_14, %c0_15] : memref<8x128xf32, #tpu.memory_space<vmem>>, vector<8x128xf32>
      tpu.vector_store %arg6[%c0_14, %c0_15], %15 {strides = array<i32>} : memref<8x128xf32, #tpu.memory_space<vmem>>, vector<8x128xf32>,
    } else {
    }
    return
  }
  func.func @transform_0(%arg0: i32, %arg1: i32, %arg2: i32) -> (i32, i32) {
    %c0_i32 = arith.constant 0 : i32
    return %arg0, %arg2 : i32, i32
  }
  func.func @transform_1(%arg0: i32, %arg1: i32, %arg2: i32) -> (i32, i32) {
    %c0_i32 = arith.constant 0 : i32
    return %arg2, %arg1 : i32, i32
  }
  func.func @transform_2(%arg0: i32, %arg1: i32, %arg2: i32) -> (i32, i32) {
    %c0_i32 = arith.constant 0 : i32
    %c0_i32_0 = arith.constant 0 : i32
    return %c0_i32, %arg1 : i32, i32
  }
  func.func @transform_3(%arg0: i32, %arg1: i32, %arg2: i32) -> (i32, i32) {
    %c0_i32 = arith.constant 0 : i32
    return %arg0, %arg1 : i32, i32
  }
}

</mosaic_0001>

<llo_original>
// kernel: discriminator_forward.9
$region0: #{discriminator_forward.9}
  #allocation0 [shape = 'u32[]', space=smem, size = 0x4, offset = 0x4, fixed_abs, tag = 'smem constant byte address 0x4 - core index']
  #allocation1 [shape = 'u32[144,128]{1,0:T(1,128)}', space=vmem, size = 0x12000, scoped, tag = 'internal scratch']
  #allocation2 [shape = 'f32[64,128]{1,0:T(8,128)}', space=vmem, size = 0x8000, scoped, tag = 'scratch operand']
  %s0 = inlined_call_operand.vmem [shape: bf16[128,64], index: 0, kind: input, shape index: {}]
  %s1 = inlined_call_operand.vmem [shape: bf16[64,128], index: 1, kind: input, shape index: {}]
  %s2 = inlined_call_operand.vmem [shape: f32[1,128], index: 2, kind: input, shape index: {}]
  %s3 = inlined_call_operand.vmem [shape: bf16[128,128], index: 3, kind: output, shape index: {}]
  %s4 = sld [smem:[#allocation0]]
  $region53: #{discriminator_forward.9} parent=0
    _
  %s6 = ssub.s32 1, %s4
  %s7 = scalar_select 0, %s6, %s4
  loop: start=0, step=1, limit=4
  $region2: #{discriminator_forward.9} parent=0 // loop_pre_header
    _
  $region3: #{discriminator_forward.9} parent=0 // loop_header
    %s9 = sphi 0, %s13
    %p10 = scmp.ge.s32.totalorder %s9, 4
    %s16 = sphi 0, %s35
    %s17 = sphi 0, %s31
    %s18 = sphi 0, %s27
    %s19 = sphi 0, %s16
    %s20 = sphi 0, %s17
    %s21 = sphi 0, %s18
    %s22 = sphi 0, %s19
    %s23 = sphi 0, %s20
    %s24 = sphi 0, %s21
    %s40 = sphi 0, %s42
    %s43 = sphi 0, %s40
    %s44 = sphi 0, %s43
    %s60 = sphi 0, %s44
    %s68 = sphi 0, %s70
    %s71 = sphi 0, %s68
    %s72 = sphi 0, %s71
    %s88 = sphi 0, %s72
    %s94 = sphi 0, %s96
    %s97 = sphi 0, %s94
    %s98 = sphi 0, %s97
    %s114 = sphi 0, %s98
    %s122 = sphi 0, %s124
    %s125 = sphi 0, %s122
    %s126 = sphi 0, %s125
    %s142 = sphi 0, %s126
  $region4: #{discriminator_forward.9} parent=0 // loop_header_branch
    %12 = sbr.rel (%p10) target = $region8
  $region5: #{discriminator_forward.9} parent=0 // loop_body
    %s14 = ssub.s32 %s9, 1
    %s15 = ssub.s32 %s9, 2
    %s25 = sadd.s32 1, %s18
    %p26 = scmp.ge.s32.totalorder %s25, 1
    %s27 = scalar_select %p26, 0, %s25
    %s28 = sadd.s32 1, %s17
    %s29 = scalar_select %p26, %s28, %s17
    %p30 = scmp.ge.s32.totalorder %s29, 1
    %s31 = scalar_select %p30, 0, %s29
    %s32 = sadd.s32 1, %s16
    %s33 = scalar_select %p30, %s32, %s16
    %p34 = scmp.ge.s32.totalorder %s33, 2
    %s35 = scalar_select %p34, 0, %s33
    %s36 = ssub.s32 %s16, %s35
    %s37 = ssub.s32 %s18, %s27
    %s38 = sor.u32 %s36, %s37
    %p39 = scmp.eq.s32.totalorder %s38, 0
    %s41 = sadd.s32 %s40, 1
    %s42 = scalar_select %p39, %s40, %s41
    %p45 = pneg %p39
    %p46 = scmp.eq.s32.totalorder %s9, 1
    %p47 = por %p45, %p46
    %p48 = scmp.ne.s32.totalorder %s40, %s43
    %p49 = scmp.eq.s32.totalorder %s9, 0
    %p50 = por %p48, %p49
    %p51 = scmp.ne.s32.totalorder %s40, %s43
    %p52 = scmp.eq.s32.totalorder %s14, 1
    %p53 = por %p51, %p52
    %p54 = scmp.ne.s32.totalorder %s43, %s44
    %p55 = scmp.eq.s32.totalorder %s14, 0
    %p56 = por %p54, %p55
    %p57 = scmp.ne.s32.totalorder %s43, %s44
    %p58 = scmp.eq.s32.totalorder %s15, 1
    %p59 = por %p57, %p58
    %p61 = scmp.ne.s32.totalorder %s44, %s60
    %p62 = scmp.eq.s32.totalorder %s15, 0
    %p63 = por %p61, %p62
    %s64 = ssub.s32 %s18, %s27
    %s65 = ssub.s32 %s17, %s31
    %s66 = sor.u32 %s64, %s65
    %p67 = scmp.eq.s32.totalorder %s66, 0
    %s69 = sadd.s32 %s68, 1
    %s70 = scalar_select %p67, %s68, %s69
    %p73 = pneg %p67
    %p74 = scmp.eq.s32.totalorder %s9, 1
    %p75 = por %p73, %p74
    %p76 = scmp.ne.s32.totalorder %s68, %s71
    %p77 = scmp.eq.s32.totalorder %s9, 0
    %p78 = por %p76, %p77
    %p79 = scmp.ne.s32.totalorder %s68, %s71
    %p80 = scmp.eq.s32.totalorder %s14, 1
    %p81 = por %p79, %p80
    %p82 = scmp.ne.s32.totalorder %s71, %s72
    %p83 = scmp.eq.s32.totalorder %s14, 0
    %p84 = por %p82, %p83
    %p85 = scmp.ne.s32.totalorder %s71, %s72
    %p86 = scmp.eq.s32.totalorder %s15, 1
    %p87 = por %p85, %p86
    %p89 = scmp.ne.s32.totalorder %s72, %s88
    %p90 = scmp.eq.s32.totalorder %s15, 0
    %p91 = por %p89, %p90
    %s92 = ssub.s32 %s17, %s31
    %p93 = scmp.eq.s32.totalorder %s92, 0
    %s95 = sadd.s32 %s94, 1
    %s96 = scalar_select %p93, %s94, %s95
    %p99 = pneg %p93
    %p100 = scmp.eq.s32.totalorder %s9, 1
    %p101 = por %p99, %p100
    %p102 = scmp.ne.s32.totalorder %s94, %s97
    %p103 = scmp.eq.s32.totalorder %s9, 0
    %p104 = por %p102, %p103
    %p105 = scmp.ne.s32.totalorder %s94, %s97
    %p106 = scmp.eq.s32.totalorder %s14, 1
    %p107 = por %p105, %p106
    %p108 = scmp.ne.s32.totalorder %s97, %s98
    %p109 = scmp.eq.s32.totalorder %s14, 0
    %p110 = por %p108, %p109
    %p111 = scmp.ne.s32.totalorder %s97, %s98
    %p112 = scmp.eq.s32.totalorder %s15, 1
    %p113 = por %p111, %p112
    %p115 = scmp.ne.s32.totalorder %s98, %s114
    %p116 = scmp.eq.s32.totalorder %s15, 0
    %p117 = por %p115, %p116
    %s118 = ssub.s32 %s16, %s35
    %s119 = ssub.s32 %s17, %s31
    %s120 = sor.u32 %s118, %s119
    %p121 = scmp.eq.s32.totalorder %s120, 0
    %s123 = sadd.s32 %s122, 1
    %s124 = scalar_select %p121, %s122, %s123
    %p127 = pneg %p121
    %p128 = scmp.eq.s32.totalorder %s9, 1
    %p129 = por %p127, %p128
    %p130 = scmp.ne.s32.totalorder %s122, %s125
    %p131 = scmp.eq.s32.totalorder %s9, 0
    %p132 = por %p130, %p131
    %p133 = scmp.ne.s32.totalorder %s122, %s125
    %p134 = scmp.eq.s32.totalorder %s14, 1
    %p135 = por %p133, %p134
    %p136 = scmp.ne.s32.totalorder %s125, %s126
    %p137 = scmp.eq.s32.totalorder %s14, 0
    %p138 = por %p136, %p137
    %p139 = scmp.ne.s32.totalorder %s125, %s126
    %p140 = scmp.eq.s32.totalorder %s15, 1
    %p141 = por %p139, %p140
    %p143 = scmp.ne.s32.totalorder %s126, %s142
    %p144 = scmp.eq.s32.totalorder %s15, 0
    %p145 = por %p143, %p144
    %p146 = scmp.le.s32.totalorder 1, %s9
    %p147 = scmp.lt.s32.totalorder %s9, 3
    %p148 = pnand %p146, %p147
    %p149 = pneg %p148
    // Predicated region
    $region9: #{discriminator_forward.9} parent=5 // pred_check
      _
    $region10: #{discriminator_forward.9} parent=5 // pred_check_branch
      %151 = sbr.rel (%p148) target = $region12
    $region11: #{discriminator_forward.9} parent=5 // pred_region
      %s152 = ssub.s32 %s9, 1
      // Predicated region
      $region13: #{discriminator_forward.9} parent=11 // pred_check
        %p153 = pneg %p84
      $region14: #{discriminator_forward.9} parent=11 // pred_check_branch
        %155 = sbr.rel (%p153) target = $region16
      $region15: #{discriminator_forward.9} parent=11 // pred_region
        %s156 = smul.u32 8, %s21
        %p157 = scmp.lt.s32.totalorder %s156, 7
        %s158 = scalar_select %p157, %s156, 7
        %p159 = scmp.lt.s32.totalorder %s20, 0
        %s160 = scalar_select %p159, %s20, 0
        %s161 = sadd.s32 %s160, %s158
        %s162 = smul.addr %s161, 4
        %s163 = scalar_lea.vmem %s1, %s162
        %s164 = smul.u32 8, %s21
      $region16: #{discriminator_forward.9} parent=11 // pred_fallthru
        _
      // Predicated region
      $region17: #{discriminator_forward.9} parent=11 // pred_check
        %p165 = pneg %p110
      $region18: #{discriminator_forward.9} parent=11 // pred_check_branch
        %167 = sbr.rel (%p165) target = $region20
      $region19: #{discriminator_forward.9} parent=11 // pred_region
        %p168 = scmp.lt.s32.totalorder %s20, 0
        %s169 = scalar_select %p168, %s20, 0
        %s170 = scalar_lea.vmem %s2, %s169
      $region20: #{discriminator_forward.9} parent=11 // pred_fallthru
        _
    $region12: #{discriminator_forward.9} parent=5 // pred_fallthru
      _
    %p171 = scmp.lt.s32.totalorder %s9, 2
    // Predicated region
    $region21: #{discriminator_forward.9} parent=5 // pred_check
      %p172 = pneg %p171
    $region22: #{discriminator_forward.9} parent=5 // pred_check_branch
      %174 = sbr.rel (%p172) target = $region24
    $region23: #{discriminator_forward.9} parent=5 // pred_region
      // Predicated region
      $region25: #{discriminator_forward.9} parent=23 // pred_check
        %p175 = pneg %p50
      $region26: #{discriminator_forward.9} parent=23 // pred_check_branch
        %177 = sbr.rel (%p175) target = $region28
      $region27: #{discriminator_forward.9} parent=23 // pred_region
        %s178 = smul.u32 8, %s16
        %p179 = scmp.lt.s32.totalorder %s178, 15
        %s180 = scalar_select %p179, %s178, 15
        %p181 = scmp.lt.s32.totalorder %s18, 0
        %s182 = scalar_select %p181, %s18, 0
        %s183 = sadd.s32 %s182, %s180
        %s184 = smul.addr %s183, 4
        %s185 = scalar_lea.vmem %s0, %s184
        %s186 = smul.u32 8, %s16
      $region28: #{discriminator_forward.9} parent=23 // pred_fallthru
        _
    $region24: #{discriminator_forward.9} parent=5 // pred_fallthru
      _
    %p187 = scmp.le.s32.totalorder 1, %s9
    %p188 = scmp.lt.s32.totalorder %s9, 3
    %p189 = pnand %p187, %p188
    %p190 = pneg %p189
    // Predicated region
    $region29: #{discriminator_forward.9} parent=5 // pred_check
      _
    $region30: #{discriminator_forward.9} parent=5 // pred_check_branch
      %192 = sbr.rel (%p189) target = $region32
    $region31: #{discriminator_forward.9} parent=5 // pred_region
      %s193 = ssub.s32 %s9, 1
      %s194 = smul.u32 8, %s19
      %p195 = scmp.lt.s32.totalorder %s194, 15
      %s196 = scalar_select %p195, %s194, 15
      %p197 = scmp.lt.s32.totalorder %s21, 0
      %s198 = scalar_select %p197, %s21, 0
      %s199 = sadd.s32 %s198, %s196
      %s200 = smul.addr %s199, 4
      %s201 = scalar_lea.vmem %s0, %s200
      %p202 = pneg %p56
      %p203 = pneg %p53
      %s204 = smul.u32 8, %s21
      %p205 = scmp.lt.s32.totalorder %s204, 7
      %s206 = scalar_select %p205, %s204, 7
      %p207 = scmp.lt.s32.totalorder %s20, 0
      %s208 = scalar_select %p207, %s20, 0
      %s209 = sadd.s32 %s208, %s206
      %s210 = smul.addr %s209, 4
      %s211 = scalar_lea.vmem %s1, %s210
      %p212 = pneg %p84
      %p213 = pneg %p81
      %p214 = scmp.lt.s32.totalorder %s20, 0
      %s215 = scalar_select %p214, %s20, 0
      %s216 = scalar_lea.vmem %s2, %s215
      %p217 = pneg %p110
      %p218 = pneg %p107
      %p219 = pneg %p138
      %p220 = pneg %p135
      %s221 = smul.u32 8, %s19
      %p222 = scmp.lt.s32.totalorder %s221, 15
      %s223 = scalar_select %p222, %s221, 15
      %p224 = scmp.lt.s32.totalorder %s20, 0
      %s225 = scalar_select %p224, %s20, 0
      %s226 = sadd.s32 %s225, %s223
      %s227 = smul.addr %s226, 4
      %s228 = scalar_lea.vmem %s3, %s227
      %s229 = smul.u32 8, %s19
      %p230 = scmp.lt.s32.totalorder %s229, 15
      %s231 = scalar_select %p230, %s229, 15
      %p232 = scmp.lt.s32.totalorder %s21, 0
      %s233 = scalar_select %p232, %s21, 0
      %s234 = sadd.s32 %s233, %s231
      %s235 = smul.addr %s234, 4
      %s236 = scalar_lea.vmem %s0, %s235
      %s237 = smul.u32 8, %s19
      %s238 = smul.u32 8, %s21
      %p239 = scmp.lt.s32.totalorder %s238, 7
      %s240 = scalar_select %p239, %s238, 7
      %p241 = scmp.lt.s32.totalorder %s20, 0
      %s242 = scalar_select %p241, %s20, 0
      %s243 = sadd.s32 %s242, %s240
      %s244 = smul.addr %s243, 4
      %s245 = scalar_lea.vmem %s1, %s244
      %s246 = smul.u32 8, %s21
      %p247 = scmp.lt.s32.totalorder %s20, 0
      %s248 = scalar_select %p247, %s20, 0
      %s249 = scalar_lea.vmem %s2, %s248
      %s250 = smul.u32 8, %s19
      %p251 = scmp.lt.s32.totalorder %s250, 15
      %s252 = scalar_select %p251, %s250, 15
      %p253 = scmp.lt.s32.totalorder %s20, 0
      %s254 = scalar_select %p253, %s20, 0
      %s255 = sadd.s32 %s254, %s252
      %s256 = smul.addr %s255, 4
      %s257 = scalar_lea.vmem %s3, %s256
      %s258 = smul.u32 8, %s19
      %p260 = scmp.eq.s32.totalorder %s21, 0
      // Predicated region
      $region33: #{discriminator_forward.9} parent=31 // pred_check
        %p261 = pneg %p260
      $region34: #{discriminator_forward.9} parent=31 // pred_check_branch
        %263 = sbr.rel (%p261) target = $region36
      $region35: #{discriminator_forward.9} parent=31 // pred_region
        %264 = vst [vmem:[#allocation2] sm:$0xff] 0.0
        %265 = vst [vmem:[#allocation2 + $0x8] sm:$0xff] 0.0
        %266 = vst [vmem:[#allocation2 + $0x10] sm:$0xff] 0.0
        %267 = vst [vmem:[#allocation2 + $0x18] sm:$0xff] 0.0
        %268 = vst [vmem:[#allocation2 + $0x20] sm:$0xff] 0.0
        %269 = vst [vmem:[#allocation2 + $0x28] sm:$0xff] 0.0
        %270 = vst [vmem:[#allocation2 + $0x30] sm:$0xff] 0.0
        %271 = vst [vmem:[#allocation2 + $0x38] sm:$0xff] 0.0
      $region36: #{discriminator_forward.9} parent=31 // pred_fallthru
        _
      %v272 = vld [vmem:[#allocation2] sm:$0xff]
      %v273 = vld [vmem:[#allocation2 + $0x8] sm:$0xff]
      %v274 = vld [vmem:[#allocation2 + $0x10] sm:$0xff]
      %v275 = vld [vmem:[#allocation2 + $0x18] sm:$0xff]
      %v276 = vld [vmem:[#allocation2 + $0x20] sm:$0xff]
      %v277 = vld [vmem:[#allocation2 + $0x28] sm:$0xff]
      %v278 = vld [vmem:[#allocation2 + $0x30] sm:$0xff]
      %v279 = vld [vmem:[#allocation2 + $0x38] sm:$0xff]
      %v280 = vld [vmem:[%s236] sm:$0xf]
      %v281 = vld [vmem:[%s236 + $0x4] sm:$0xf]
      %v282 = vld [vmem:[%s236 + $0x8] sm:$0xf]
      %v283 = vld [vmem:[%s236 + $0xc] sm:$0xf]
      %v284 = vld [vmem:[%s236 + $0x10] sm:$0xf]
      %v285 = vld [vmem:[%s236 + $0x14] sm:$0xf]
      %v286 = vld [vmem:[%s236 + $0x18] sm:$0xf]
      %v287 = vld [vmem:[%s236 + $0x1c] sm:$0xf]
      %v288 = vld [vmem:[%s245] sm:$0xf]
      %v289 = vld [vmem:[%s245 + $0x4] sm:$0xf]
      %v290 = vld [vmem:[%s245 + $0x8] sm:$0xf]
      %v291 = vld [vmem:[%s245 + $0xc] sm:$0xf]
      %v292 = vld [vmem:[%s245 + $0x10] sm:$0xf]
      %v293 = vld [vmem:[%s245 + $0x14] sm:$0xf]
      %v294 = vld [vmem:[%s245 + $0x18] sm:$0xf]
      %v295 = vld [vmem:[%s245 + $0x1c] sm:$0xf]
      %v304 = vunpack.c.l.b16 %v280
      %v305 = vunpack.c.l.b16 %v281
      %v306 = vunpack.c.l.b16 %v282
      %v307 = vunpack.c.l.b16 %v283
      %v308 = vunpack.c.l.b16 %v284
      %v309 = vunpack.c.l.b16 %v285
      %v310 = vunpack.c.l.b16 %v286
      %v311 = vunpack.c.l.b16 %v287
      %v312 = vpack.c.b16 %v305, %v304
      %v313 = vpack.c.b16 %v307, %v306
      %v314 = vpack.c.b16 %v309, %v308
      %v315 = vpack.c.b16 %v311, %v310
      %v324 = vunpack.c.l.b16 %v288
      %v325 = vunpack.c.l.b16 %v289
      %v326 = vunpack.c.l.b16 %v290
      %v327 = vunpack.c.l.b16 %v291
      %v328 = vunpack.c.l.b16 %v292
      %v329 = vunpack.c.l.b16 %v293
      %v330 = vunpack.c.l.b16 %v294
      %v331 = vunpack.c.l.b16 %v295
      %v332 = vpack.c.b16 %v325, %v324
      %v333 = vpack.c.b16 %v327, %v326
      %v334 = vpack.c.b16 %v329, %v328
      %v335 = vpack.c.b16 %v331, %v330
      %vm340 = vcmask 523264
      %v342 = vsel %vm340, %v312, 0
      %v345 = vsel %vm340, %v313, 0
      %v348 = vsel %vm340, %v314, 0
      %v351 = vsel %vm340, %v315, 0
      %353 = vmatprep.subr.bf16.mxu0 0
      %354 = vmatpush1.bf16.msra.mxu0 %v332
      %355 = vmatprep.subr.bf16.mxu0 0
      %356 = vmatpush1.bf16.msra.mxu0 %v333
      %357 = vmatprep.subr.bf16.mxu0 0
      %358 = vmatpush1.bf16.msra.mxu0 %v334
      %359 = vmatprep.subr.bf16.mxu0 0
      %360 = vmatpush1.bf16.msra.mxu0 %v335
      %361 = vmatprep.subr.bf16.mxu0 0
      %362 = vmatpush1.bf16.msra.mxu0 0
      %363 = vmatprep.subr.bf16.mxu0 0
      %364 = vmatpush1.bf16.msra.mxu0 0
      %365 = vmatprep.subr.bf16.mxu0 0
      %366 = vmatpush1.bf16.msra.mxu0 0
      %367 = vmatprep.subr.bf16.mxu0 0
      %368 = vmatpush1.bf16.msra.mxu0 0
      %369 = vmatprep.subr.bf16.mxu0 0
      %370 = vmatpush1.bf16.msra.mxu0 0
      %371 = vmatprep.subr.bf16.mxu0 0
      %372 = vmatpush1.bf16.msra.mxu0 0
      %373 = vmatprep.subr.bf16.mxu0 0
      %374 = vmatpush1.bf16.msra.mxu0 0
      %375 = vmatprep.subr.bf16.mxu0 0
      %376 = vmatpush1.bf16.msra.mxu0 0
      %377 = vmatprep.subr.bf16.mxu0 0
      %378 = vmatpush1.bf16.msra.mxu0 0
      %379 = vmatprep.subr.bf16.mxu0 0
      %380 = vmatpush1.bf16.msra.mxu0 0
      %381 = vmatprep.subr.bf16.mxu0 0
      %382 = vmatpush1.bf16.msra.mxu0 0
      %383 = vmatprep.subr.bf16.mxu0 0
      %384 = vmatpush1.bf16.msra.mxu0 0
      %385 = vmatprep.mubr.bf16.mxu0 0
      %386 = vmatmul.mubr.bf16.gmra.mrb[0].mxu0 %v342
      %v387 = vpop.f32.mrb[0].mxu0
      %v388 = vadd.f32 0.0, %v387
      %v389 = vpop.f32.mrb[0].mxu0
      %v390 = vpop.f32.mrb[0].mxu0
      %v391 = vadd.f32 0.0, %v390
      %v392 = vpop.f32.mrb[0].mxu0
      %393 = vmatprep.mubr.bf16.mxu0 0
      %394 = vmatmul.mubr.bf16.gmra.mrb[0].mxu0 %v345
      %v395 = vpop.f32.mrb[0].mxu0
      %v396 = vadd.f32 0.0, %v395
      %v397 = vpop.f32.mrb[0].mxu0
      %v398 = vpop.f32.mrb[0].mxu0
      %v399 = vadd.f32 0.0, %v398
      %v400 = vpop.f32.mrb[0].mxu0
      %401 = vmatprep.mubr.bf16.mxu0 0
      %402 = vmatmul.mubr.bf16.gmra.mrb[0].mxu0 %v348
      %v403 = vpop.f32.mrb[0].mxu0
      %v404 = vadd.f32 0.0, %v403
      %v405 = vpop.f32.mrb[0].mxu0
      %v406 = vpop.f32.mrb[0].mxu0
      %v407 = vadd.f32 0.0, %v406
      %v408 = vpop.f32.mrb[0].mxu0
      %409 = vmatprep.mubr.bf16.mxu0 0
      %410 = vmatmul.mubr.bf16.gmra.mrb[0].mxu0 %v351
      %v411 = vpop.f32.mrb[0].mxu0
      %v412 = vadd.f32 0.0, %v411
      %v413 = vpop.f32.mrb[0].mxu0
      %v414 = vpop.f32.mrb[0].mxu0
      %v415 = vadd.f32 0.0, %v414
      %v416 = vpop.f32.mrb[0].mxu0
      %417 = vdwg.mxu0
      %v418 = vadd.f32 %v272, %v388
      %v419 = vadd.f32 %v273, %v391
      %v420 = vadd.f32 %v274, %v396
      %v421 = vadd.f32 %v275, %v399
      %v422 = vadd.f32 %v276, %v404
      %v423 = vadd.f32 %v277, %v407
      %v424 = vadd.f32 %v278, %v412
      %v425 = vadd.f32 %v279, %v415
      %426 = vst [vmem:[#allocation2] sm:$0xff] %v418
      %427 = vst [vmem:[#allocation2 + $0x8] sm:$0xff] %v419
      %428 = vst [vmem:[#allocation2 + $0x10] sm:$0xff] %v420
      %429 = vst [vmem:[#allocation2 + $0x18] sm:$0xff] %v421
      %430 = vst [vmem:[#allocation2 + $0x20] sm:$0xff] %v422
      %431 = vst [vmem:[#allocation2 + $0x28] sm:$0xff] %v423
      %432 = vst [vmem:[#allocation2 + $0x30] sm:$0xff] %v424
      %433 = vst [vmem:[#allocation2 + $0x38] sm:$0xff] %v425
      // Predicated region
      $region37: #{discriminator_forward.9} parent=31 // pred_check
        %p434 = pneg %p260
      $region38: #{discriminator_forward.9} parent=31 // pred_check_branch
        %436 = sbr.rel (%p434) target = $region40
      $region39: #{discriminator_forward.9} parent=31 // pred_region
        %v437 = vld [vmem:[#allocation2] sm:$0xff]
        %v438 = vld [vmem:[#allocation2 + $0x8] sm:$0xff]
        %v439 = vld [vmem:[#allocation2 + $0x10] sm:$0xff]
        %v440 = vld [vmem:[#allocation2 + $0x18] sm:$0xff]
        %v441 = vld [vmem:[#allocation2 + $0x20] sm:$0xff]
        %v442 = vld [vmem:[#allocation2 + $0x28] sm:$0xff]
        %v443 = vld [vmem:[#allocation2 + $0x30] sm:$0xff]
        %v444 = vld [vmem:[#allocation2 + $0x38] sm:$0xff]
        %v445 = vld [vmem:[%s249] sm:$0x1]
        %v447 = vlaneseq
        %v448 = vshrl.u32 %v447, 7
        %v449 = vsub.s32 0, %v448
        %v450 = vrot.slane %v445, %v449
        %v452 = vadd.f32 %v437, %v450
        %v453 = vadd.f32 %v438, %v450
        %v454 = vadd.f32 %v439, %v450
        %v455 = vadd.f32 %v440, %v450
        %v456 = vadd.f32 %v441, %v450
        %v457 = vadd.f32 %v442, %v450
        %v458 = vadd.f32 %v443, %v450
        %v459 = vadd.f32 %v444, %v450
        %v460 = vmul.f32 %v452, 0.5
        %v461 = vmul.f32 %v453, 0.5
        %v462 = vmul.f32 %v454, 0.5
        %v463 = vmul.f32 %v455, 0.5
        %v464 = vmul.f32 %v456, 0.5
        %v465 = vmul.f32 %v457, 0.5
        %v466 = vmul.f32 %v458, 0.5
        %v467 = vmul.f32 %v459, 0.5
        %v468 = vmul.f32 %v452, 0.044715
        %v469 = vmul.f32 %v453, 0.044715
        %v470 = vmul.f32 %v454, 0.044715
        %v471 = vmul.f32 %v455, 0.044715
        %v472 = vmul.f32 %v456, 0.044715
        %v473 = vmul.f32 %v457, 0.044715
        %v474 = vmul.f32 %v458, 0.044715
        %v475 = vmul.f32 %v459, 0.044715
        %v476 = vmul.f32 %v468, %v452
        %v477 = vmul.f32 %v469, %v453
        %v478 = vmul.f32 %v470, %v454
        %v479 = vmul.f32 %v471, %v455
        %v480 = vmul.f32 %v472, %v456
        %v481 = vmul.f32 %v473, %v457
        %v482 = vmul.f32 %v474, %v458
        %v483 = vmul.f32 %v475, %v459
        %v484 = vmul.f32 %v476, %v452
        %v485 = vmul.f32 %v477, %v453
        %v486 = vmul.f32 %v478, %v454
        %v487 = vmul.f32 %v479, %v455
        %v488 = vmul.f32 %v480, %v456
        %v489 = vmul.f32 %v481, %v457
        %v490 = vmul.f32 %v482, %v458
        %v491 = vmul.f32 %v483, %v459
        %v492 = vadd.f32 %v452, %v484
        %v493 = vadd.f32 %v453, %v485
        %v494 = vadd.f32 %v454, %v486
        %v495 = vadd.f32 %v455, %v487
        %v496 = vadd.f32 %v456, %v488
        %v497 = vadd.f32 %v457, %v489
        %v498 = vadd.f32 %v458, %v490
        %v499 = vadd.f32 %v459, %v491
        %v500 = vmul.f32 %v492, 0.7978846
        %v501 = vmul.f32 %v493, 0.7978846
        %v502 = vmul.f32 %v494, 0.7978846
        %v503 = vmul.f32 %v495, 0.7978846
        %v504 = vmul.f32 %v496, 0.7978846
        %v505 = vmul.f32 %v497, 0.7978846
        %v506 = vmul.f32 %v498, 0.7978846
        %v507 = vmul.f32 %v499, 0.7978846
        %v508 = vtanh.pop %v500
        %v509 = vtanh.pop %v501
        %v510 = vtanh.pop %v502
        %v511 = vtanh.pop %v503
        %v512 = vtanh.pop %v504
        %v513 = vtanh.pop %v505
        %v514 = vtanh.pop %v506
        %v515 = vtanh.pop %v507
        %v516 = vadd.f32 %v508, 1.0
        %v517 = vadd.f32 %v509, 1.0
        %v518 = vadd.f32 %v510, 1.0
        %v519 = vadd.f32 %v511, 1.0
        %v520 = vadd.f32 %v512, 1.0
        %v521 = vadd.f32 %v513, 1.0
        %v522 = vadd.f32 %v514, 1.0
        %v523 = vadd.f32 %v515, 1.0
        %v524 = vmul.f32 %v460, %v516
        %v525 = vmul.f32 %v461, %v517
        %v526 = vmul.f32 %v462, %v518
        %v527 = vmul.f32 %v463, %v519
        %v528 = vmul.f32 %v464, %v520
        %v529 = vmul.f32 %v465, %v521
        %v530 = vmul.f32 %v466, %v522
        %v531 = vmul.f32 %v467, %v523
        %v532 = vpack.c.bf16 %v525, %v524
        %v533 = vpack.c.bf16 %v527, %v526
        %v534 = vpack.c.bf16 %v529, %v528
        %v535 = vpack.c.bf16 %v531, %v530
        %v540 = vunpack.c.l.b16 %v532
        %v541 = vunpack.c.h.b16 %v532
        %v542 = vunpack.c.l.b16 %v533
        %v543 = vunpack.c.h.b16 %v533
        %v544 = vunpack.c.l.b16 %v534
        %v545 = vunpack.c.h.b16 %v534
        %v546 = vunpack.c.l.b16 %v535
        %v547 = vunpack.c.h.b16 %v535
        %v548 = vpack.c.b16 %v540, %v540
        %v549 = vpack.c.b16 %v541, %v541
        %v550 = vpack.c.b16 %v542, %v542
        %v551 = vpack.c.b16 %v543, %v543
        %v552 = vpack.c.b16 %v544, %v544
        %v553 = vpack.c.b16 %v545, %v545
        %v554 = vpack.c.b16 %v546, %v546
        %v555 = vpack.c.b16 %v547, %v547
        %564 = vst [vmem:[%s257] sm:$0xf] %v548
        %565 = vst [vmem:[%s257 + $0x4] sm:$0xf] %v549
        %566 = vst [vmem:[%s257 + $0x8] sm:$0xf] %v550
        %567 = vst [vmem:[%s257 + $0xc] sm:$0xf] %v551
        %568 = vst [vmem:[%s257 + $0x10] sm:$0xf] %v552
        %569 = vst [vmem:[%s257 + $0x14] sm:$0xf] %v553
        %570 = vst [vmem:[%s257 + $0x18] sm:$0xf] %v554
        %571 = vst [vmem:[%s257 + $0x1c] sm:$0xf] %v555
      $region40: #{discriminator_forward.9} parent=31 // pred_fallthru
        _
      %s572 = smul.u32 8, %s19
      %p573 = scmp.lt.s32.totalorder %s572, 15
      %s574 = scalar_select %p573, %s572, 15
      %p575 = scmp.lt.s32.totalorder %s20, 0
      %s576 = scalar_select %p575, %s20, 0
      %s577 = sadd.s32 %s576, %s574
      %s578 = smul.addr %s577, 4
      %s579 = scalar_lea.vmem %s3, %s578
      // Predicated region
      $region41: #{discriminator_forward.9} parent=31 // pred_check
        %p580 = pneg %p135
      $region42: #{discriminator_forward.9} parent=31 // pred_check_branch
        %582 = sbr.rel (%p580) target = $region44
      $region43: #{discriminator_forward.9} parent=31 // pred_region
        %s583 = smul.u32 8, %s19
      $region44: #{discriminator_forward.9} parent=31 // pred_fallthru
        _
    $region32: #{discriminator_forward.9} parent=5 // pred_fallthru
      _
    %p584 = scmp.le.s32.totalorder 2, %s9
    // Predicated region
    $region45: #{discriminator_forward.9} parent=5 // pred_check
      %p585 = pneg %p584
    $region46: #{discriminator_forward.9} parent=5 // pred_check_branch
      %587 = sbr.rel (%p585) target = $region48
    $region47: #{discriminator_forward.9} parent=5 // pred_region
      %s588 = ssub.s32 %s9, 2
      // Predicated region
      $region49: #{discriminator_forward.9} parent=47 // pred_check
        %p589 = pneg %p141
      $region50: #{discriminator_forward.9} parent=47 // pred_check_branch
        %591 = sbr.rel (%p589) target = $region52
      $region51: #{discriminator_forward.9} parent=47 // pred_region
        %s592 = smul.u32 8, %s22
        %p593 = scmp.lt.s32.totalorder %s592, 15
        %s594 = scalar_select %p593, %s592, 15
        %p595 = scmp.lt.s32.totalorder %s23, 0
        %s596 = scalar_select %p595, %s23, 0
        %s597 = sadd.s32 %s596, %s594
        %s598 = smul.addr %s597, 4
        %s599 = scalar_lea.vmem %s3, %s598
      $region52: #{discriminator_forward.9} parent=47 // pred_fallthru
        _
    $region48: #{discriminator_forward.9} parent=5 // pred_fallthru
      _
  $region6: #{discriminator_forward.9} parent=0 // loop_footer
    %s13 = sadd.s32 1, %s9
  $region7: #{discriminator_forward.9} parent=0 // loop_footer_branch
    %8 = sbr.rel target = $region3
  $region8: #{discriminator_forward.9} parent=0 // loop_exit
    _

// kernel: discriminator_forward.11
$region0: #{discriminator_forward.11}
  #allocation0 [shape = 'u32[]', space=smem, size = 0x4, offset = 0x4, fixed_abs, tag = 'smem constant byte address 0x4 - core index']
  #allocation1 [shape = 'u32[144,128]{1,0:T(1,128)}', space=vmem, size = 0x12000, scoped, tag = 'internal scratch']
  %s0 = inlined_call_operand.vmem [shape: f32[2,2,128], index: 0, kind: input, shape index: {}]
  %s1 = inlined_call_operand.vmem [shape: f32[2,128], index: 1, kind: output, shape index: {}]
  %s2 = sld [smem:[#allocation0]]
  $region45: #{discriminator_forward.11} parent=0
    _
  %s4 = ssub.s32 1, %s2
  %s5 = scalar_select 0, %s4, %s2
  loop: start=0, step=1, limit=4
  $region2: #{discriminator_forward.11} parent=0 // loop_pre_header
    _
  $region3: #{discriminator_forward.11} parent=0 // loop_header
    %s7 = sphi 0, %s11
    %p8 = scmp.ge.s32.totalorder %s7, 4
    %s17 = sphi 0, %s19
    %s20 = sphi 0, %s17
    %s21 = sphi 0, %s20
    %s37 = sphi 0, %s21
    %s41 = sphi 0, %s41
    %s43 = sphi 0, %s41
    %s44 = sphi 0, %s43
    %s58 = sphi 0, %s44
  $region4: #{discriminator_forward.11} parent=0 // loop_header_branch
    %10 = sbr.rel (%p8) target = $region8
  $region5: #{discriminator_forward.11} parent=0 // loop_body
    %s12 = ssub.s32 %s7, 1
    %s13 = ssub.s32 %s7, 2
    %s14 = sadd.s32 %s7, 1
    %s15 = ssub.s32 %s7, %s14
    %p16 = scmp.eq.s32.totalorder %s15, 0
    %s18 = sadd.s32 %s17, 1
    %s19 = scalar_select %p16, %s17, %s18
    %p22 = pneg %p16
    %p23 = scmp.eq.s32.totalorder %s7, 1
    %p24 = por %p22, %p23
    %p25 = scmp.ne.s32.totalorder %s17, %s20
    %p26 = scmp.eq.s32.totalorder %s7, 0
    %p27 = por %p25, %p26
    %p28 = scmp.ne.s32.totalorder %s17, %s20
    %p29 = scmp.eq.s32.totalorder %s12, 1
    %p30 = por %p28, %p29
    %p31 = scmp.ne.s32.totalorder %s20, %s21
    %p32 = scmp.eq.s32.totalorder %s12, 0
    %p33 = por %p31, %p32
    %p34 = scmp.ne.s32.totalorder %s20, %s21
    %p35 = scmp.eq.s32.totalorder %s13, 1
    %p36 = por %p34, %p35
    %p38 = scmp.ne.s32.totalorder %s21, %s37
    %p39 = scmp.eq.s32.totalorder %s13, 0
    %p40 = por %p38, %p39
    %s42 = sadd.s32 %s41, 1
    %p45 = scmp.eq.s32.totalorder %s7, 1
    %p46 = scmp.ne.s32.totalorder %s41, %s43
    %p47 = scmp.eq.s32.totalorder %s7, 0
    %p48 = por %p46, %p47
    %p49 = scmp.ne.s32.totalorder %s41, %s43
    %p50 = scmp.eq.s32.totalorder %s12, 1
    %p51 = por %p49, %p50
    %p52 = scmp.ne.s32.totalorder %s43, %s44
    %p53 = scmp.eq.s32.totalorder %s12, 0
    %p54 = por %p52, %p53
    %p55 = scmp.ne.s32.totalorder %s43, %s44
    %p56 = scmp.eq.s32.totalorder %s13, 1
    %p57 = por %p55, %p56
    %p59 = scmp.ne.s32.totalorder %s44, %s58
    %p60 = scmp.eq.s32.totalorder %s13, 0
    %p61 = por %p59, %p60
    %p62 = scmp.le.s32.totalorder 1, %s7
    %p63 = scmp.lt.s32.totalorder %s7, 3
    %p64 = pnand %p62, %p63
    %p65 = pneg %p64
    // Predicated region
    $region9: #{discriminator_forward.11} parent=5 // pred_check
      _
    $region10: #{discriminator_forward.11} parent=5 // pred_check_branch
      %67 = sbr.rel (%p64) target = $region12
    $region11: #{discriminator_forward.11} parent=5 // pred_region
      %s68 = ssub.s32 %s7, 1
    $region12: #{discriminator_forward.11} parent=5 // pred_fallthru
      _
    %p69 = scmp.lt.s32.totalorder %s7, 2
    // Predicated region
    $region13: #{discriminator_forward.11} parent=5 // pred_check
      %p70 = pneg %p69
    $region14: #{discriminator_forward.11} parent=5 // pred_check_branch
      %72 = sbr.rel (%p70) target = $region16
    $region15: #{discriminator_forward.11} parent=5 // pred_region
      // Predicated region
      $region17: #{discriminator_forward.11} parent=15 // pred_check
        %p73 = pneg %p27
      $region18: #{discriminator_forward.11} parent=15 // pred_check_branch
        %75 = sbr.rel (%p73) target = $region20
      $region19: #{discriminator_forward.11} parent=15 // pred_region
        %p76 = scmp.lt.s32.totalorder %s7, 1
        %s77 = scalar_select %p76, %s7, 1
        %s78 = smul.addr %s77, 2
        %s79 = scalar_lea.vmem %s0, %s78
      $region20: #{discriminator_forward.11} parent=15 // pred_fallthru
        _
    $region16: #{discriminator_forward.11} parent=5 // pred_fallthru
      _
    %p80 = scmp.le.s32.totalorder 1, %s7
    %p81 = scmp.lt.s32.totalorder %s7, 3
    %p82 = pnand %p80, %p81
    %p83 = pneg %p82
    // Predicated region
    $region21: #{discriminator_forward.11} parent=5 // pred_check
      _
    $region22: #{discriminator_forward.11} parent=5 // pred_check_branch
      %85 = sbr.rel (%p82) target = $region24
    $region23: #{discriminator_forward.11} parent=5 // pred_region
      %s86 = ssub.s32 %s7, 1
      %p87 = scmp.lt.s32.totalorder %s12, 1
      %s88 = scalar_select %p87, %s12, 1
      %s89 = smul.addr %s88, 2
      %s90 = scalar_lea.vmem %s0, %s89
      %p91 = pneg %p33
      %p92 = pneg %p30
      %p93 = pneg %p54
      %p94 = pneg %p51
      %p95 = scmp.lt.s32.totalorder %s12, 1
      %s96 = scalar_select %p95, %s12, 1
      %s97 = smul.addr %s96, 2
      %s98 = scalar_lea.vmem %s0, %s97
      %p99 = scmp.eq.s32.totalorder %s12, 0
      // Predicated region
      $region25: #{discriminator_forward.11} parent=23 // pred_check
        %p100 = pneg %p99
      $region26: #{discriminator_forward.11} parent=23 // pred_check_branch
        %102 = sbr.rel (%p100) target = $region28
      $region27: #{discriminator_forward.11} parent=23 // pred_region
        %103 = vst [vmem:[%s1] sm:$0x3] 0.0
      $region28: #{discriminator_forward.11} parent=23 // pred_fallthru
        _
      %v104 = vld [vmem:[%s1] sm:$0x3]
      %v105 = vld [vmem:[%s98] sm:$0x3]
      %v106 = vadd.f32 %v104, %v105
      %107 = vst [vmem:[%s1] sm:$0x3] %v106
      %p108 = scmp.eq.s32.totalorder %s12, 1
      // Predicated region
      $region29: #{discriminator_forward.11} parent=23 // pred_check
        %p109 = pneg %p108
      $region30: #{discriminator_forward.11} parent=23 // pred_check_branch
        %111 = sbr.rel (%p109) target = $region32
      $region31: #{discriminator_forward.11} parent=23 // pred_region
        %v112 = vld [vmem:[%s1] sm:$0x1]
        %v113 = vmul.f32 %v112, 0.03125
        %v114 = vld [vmem:[%s1 + $0x1] sm:$0x1]
        %v115 = vmul.f32 %v114, 0.03125
        %v116 = vmul.f32 %v113, %v113
        %v117 = vsub.f32 %v115, %v116
        %v118 = vmax.f32 %v117, 0.0
        %119 = vst [vmem:[%s1] sm:$0x1] %v113
        %v120 = vadd.f32 %v118, 1e-05
        %v121 = vrsqrt.pop %v120
        %122 = vst [vmem:[%s1 + $0x1] sm:$0x1] %v121
      $region32: #{discriminator_forward.11} parent=23 // pred_fallthru
        _
      // Predicated region
      $region33: #{discriminator_forward.11} parent=23 // pred_check
        %p123 = pneg %p51
      $region34: #{discriminator_forward.11} parent=23 // pred_check_branch
        %125 = sbr.rel (%p123) target = $region36
      $region35: #{discriminator_forward.11} parent=23 // pred_region
        _
      $region36: #{discriminator_forward.11} parent=23 // pred_fallthru
        _
      // Predicated region
      $region37: #{discriminator_forward.11} parent=23 // pred_check
        %p126 = pneg %p51
      $region38: #{discriminator_forward.11} parent=23 // pred_check_branch
        %128 = sbr.rel (%p126) target = $region40
      $region39: #{discriminator_forward.11} parent=23 // pred_region
        _
      $region40: #{discriminator_forward.11} parent=23 // pred_fallthru
        _
    $region24: #{discriminator_forward.11} parent=5 // pred_fallthru
      _
    %p129 = scmp.le.s32.totalorder 2, %s7
    // Predicated region
    $region41: #{discriminator_forward.11} parent=5 // pred_check
      %p130 = pneg %p129
    $region42: #{discriminator_forward.11} parent=5 // pred_check_branch
      %132 = sbr.rel (%p130) target = $region44
    $region43: #{discriminator_forward.11} parent=5 // pred_region
      %s133 = ssub.s32 %s7, 2
    $region44: #{discriminator_forward.11} parent=5 // pred_fallthru
      _
  $region6: #{discriminator_forward.11} parent=0 // loop_footer
    %s11 = sadd.s32 1, %s7
  $region7: #{discriminator_forward.11} parent=0 // loop_footer_branch
    %6 = sbr.rel target = $region3
  $region8: #{discriminator_forward.11} parent=0 // loop_exit
    _

// kernel: discriminator_forward.10
$region0: #{discriminator_forward.10}
  #allocation0 [shape = 'u32[]', space=smem, size = 0x4, offset = 0x4, fixed_abs, tag = 'smem constant byte address 0x4 - core index']
  #allocation1 [shape = 'u32[144,128]{1,0:T(1,128)}', space=vmem, size = 0x12000, scoped, tag = 'internal scratch']
  #allocation2 [shape = 'f32[16,128]{1,0:T(8,128)}', space=vmem, size = 0x2000, scoped, tag = 'scratch operand']
  %s0 = inlined_call_operand.vmem [shape: bf16[32,128], index: 0, kind: input, shape index: {}]
  %s1 = inlined_call_operand.vmem [shape: bf16[128,128], index: 1, kind: input, shape index: {}]
  %s2 = inlined_call_operand.vmem [shape: f32[1,128], index: 2, kind: input, shape index: {}]
  %s3 = inlined_call_operand.vmem [shape: bf16[32,128], index: 3, kind: output, shape index: {0}]
  %s4 = inlined_call_operand.vmem [shape: f32[2,2,128], index: 4, kind: output, shape index: {1}]
  %5 = xla_tuple %s3, %s4
  %s6 = sld [smem:[#allocation0]]
  $region61: #{discriminator_forward.10} parent=0
    _
  %s8 = ssub.s32 1, %s6
  %s9 = scalar_select 0, %s8, %s6
  loop: start=0, step=1, limit=4
  $region2: #{discriminator_forward.10} parent=0 // loop_pre_header
    _
  $region3: #{discriminator_forward.10} parent=0 // loop_header
    %s11 = sphi 0, %s15
    %p12 = scmp.ge.s32.totalorder %s11, 4
    %s18 = sphi 0, %s37
    %s19 = sphi 0, %s33
    %s20 = sphi 0, %s29
    %s21 = sphi 0, %s18
    %s22 = sphi 0, %s19
    %s23 = sphi 0, %s20
    %s24 = sphi 0, %s21
    %s25 = sphi 0, %s22
    %s26 = sphi 0, %s23
    %s42 = sphi 0, %s44
    %s45 = sphi 0, %s42
    %s46 = sphi 0, %s45
    %s62 = sphi 0, %s46
    %s70 = sphi 0, %s72
    %s73 = sphi 0, %s70
    %s74 = sphi 0, %s73
    %s90 = sphi 0, %s74
    %s96 = sphi 0, %s98
    %s99 = sphi 0, %s96
    %s100 = sphi 0, %s99
    %s116 = sphi 0, %s100
    %s124 = sphi 0, %s126
    %s127 = sphi 0, %s124
    %s128 = sphi 0, %s127
    %s144 = sphi 0, %s128
    %s152 = sphi 0, %s154
    %s155 = sphi 0, %s152
    %s156 = sphi 0, %s155
    %s172 = sphi 0, %s156
  $region4: #{discriminator_forward.10} parent=0 // loop_header_branch
    %14 = sbr.rel (%p12) target = $region8
  $region5: #{discriminator_forward.10} parent=0 // loop_body
    %s16 = ssub.s32 %s11, 1
    %s17 = ssub.s32 %s11, 2
    %s27 = sadd.s32 1, %s20
    %p28 = scmp.ge.s32.totalorder %s27, 1
    %s29 = scalar_select %p28, 0, %s27
    %s30 = sadd.s32 1, %s19
    %s31 = scalar_select %p28, %s30, %s19
    %p32 = scmp.ge.s32.totalorder %s31, 1
    %s33 = scalar_select %p32, 0, %s31
    %s34 = sadd.s32 1, %s18
    %s35 = scalar_select %p32, %s34, %s18
    %p36 = scmp.ge.s32.totalorder %s35, 2
    %s37 = scalar_select %p36, 0, %s35
    %s38 = ssub.s32 %s18, %s37
    %s39 = ssub.s32 %s20, %s29
    %s40 = sor.u32 %s38, %s39
    %p41 = scmp.eq.s32.totalorder %s40, 0
    %s43 = sadd.s32 %s42, 1
    %s44 = scalar_select %p41, %s42, %s43
    %p47 = pneg %p41
    %p48 = scmp.eq.s32.totalorder %s11, 1
    %p49 = por %p47, %p48
    %p50 = scmp.ne.s32.totalorder %s42, %s45
    %p51 = scmp.eq.s32.totalorder %s11, 0
    %p52 = por %p50, %p51
    %p53 = scmp.ne.s32.totalorder %s42, %s45
    %p54 = scmp.eq.s32.totalorder %s16, 1
    %p55 = por %p53, %p54
    %p56 = scmp.ne.s32.totalorder %s45, %s46
    %p57 = scmp.eq.s32.totalorder %s16, 0
    %p58 = por %p56, %p57
    %p59 = scmp.ne.s32.totalorder %s45, %s46
    %p60 = scmp.eq.s32.totalorder %s17, 1
    %p61 = por %p59, %p60
    %p63 = scmp.ne.s32.totalorder %s46, %s62
    %p64 = scmp.eq.s32.totalorder %s17, 0
    %p65 = por %p63, %p64
    %s66 = ssub.s32 %s20, %s29
    %s67 = ssub.s32 %s19, %s33
    %s68 = sor.u32 %s66, %s67
    %p69 = scmp.eq.s32.totalorder %s68, 0
    %s71 = sadd.s32 %s70, 1
    %s72 = scalar_select %p69, %s70, %s71
    %p75 = pneg %p69
    %p76 = scmp.eq.s32.totalorder %s11, 1
    %p77 = por %p75, %p76
    %p78 = scmp.ne.s32.totalorder %s70, %s73
    %p79 = scmp.eq.s32.totalorder %s11, 0
    %p80 = por %p78, %p79
    %p81 = scmp.ne.s32.totalorder %s70, %s73
    %p82 = scmp.eq.s32.totalorder %s16, 1
    %p83 = por %p81, %p82
    %p84 = scmp.ne.s32.totalorder %s73, %s74
    %p85 = scmp.eq.s32.totalorder %s16, 0
    %p86 = por %p84, %p85
    %p87 = scmp.ne.s32.totalorder %s73, %s74
    %p88 = scmp.eq.s32.totalorder %s17, 1
    %p89 = por %p87, %p88
    %p91 = scmp.ne.s32.totalorder %s74, %s90
    %p92 = scmp.eq.s32.totalorder %s17, 0
    %p93 = por %p91, %p92
    %s94 = ssub.s32 %s19, %s33
    %p95 = scmp.eq.s32.totalorder %s94, 0
    %s97 = sadd.s32 %s96, 1
    %s98 = scalar_select %p95, %s96, %s97
    %p101 = pneg %p95
    %p102 = scmp.eq.s32.totalorder %s11, 1
    %p103 = por %p101, %p102
    %p104 = scmp.ne.s32.totalorder %s96, %s99
    %p105 = scmp.eq.s32.totalorder %s11, 0
    %p106 = por %p104, %p105
    %p107 = scmp.ne.s32.totalorder %s96, %s99
    %p108 = scmp.eq.s32.totalorder %s16, 1
    %p109 = por %p107, %p108
    %p110 = scmp.ne.s32.totalorder %s99, %s100
    %p111 = scmp.eq.s32.totalorder %s16, 0
    %p112 = por %p110, %p111
    %p113 = scmp.ne.s32.totalorder %s99, %s100
    %p114 = scmp.eq.s32.totalorder %s17, 1
    %p115 = por %p113, %p114
    %p117 = scmp.ne.s32.totalorder %s100, %s116
    %p118 = scmp.eq.s32.totalorder %s17, 0
    %p119 = por %p117, %p118
    %s120 = ssub.s32 %s18, %s37
    %s121 = ssub.s32 %s19, %s33
    %s122 = sor.u32 %s120, %s121
    %p123 = scmp.eq.s32.totalorder %s122, 0
    %s125 = sadd.s32 %s124, 1
    %s126 = scalar_select %p123, %s124, %s125
    %p129 = pneg %p123
    %p130 = scmp.eq.s32.totalorder %s11, 1
    %p131 = por %p129, %p130
    %p132 = scmp.ne.s32.totalorder %s124, %s127
    %p133 = scmp.eq.s32.totalorder %s11, 0
    %p134 = por %p132, %p133
    %p135 = scmp.ne.s32.totalorder %s124, %s127
    %p136 = scmp.eq.s32.totalorder %s16, 1
    %p137 = por %p135, %p136
    %p138 = scmp.ne.s32.totalorder %s127, %s128
    %p139 = scmp.eq.s32.totalorder %s16, 0
    %p140 = por %p138, %p139
    %p141 = scmp.ne.s32.totalorder %s127, %s128
    %p142 = scmp.eq.s32.totalorder %s17, 1
    %p143 = por %p141, %p142
    %p145 = scmp.ne.s32.totalorder %s128, %s144
    %p146 = scmp.eq.s32.totalorder %s17, 0
    %p147 = por %p145, %p146
    %s148 = ssub.s32 %s18, %s37
    %s149 = ssub.s32 %s19, %s33
    %s150 = sor.u32 %s148, %s149
    %p151 = scmp.eq.s32.totalorder %s150, 0
    %s153 = sadd.s32 %s152, 1
    %s154 = scalar_select %p151, %s152, %s153
    %p157 = pneg %p151
    %p158 = scmp.eq.s32.totalorder %s11, 1
    %p159 = por %p157, %p158
    %p160 = scmp.ne.s32.totalorder %s152, %s155
    %p161 = scmp.eq.s32.totalorder %s11, 0
    %p162 = por %p160, %p161
    %p163 = scmp.ne.s32.totalorder %s152, %s155
    %p164 = scmp.eq.s32.totalorder %s16, 1
    %p165 = por %p163, %p164
    %p166 = scmp.ne.s32.totalorder %s155, %s156
    %p167 = scmp.eq.s32.totalorder %s16, 0
    %p168 = por %p166, %p167
    %p169 = scmp.ne.s32.totalorder %s155, %s156
    %p170 = scmp.eq.s32.totalorder %s17, 1
    %p171 = por %p169, %p170
    %p173 = scmp.ne.s32.totalorder %s156, %s172
    %p174 = scmp.eq.s32.totalorder %s17, 0
    %p175 = por %p173, %p174
    %p176 = scmp.le.s32.totalorder 1, %s11
    %p177 = scmp.lt.s32.totalorder %s11, 3
    %p178 = pnand %p176, %p177
    %p179 = pneg %p178
    // Predicated region
    $region9: #{discriminator_forward.10} parent=5 // pred_check
      _
    $region10: #{discriminator_forward.10} parent=5 // pred_check_branch
      %181 = sbr.rel (%p178) target = $region12
    $region11: #{discriminator_forward.10} parent=5 // pred_region
      %s182 = ssub.s32 %s11, 1
      // Predicated region
      $region13: #{discriminator_forward.10} parent=11 // pred_check
        %p183 = pneg %p86
      $region14: #{discriminator_forward.10} parent=11 // pred_check_branch
        %185 = sbr.rel (%p183) target = $region16
      $region15: #{discriminator_forward.10} parent=11 // pred_region
        %s186 = smul.u32 16, %s23
        %p187 = scmp.lt.s32.totalorder %s186, 15
        %s188 = scalar_select %p187, %s186, 15
        %p189 = scmp.lt.s32.totalorder %s22, 0
        %s190 = scalar_select %p189, %s22, 0
        %s191 = sadd.s32 %s190, %s188
        %s192 = smul.addr %s191, 4
        %s193 = scalar_lea.vmem %s1, %s192
        %s194 = smul.u32 16, %s23
      $region16: #{discriminator_forward.10} parent=11 // pred_fallthru
        _
      // Predicated region
      $region17: #{discriminator_forward.10} parent=11 // pred_check
        %p195 = pneg %p112
      $region18: #{discriminator_forward.10} parent=11 // pred_check_branch
        %197 = sbr.rel (%p195) target = $region20
      $region19: #{discriminator_forward.10} parent=11 // pred_region
        %p198 = scmp.lt.s32.totalorder %s22, 0
        %s199 = scalar_select %p198, %s22, 0
        %s200 = scalar_lea.vmem %s2, %s199
      $region20: #{discriminator_forward.10} parent=11 // pred_fallthru
        _
    $region12: #{discriminator_forward.10} parent=5 // pred_fallthru
      _
    %p201 = scmp.lt.s32.totalorder %s11, 2
    // Predicated region
    $region21: #{discriminator_forward.10} parent=5 // pred_check
      %p202 = pneg %p201
    $region22: #{discriminator_forward.10} parent=5 // pred_check_branch
      %204 = sbr.rel (%p202) target = $region24
    $region23: #{discriminator_forward.10} parent=5 // pred_region
      // Predicated region
      $region25: #{discriminator_forward.10} parent=23 // pred_check
        %p205 = pneg %p52
      $region26: #{discriminator_forward.10} parent=23 // pred_check_branch
        %207 = sbr.rel (%p205) target = $region28
      $region27: #{discriminator_forward.10} parent=23 // pred_region
        %s208 = smul.u32 2, %s18
        %p209 = scmp.lt.s32.totalorder %s208, 3
        %s210 = scalar_select %p209, %s208, 3
        %p211 = scmp.lt.s32.totalorder %s20, 0
        %s212 = scalar_select %p211, %s20, 0
        %s213 = sadd.s32 %s212, %s210
        %s214 = smul.addr %s213, 4
        %s215 = scalar_lea.vmem %s0, %s214
        %s216 = smul.u32 2, %s18
      $region28: #{discriminator_forward.10} parent=23 // pred_fallthru
        _
    $region24: #{discriminator_forward.10} parent=5 // pred_fallthru
      _
    %p217 = scmp.le.s32.totalorder 1, %s11
    %p218 = scmp.lt.s32.totalorder %s11, 3
    %p219 = pnand %p217, %p218
    %p220 = pneg %p219
    // Predicated region
    $region29: #{discriminator_forward.10} parent=5 // pred_check
      _
    $region30: #{discriminator_forward.10} parent=5 // pred_check_branch
      %222 = sbr.rel (%p219) target = $region32
    $region31: #{discriminator_forward.10} parent=5 // pred_region
      %s223 = ssub.s32 %s11, 1
      %s224 = smul.u32 2, %s21
      %p225 = scmp.lt.s32.totalorder %s224, 3
      %s226 = scalar_select %p225, %s224, 3
      %p227 = scmp.lt.s32.totalorder %s23, 0
      %s228 = scalar_select %p227, %s23, 0
      %s229 = sadd.s32 %s228, %s226
      %s230 = smul.addr %s229, 4
      %s231 = scalar_lea.vmem %s0, %s230
      %p232 = pneg %p58
      %p233 = pneg %p55
      %s234 = smul.u32 16, %s23
      %p235 = scmp.lt.s32.totalorder %s234, 15
      %s236 = scalar_select %p235, %s234, 15
      %p237 = scmp.lt.s32.totalorder %s22, 0
      %s238 = scalar_select %p237, %s22, 0
      %s239 = sadd.s32 %s238, %s236
      %s240 = smul.addr %s239, 4
      %s241 = scalar_lea.vmem %s1, %s240
      %p242 = pneg %p86
      %p243 = pneg %p83
      %p244 = scmp.lt.s32.totalorder %s22, 0
      %s245 = scalar_select %p244, %s22, 0
      %s246 = scalar_lea.vmem %s2, %s245
      %p247 = pneg %p112
      %p248 = pneg %p109
      %p249 = pneg %p140
      %p250 = pneg %p137
      %s251 = smul.u32 2, %s21
      %p252 = scmp.lt.s32.totalorder %s251, 3
      %s253 = scalar_select %p252, %s251, 3
      %p254 = scmp.lt.s32.totalorder %s22, 0
      %s255 = scalar_select %p254, %s22, 0
      %s256 = sadd.s32 %s255, %s253
      %s257 = smul.addr %s256, 4
      %s258 = scalar_lea.vmem %s3, %s257
      %p259 = pneg %p168
      %p260 = pneg %p165
      %p261 = scmp.lt.s32.totalorder %s21, 1
      %s262 = scalar_select %p261, %s21, 1
      %p263 = scmp.lt.s32.totalorder %s22, 0
      %s264 = scalar_select %p263, %s22, 0
      %s265 = sadd.s32 %s264, %s262
      %s266 = smul.addr %s265, 2
      %s267 = scalar_lea.vmem %s4, %s266
      %s268 = smul.u32 2, %s21
      %p269 = scmp.lt.s32.totalorder %s268, 3
      %s270 = scalar_select %p269, %s268, 3
      %p271 = scmp.lt.s32.totalorder %s23, 0
      %s272 = scalar_select %p271, %s23, 0
      %s273 = sadd.s32 %s272, %s270
      %s274 = smul.addr %s273, 4
      %s275 = scalar_lea.vmem %s0, %s274
      %s276 = smul.u32 2, %s21
      %s277 = smul.u32 16, %s23
      %p278 = scmp.lt.s32.totalorder %s277, 15
      %s279 = scalar_select %p278, %s277, 15
      %p280 = scmp.lt.s32.totalorder %s22, 0
      %s281 = scalar_select %p280, %s22, 0
      %s282 = sadd.s32 %s281, %s279
      %s283 = smul.addr %s282, 4
      %s284 = scalar_lea.vmem %s1, %s283
      %s285 = smul.u32 16, %s23
      %p286 = scmp.lt.s32.totalorder %s22, 0
      %s287 = scalar_select %p286, %s22, 0
      %s288 = scalar_lea.vmem %s2, %s287
      %s289 = smul.u32 2, %s21
      %p290 = scmp.lt.s32.totalorder %s289, 3
      %s291 = scalar_select %p290, %s289, 3
      %p292 = scmp.lt.s32.totalorder %s22, 0
      %s293 = scalar_select %p292, %s22, 0
      %s294 = sadd.s32 %s293, %s291
      %s295 = smul.addr %s294, 4
      %s296 = scalar_lea.vmem %s3, %s295
      %s297 = smul.u32 2, %s21
      %p298 = scmp.lt.s32.totalorder %s21, 1
      %s299 = scalar_select %p298, %s21, 1
      %p300 = scmp.lt.s32.totalorder %s22, 0
      %s301 = scalar_select %p300, %s22, 0
      %s302 = sadd.s32 %s301, %s299
      %s303 = smul.addr %s302, 2
      %s304 = scalar_lea.vmem %s4, %s303
      %p306 = scmp.eq.s32.totalorder %s23, 0
      // Predicated region
      $region33: #{discriminator_forward.10} parent=31 // pred_check
        %p307 = pneg %p306
      $region34: #{discriminator_forward.10} parent=31 // pred_check_branch
        %309 = sbr.rel (%p307) target = $region36
      $region35: #{discriminator_forward.10} parent=31 // pred_region
        %310 = vst [vmem:[#allocation2] sm:$0xff] 0.0
        %311 = vst [vmem:[#allocation2 + $0x8] sm:$0xff] 0.0
      $region36: #{discriminator_forward.10} parent=31 // pred_fallthru
        _
      %v312 = vld [vmem:[#allocation2] sm:$0xff]
      %v313 = vld [vmem:[#allocation2 + $0x8] sm:$0xff]
      %v314 = vld [vmem:[%s275] sm:$0xf]
      %v315 = vld [vmem:[%s275 + $0x4] sm:$0xf]
      %v316 = vld [vmem:[%s284] sm:$0xf]
      %v317 = vld [vmem:[%s284 + $0x4] sm:$0xf]
      %v318 = vld [vmem:[%s284 + $0x8] sm:$0xf]
      %v319 = vld [vmem:[%s284 + $0xc] sm:$0xf]
      %v320 = vld [vmem:[%s284 + $0x10] sm:$0xf]
      %v321 = vld [vmem:[%s284 + $0x14] sm:$0xf]
      %v322 = vld [vmem:[%s284 + $0x18] sm:$0xf]
      %v323 = vld [vmem:[%s284 + $0x1c] sm:$0xf]
      %v324 = vld [vmem:[%s284 + $0x20] sm:$0xf]
      %v325 = vld [vmem:[%s284 + $0x24] sm:$0xf]
      %v326 = vld [vmem:[%s284 + $0x28] sm:$0xf]
      %v327 = vld [vmem:[%s284 + $0x2c] sm:$0xf]
      %v328 = vld [vmem:[%s284 + $0x30] sm:$0xf]
      %v329 = vld [vmem:[%s284 + $0x34] sm:$0xf]
      %v330 = vld [vmem:[%s284 + $0x38] sm:$0xf]
      %v331 = vld [vmem:[%s284 + $0x3c] sm:$0xf]
      %v334 = vunpack.c.l.b16 %v314
      %v335 = vunpack.c.l.b16 %v315
      %v336 = vpack.c.b16 %v335, %v334
      %v354 = vunpack.c.l.b16 %v316
      %v355 = vunpack.c.l.b16 %v317
      %v356 = vunpack.c.l.b16 %v318
      %v357 = vunpack.c.l.b16 %v319
      %v358 = vunpack.c.l.b16 %v320
      %v359 = vunpack.c.l.b16 %v321
      %v360 = vunpack.c.l.b16 %v322
      %v361 = vunpack.c.l.b16 %v323
      %v362 = vunpack.c.l.b16 %v324
      %v363 = vunpack.c.l.b16 %v325
      %v364 = vunpack.c.l.b16 %v326
      %v365 = vunpack.c.l.b16 %v327
      %v366 = vunpack.c.l.b16 %v328
      %v367 = vunpack.c.l.b16 %v329
      %v368 = vunpack.c.l.b16 %v330
      %v369 = vunpack.c.l.b16 %v331
      %v370 = vpack.c.b16 %v355, %v354
      %v371 = vpack.c.b16 %v357, %v356
      %v372 = vpack.c.b16 %v359, %v358
      %v373 = vpack.c.b16 %v361, %v360
      %v374 = vpack.c.b16 %v363, %v362
      %v375 = vpack.c.b16 %v365, %v364
      %v376 = vpack.c.b16 %v367, %v366
      %v377 = vpack.c.b16 %v369, %v368
      %386 = vmatprep.subr.bf16.mxu0 0
      %387 = vmatpush1.bf16.msra.mxu0 %v370
      %388 = vmatprep.subr.bf16.mxu0 0
      %389 = vmatpush1.bf16.msra.mxu0 %v371
      %390 = vmatprep.subr.bf16.mxu0 0
      %391 = vmatpush1.bf16.msra.mxu0 %v372
      %392 = vmatprep.subr.bf16.mxu0 0
      %393 = vmatpush1.bf16.msra.mxu0 %v373
      %394 = vmatprep.subr.bf16.mxu0 0
      %395 = vmatpush1.bf16.msra.mxu0 %v374
      %396 = vmatprep.subr.bf16.mxu0 0
      %397 = vmatpush1.bf16.msra.mxu0 %v375
      %398 = vmatprep.subr.bf16.mxu0 0
      %399 = vmatpush1.bf16.msra.mxu0 %v376
      %400 = vmatprep.subr.bf16.mxu0 0
      %401 = vmatpush1.bf16.msra.mxu0 %v377
      %402 = vmatprep.subr.bf16.mxu0 0
      %403 = vmatpush1.bf16.msra.mxu0 0
      %404 = vmatprep.subr.bf16.mxu0 0
      %405 = vmatpush1.bf16.msra.mxu0 0
      %406 = vmatprep.subr.bf16.mxu0 0
      %407 = vmatpush1.bf16.msra.mxu0 0
      %408 = vmatprep.subr.bf16.mxu0 0
      %409 = vmatpush1.bf16.msra.mxu0 0
      %410 = vmatprep.subr.bf16.mxu0 0
      %411 = vmatpush1.bf16.msra.mxu0 0
      %412 = vmatprep.subr.bf16.mxu0 0
      %413 = vmatpush1.bf16.msra.mxu0 0
      %414 = vmatprep.subr.bf16.mxu0 0
      %415 = vmatpush1.bf16.msra.mxu0 0
      %416 = vmatprep.subr.bf16.mxu0 0
      %417 = vmatpush1.bf16.msra.mxu0 0
      %418 = vmatprep.mubr.bf16.mxu0 0
      %419 = vmatmul.mubr.bf16.gmra.mrb[0].mxu0 %v336
      %v420 = vpop.f32.mrb[0].mxu0
      %v421 = vadd.f32 0.0, %v420
      %v422 = vpop.f32.mrb[0].mxu0
      %v423 = vpop.f32.mrb[0].mxu0
      %v424 = vadd.f32 0.0, %v423
      %v425 = vpop.f32.mrb[0].mxu0
      %426 = vdwg.mxu0
      %v427 = vadd.f32 %v312, %v421
      %v428 = vadd.f32 %v313, %v424
      %429 = vst [vmem:[#allocation2] sm:$0xff] %v427
      %430 = vst [vmem:[#allocation2 + $0x8] sm:$0xff] %v428
      // Predicated region
      $region37: #{discriminator_forward.10} parent=31 // pred_check
        %p431 = pneg %p306
      $region38: #{discriminator_forward.10} parent=31 // pred_check_branch
        %433 = sbr.rel (%p431) target = $region40
      $region39: #{discriminator_forward.10} parent=31 // pred_region
        %v434 = vld [vmem:[#allocation2] sm:$0xff]
        %v435 = vld [vmem:[#allocation2 + $0x8] sm:$0xff]
        %v436 = vld [vmem:[%s288] sm:$0x1]
        %v438 = vlaneseq
        %v439 = vshrl.u32 %v438, 7
        %v440 = vsub.s32 0, %v439
        %v441 = vrot.slane %v436, %v440
        %v443 = vadd.f32 %v434, %v441
        %v444 = vadd.f32 %v435, %v441
        %v445 = vpack.c.bf16 %v444, %v443
        %v447 = vunpack.c.l.b16 %v445
        %v448 = vunpack.c.h.b16 %v445
        %v449 = vpack.c.b16 %v447, %v447
        %v450 = vpack.c.b16 %v448, %v448
        %453 = vst [vmem:[%s296] sm:$0xf] %v449
        %454 = vst [vmem:[%s296 + $0x4] sm:$0xf] %v450
        %v455 = vadd.f32 %v434, %v435
        %v456 = vrot.slane %v455, 4
        %v457 = vadd.f32 %v455, %v456
        %v458 = vrot.slane %v457, 2
        %v459 = vadd.f32 %v457, %v458
        %v460 = vrot.slane %v459, 1
        %v461 = vadd.f32 %v459, %v460
        %v462 = vmul.f32 %v434, %v434
        %v463 = vmul.f32 %v435, %v435
        %v464 = vadd.f32 %v462, %v463
        %v465 = vrot.slane %v464, 4
        %v466 = vadd.f32 %v464, %v465
        %v467 = vrot.slane %v466, 2
        %v468 = vadd.f32 %v466, %v467
        %v469 = vrot.slane %v468, 1
        %v470 = vadd.f32 %v468, %v469
        %471 = vst [vmem:[%s304] sm:$0x1] %v461
        %472 = vst [vmem:[%s304 + $0x1] sm:$0x1] %v470
      $region40: #{discriminator_forward.10} parent=31 // pred_fallthru
        _
      %s473 = smul.u32 2, %s21
      %p474 = scmp.lt.s32.totalorder %s473, 3
      %s475 = scalar_select %p474, %s473, 3
      %p476 = scmp.lt.s32.totalorder %s22, 0
      %s477 = scalar_select %p476, %s22, 0
      %s478 = sadd.s32 %s477, %s475
      %s479 = smul.addr %s478, 4
      %s480 = scalar_lea.vmem %s3, %s479
      %p481 = scmp.lt.s32.totalorder %s21, 1
      %s482 = scalar_select %p481, %s21, 1
      %p483 = scmp.lt.s32.totalorder %s22, 0
      %s484 = scalar_select %p483, %s22, 0
      %s485 = sadd.s32 %s484, %s482
      %s486 = smul.addr %s485, 2
      %s487 = scalar_lea.vmem %s4, %s486
      // Predicated region
      $region41: #{discriminator_forward.10} parent=31 // pred_check
        %p488 = pneg %p137
      $region42: #{discriminator_forward.10} parent=31 // pred_check_branch
        %490 = sbr.rel (%p488) target = $region44
      $region43: #{discriminator_forward.10} parent=31 // pred_region
        %s491 = smul.u32 2, %s21
      $region44: #{discriminator_forward.10} parent=31 // pred_fallthru
        _
      // Predicated region
      $region45: #{discriminator_forward.10} parent=31 // pred_check
        %p492 = pneg %p165
      $region46: #{discriminator_forward.10} parent=31 // pred_check_branch
        %494 = sbr.rel (%p492) target = $region48
      $region47: #{discriminator_forward.10} parent=31 // pred_region
        _
      $region48: #{discriminator_forward.10} parent=31 // pred_fallthru
        _
    $region32: #{discriminator_forward.10} parent=5 // pred_fallthru
      _
    %p495 = scmp.le.s32.totalorder 2, %s11
    // Predicated region
    $region49: #{discriminator_forward.10} parent=5 // pred_check
      %p496 = pneg %p495
    $region50: #{discriminator_forward.10} parent=5 // pred_check_branch
      %498 = sbr.rel (%p496) target = $region52
    $region51: #{discriminator_forward.10} parent=5 // pred_region
      %s499 = ssub.s32 %s11, 2
      // Predicated region
      $region53: #{discriminator_forward.10} parent=51 // pred_check
        %p500 = pneg %p143
      $region54: #{discriminator_forward.10} parent=51 // pred_check_branch
        %502 = sbr.rel (%p500) target = $region56
      $region55: #{discriminator_forward.10} parent=51 // pred_region
        %s503 = smul.u32 2, %s24
        %p504 = scmp.lt.s32.totalorder %s503, 3
        %s505 = scalar_select %p504, %s503, 3
        %p506 = scmp.lt.s32.totalorder %s25, 0
        %s507 = scalar_select %p506, %s25, 0
        %s508 = sadd.s32 %s507, %s505
        %s509 = smul.addr %s508, 4
        %s510 = scalar_lea.vmem %s3, %s509
      $region56: #{discriminator_forward.10} parent=51 // pred_fallthru
        _
      // Predicated region
      $region57: #{discriminator_forward.10} parent=51 // pred_check
        %p511 = pneg %p171
      $region58: #{discriminator_forward.10} parent=51 // pred_check_branch
        %513 = sbr.rel (%p511) target = $region60
      $region59: #{discriminator_forward.10} parent=51 // pred_region
        %p514 = scmp.lt.s32.totalorder %s24, 1
        %s515 = scalar_select %p514, %s24, 1
        %p516 = scmp.lt.s32.totalorder %s25, 0
        %s517 = scalar_select %p516, %s25, 0
        %s518 = sadd.s32 %s517, %s515
        %s519 = smul.addr %s518, 2
        %s520 = scalar_lea.vmem %s4, %s519
      $region60: #{discriminator_forward.10} parent=51 // pred_fallthru
        _
    $region52: #{discriminator_forward.10} parent=5 // pred_fallthru
      _
  $region6: #{discriminator_forward.10} parent=0 // loop_footer
    %s15 = sadd.s32 1, %s11
  $region7: #{discriminator_forward.10} parent=0 // loop_footer_branch
    %10 = sbr.rel target = $region3
  $region8: #{discriminator_forward.10} parent=0 // loop_exit
    _

// kernel: discriminator_forward.12
$region0: #{discriminator_forward.12}
  #allocation0 [shape = 'u32[]', space=smem, size = 0x4, offset = 0x4, fixed_abs, tag = 'smem constant byte address 0x4 - core index']
  #allocation1 [shape = 'u32[144,128]{1,0:T(1,128)}', space=vmem, size = 0x12000, scoped, tag = 'internal scratch']
  %s0 = inlined_call_operand.vmem [shape: bf16[32,128], index: 0, kind: input, shape index: {}, may-alias: {0,4}]
  %s1 = inlined_call_operand.vmem [shape: f32[2,128], index: 1, kind: input, shape index: {}]
  %s2 = inlined_call_operand.vmem [shape: f32[1,128], index: 2, kind: input, shape index: {}]
  %s3 = inlined_call_operand.vmem [shape: f32[1,128], index: 3, kind: input, shape index: {}]
  %s4 = inlined_call_operand.vmem [shape: bf16[32,128], index: 4, kind: output, shape index: {}, may-alias: {0,4}]
  %s5 = sld [smem:[#allocation0]]
  $region49: #{discriminator_forward.12} parent=0
    _
  %s7 = ssub.s32 1, %s5
  %s8 = scalar_select 0, %s7, %s5
  loop: start=0, step=1, limit=4
  $region2: #{discriminator_forward.12} parent=0 // loop_pre_header
    _
  $region3: #{discriminator_forward.12} parent=0 // loop_header
    %s10 = sphi 0, %s14
    %p11 = scmp.ge.s32.totalorder %s10, 4
    %s20 = sphi 0, %s22
    %s23 = sphi 0, %s20
    %s24 = sphi 0, %s23
    %s40 = sphi 0, %s24
    %s44 = sphi 0, %s44
    %s46 = sphi 0, %s44
    %s47 = sphi 0, %s46
    %s61 = sphi 0, %s47
    %s65 = sphi 0, %s65
    %s67 = sphi 0, %s65
    %s68 = sphi 0, %s67
    %s82 = sphi 0, %s68
    %s86 = sphi 0, %s86
    %s88 = sphi 0, %s86
    %s89 = sphi 0, %s88
    %s103 = sphi 0, %s89
    %s109 = sphi 0, %s111
    %s112 = sphi 0, %s109
    %s113 = sphi 0, %s112
    %s129 = sphi 0, %s113
  $region4: #{discriminator_forward.12} parent=0 // loop_header_branch
    %13 = sbr.rel (%p11) target = $region8
  $region5: #{discriminator_forward.12} parent=0 // loop_body
    %s15 = ssub.s32 %s10, 1
    %s16 = ssub.s32 %s10, 2
    %s17 = sadd.s32 %s10, 1
    %s18 = ssub.s32 %s10, %s17
    %p19 = scmp.eq.s32.totalorder %s18, 0
    %s21 = sadd.s32 %s20, 1
    %s22 = scalar_select %p19, %s20, %s21
    %p25 = pneg %p19
    %p26 = scmp.eq.s32.totalorder %s10, 1
    %p27 = por %p25, %p26
    %p28 = scmp.ne.s32.totalorder %s20, %s23
    %p29 = scmp.eq.s32.totalorder %s10, 0
    %p30 = por %p28, %p29
    %p31 = scmp.ne.s32.totalorder %s20, %s23
    %p32 = scmp.eq.s32.totalorder %s15, 1
    %p33 = por %p31, %p32
    %p34 = scmp.ne.s32.totalorder %s23, %s24
    %p35 = scmp.eq.s32.totalorder %s15, 0
    %p36 = por %p34, %p35
    %p37 = scmp.ne.s32.totalorder %s23, %s24
    %p38 = scmp.eq.s32.totalorder %s16, 1
    %p39 = por %p37, %p38
    %p41 = scmp.ne.s32.totalorder %s24, %s40
    %p42 = scmp.eq.s32.totalorder %s16, 0
    %p43 = por %p41, %p42
    %s45 = sadd.s32 %s44, 1
    %p48 = scmp.eq.s32.totalorder %s10, 1
    %p49 = scmp.ne.s32.totalorder %s44, %s46
    %p50 = scmp.eq.s32.totalorder %s10, 0
    %p51 = por %p49, %p50
    %p52 = scmp.ne.s32.totalorder %s44, %s46
    %p53 = scmp.eq.s32.totalorder %s15, 1
    %p54 = por %p52, %p53
    %p55 = scmp.ne.s32.totalorder %s46, %s47
    %p56 = scmp.eq.s32.totalorder %s15, 0
    %p57 = por %p55, %p56
    %p58 = scmp.ne.s32.totalorder %s46, %s47
    %p59 = scmp.eq.s32.totalorder %s16, 1
    %p60 = por %p58, %p59
    %p62 = scmp.ne.s32.totalorder %s47, %s61
    %p63 = scmp.eq.s32.totalorder %s16, 0
    %p64 = por %p62, %p63
    %s66 = sadd.s32 %s65, 1
    %p69 = scmp.eq.s32.totalorder %s10, 1
    %p70 = scmp.ne.s32.totalorder %s65, %s67
    %p71 = scmp.eq.s32.totalorder %s10, 0
    %p72 = por %p70, %p71
    %p73 = scmp.ne.s32.totalorder %s65, %s67
    %p74 = scmp.eq.s32.totalorder %s15, 1
    %p75 = por %p73, %p74
    %p76 = scmp.ne.s32.totalorder %s67, %s68
    %p77 = scmp.eq.s32.totalorder %s15, 0
    %p78 = por %p76, %p77
    %p79 = scmp.ne.s32.totalorder %s67, %s68
    %p80 = scmp.eq.s32.totalorder %s16, 1
    %p81 = por %p79, %p80
    %p83 = scmp.ne.s32.totalorder %s68, %s82
    %p84 = scmp.eq.s32.totalorder %s16, 0
    %p85 = por %p83, %p84
    %s87 = sadd.s32 %s86, 1
    %p90 = scmp.eq.s32.totalorder %s10, 1
    %p91 = scmp.ne.s32.totalorder %s86, %s88
    %p92 = scmp.eq.s32.totalorder %s10, 0
    %p93 = por %p91, %p92
    %p94 = scmp.ne.s32.totalorder %s86, %s88
    %p95 = scmp.eq.s32.totalorder %s15, 1
    %p96 = por %p94, %p95
    %p97 = scmp.ne.s32.totalorder %s88, %s89
    %p98 = scmp.eq.s32.totalorder %s15, 0
    %p99 = por %p97, %p98
    %p100 = scmp.ne.s32.totalorder %s88, %s89
    %p101 = scmp.eq.s32.totalorder %s16, 1
    %p102 = por %p100, %p101
    %p104 = scmp.ne.s32.totalorder %s89, %s103
    %p105 = scmp.eq.s32.totalorder %s16, 0
    %p106 = por %p104, %p105
    %s107 = ssub.s32 %s10, %s17
    %p108 = scmp.eq.s32.totalorder %s107, 0
    %s110 = sadd.s32 %s109, 1
    %s111 = scalar_select %p108, %s109, %s110
    %p114 = pneg %p108
    %p115 = scmp.eq.s32.totalorder %s10, 1
    %p116 = por %p114, %p115
    %p117 = scmp.ne.s32.totalorder %s109, %s112
    %p118 = scmp.eq.s32.totalorder %s10, 0
    %p119 = por %p117, %p118
    %p120 = scmp.ne.s32.totalorder %s109, %s112
    %p121 = scmp.eq.s32.totalorder %s15, 1
    %p122 = por %p120, %p121
    %p123 = scmp.ne.s32.totalorder %s112, %s113
    %p124 = scmp.eq.s32.totalorder %s15, 0
    %p125 = por %p123, %p124
    %p126 = scmp.ne.s32.totalorder %s112, %s113
    %p127 = scmp.eq.s32.totalorder %s16, 1
    %p128 = por %p126, %p127
    %p130 = scmp.ne.s32.totalorder %s113, %s129
    %p131 = scmp.eq.s32.totalorder %s16, 0
    %p132 = por %p130, %p131
    %p133 = scmp.le.s32.totalorder 1, %s10
    %p134 = scmp.lt.s32.totalorder %s10, 3
    %p135 = pnand %p133, %p134
    %p136 = pneg %p135
    // Predicated region
    $region9: #{discriminator_forward.12} parent=5 // pred_check
      _
    $region10: #{discriminator_forward.12} parent=5 // pred_check_branch
      %138 = sbr.rel (%p135) target = $region12
    $region11: #{discriminator_forward.12} parent=5 // pred_region
      %s139 = ssub.s32 %s10, 1
      // Predicated region
      $region13: #{discriminator_forward.12} parent=11 // pred_check
        %p140 = pneg %p57
      $region14: #{discriminator_forward.12} parent=11 // pred_check_branch
        %142 = sbr.rel (%p140) target = $region16
      $region15: #{discriminator_forward.12} parent=11 // pred_region
        _
      $region16: #{discriminator_forward.12} parent=11 // pred_fallthru
        _
      // Predicated region
      $region17: #{discriminator_forward.12} parent=11 // pred_check
        %p143 = pneg %p78
      $region18: #{discriminator_forward.12} parent=11 // pred_check_branch
        %145 = sbr.rel (%p143) target = $region20
      $region19: #{discriminator_forward.12} parent=11 // pred_region
        _
      $region20: #{discriminator_forward.12} parent=11 // pred_fallthru
        _
      // Predicated region
      $region21: #{discriminator_forward.12} parent=11 // pred_check
        %p146 = pneg %p99
      $region22: #{discriminator_forward.12} parent=11 // pred_check_branch
        %148 = sbr.rel (%p146) target = $region24
      $region23: #{discriminator_forward.12} parent=11 // pred_region
        _
      $region24: #{discriminator_forward.12} parent=11 // pred_fallthru
        _
    $region12: #{discriminator_forward.12} parent=5 // pred_fallthru
      _
    %p149 = scmp.lt.s32.totalorder %s10, 2
    // Predicated region
    $region25: #{discriminator_forward.12} parent=5 // pred_check
      %p150 = pneg %p149
    $region26: #{discriminator_forward.12} parent=5 // pred_check_branch
      %152 = sbr.rel (%p150) target = $region28
    $region27: #{discriminator_forward.12} parent=5 // pred_region
      // Predicated region
      $region29: #{discriminator_forward.12} parent=27 // pred_check
        %p153 = pneg %p30
      $region30: #{discriminator_forward.12} parent=27 // pred_check_branch
        %155 = sbr.rel (%p153) target = $region32
      $region31: #{discriminator_forward.12} parent=27 // pred_region
        %s156 = smul.u32 2, %s10
        %p157 = scmp.lt.s32.totalorder %s156, 3
        %s158 = scalar_select %p157, %s156, 3
        %s159 = smul.addr %s158, 4
        %s160 = scalar_lea.vmem %s0, %s159
        %s161 = smul.u32 2, %s10
      $region32: #{discriminator_forward.12} parent=27 // pred_fallthru
        _
    $region28: #{discriminator_forward.12} parent=5 // pred_fallthru
      _
    %p162 = scmp.le.s32.totalorder 1, %s10
    %p163 = scmp.lt.s32.totalorder %s10, 3
    %p164 = pnand %p162, %p163
    %p165 = pneg %p164
    // Predicated region
    $region33: #{discriminator_forward.12} parent=5 // pred_check
      _
    $region34: #{discriminator_forward.12} parent=5 // pred_check_branch
      %167 = sbr.rel (%p164) target = $region36
    $region35: #{discriminator_forward.12} parent=5 // pred_region
      %s168 = ssub.s32 %s10, 1
      %s169 = smul.u32 2, %s15
      %p170 = scmp.lt.s32.totalorder %s169, 3
      %s171 = scalar_select %p170, %s169, 3
      %s172 = smul.addr %s171, 4
      %s173 = scalar_lea.vmem %s0, %s172
      %p174 = pneg %p36
      %p175 = pneg %p33
      %p176 = pneg %p57
      %p177 = pneg %p54
      %p178 = pneg %p78
      %p179 = pneg %p75
      %p180 = pneg %p99
      %p181 = pneg %p96
      %p182 = pneg %p125
      %p183 = pneg %p122
      %s184 = smul.u32 2, %s15
      %p185 = scmp.lt.s32.totalorder %s184, 3
      %s186 = scalar_select %p185, %s184, 3
      %s187 = smul.addr %s186, 4
      %s188 = scalar_lea.vmem %s4, %s187
      %s189 = smul.u32 2, %s15
      %p190 = scmp.lt.s32.totalorder %s189, 3
      %s191 = scalar_select %p190, %s189, 3
      %s192 = smul.addr %s191, 4
      %s193 = scalar_lea.vmem %s0, %s192
      %s194 = smul.u32 2, %s15
      %s195 = smul.u32 2, %s15
      %p196 = scmp.lt.s32.totalorder %s195, 3
      %s197 = scalar_select %p196, %s195, 3
      %s198 = smul.addr %s197, 4
      %s199 = scalar_lea.vmem %s4, %s198
      %s200 = smul.u32 2, %s15
      %v201 = vld [vmem:[%s193] sm:$0xf]
      %v202 = vld [vmem:[%s193 + $0x4] sm:$0xf]
      %v203 = vunpack.c.l.bf16 %v201
      %v204 = vunpack.c.l.bf16 %v202
      %v205 = vld [vmem:[%s1] sm:$0x1]
      %v206 = vlaneseq
      %v207 = vshrl.u32 %v206, 7
      %v208 = vsub.s32 0, %v207
      %v209 = vrot.slane %v205, %v208
      %v210 = vsub.f32 %v203, %v209
      %v211 = vsub.f32 %v204, %v209
      %v212 = vld [vmem:[%s1 + $0x1] sm:$0x1]
      %v213 = vld [vmem:[%s2] sm:$0x1]
      %v214 = vmul.f32 %v212, %v213
      %v215 = vlaneseq
      %v216 = vshrl.u32 %v215, 7
      %v217 = vsub.s32 0, %v216
      %v218 = vrot.slane %v214, %v217
      %v219 = vmul.f32 %v210, %v218
      %v220 = vmul.f32 %v211, %v218
      %v221 = vld [vmem:[%s3] sm:$0x1]
      %v223 = vlaneseq
      %v224 = vshrl.u32 %v223, 7
      %v225 = vsub.s32 0, %v224
      %v226 = vrot.slane %v221, %v225
      %v228 = vadd.f32 %v219, %v226
      %v229 = vadd.f32 %v220, %v226
      %v230 = vmul.f32 %v228, 0.5
      %v231 = vmul.f32 %v229, 0.5
      %v232 = vmul.f32 %v228, 0.044715
      %v233 = vmul.f32 %v229, 0.044715
      %v234 = vmul.f32 %v232, %v228
      %v235 = vmul.f32 %v233, %v229
      %v236 = vmul.f32 %v234, %v228
      %v237 = vmul.f32 %v235, %v229
      %v238 = vadd.f32 %v228, %v236
      %v239 = vadd.f32 %v229, %v237
      %v240 = vmul.f32 %v238, 0.7978846
      %v241 = vmul.f32 %v239, 0.7978846
      %v242 = vtanh.pop %v240
      %v243 = vtanh.pop %v241
      %v244 = vadd.f32 %v242, 1.0
      %v245 = vadd.f32 %v243, 1.0
      %v246 = vmul.f32 %v230, %v244
      %v247 = vmul.f32 %v231, %v245
      %v248 = vpack.c.bf16 %v247, %v246
      %v250 = vunpack.c.l.b16 %v248
      %v251 = vunpack.c.h.b16 %v248
      %v252 = vpack.c.b16 %v250, %v250
      %v253 = vpack.c.b16 %v251, %v251
      %256 = vst [vmem:[%s199] sm:$0xf] %v252
      %257 = vst [vmem:[%s199 + $0x4] sm:$0xf] %v253
      %s258 = smul.u32 2, %s15
      %p259 = scmp.lt.s32.totalorder %s258, 3
      %s260 = scalar_select %p259, %s258, 3
      %s261 = smul.addr %s260, 4
      %s262 = scalar_lea.vmem %s4, %s261
      // Predicated region
      $region37: #{discriminator_forward.12} parent=35 // pred_check
        %p263 = pneg %p122
      $region38: #{discriminator_forward.12} parent=35 // pred_check_branch
        %265 = sbr.rel (%p263) target = $region40
      $region39: #{discriminator_forward.12} parent=35 // pred_region
        %s266 = smul.u32 2, %s15
      $region40: #{discriminator_forward.12} parent=35 // pred_fallthru
        _
    $region36: #{discriminator_forward.12} parent=5 // pred_fallthru
      _
    %p267 = scmp.le.s32.totalorder 2, %s10
    // Predicated region
    $region41: #{discriminator_forward.12} parent=5 // pred_check
      %p268 = pneg %p267
    $region42: #{discriminator_forward.12} parent=5 // pred_check_branch
      %270 = sbr.rel (%p268) target = $region44
    $region43: #{discriminator_forward.12} parent=5 // pred_region
      %s271 = ssub.s32 %s10, 2
      // Predicated region
      $region45: #{discriminator_forward.12} parent=43 // pred_check
        %p272 = pneg %p128
      $region46: #{discriminator_forward.12} parent=43 // pred_check_branch
        %274 = sbr.rel (%p272) target = $region48
      $region47: #{discriminator_forward.12} parent=43 // pred_region
        %s275 = smul.u32 2, %s16
        %p276 = scmp.lt.s32.totalorder %s275, 3
        %s277 = scalar_select %p276, %s275, 3
        %s278 = smul.addr %s277, 4
        %s279 = scalar_lea.vmem %s4, %s278
      $region48: #{discriminator_forward.12} parent=43 // pred_fallthru
        _
    $region44: #{discriminator_forward.12} parent=5 // pred_fallthru
      _
  $region6: #{discriminator_forward.12} parent=0 // loop_footer
    %s14 = sadd.s32 1, %s10
  $region7: #{discriminator_forward.12} parent=0 // loop_footer_branch
    %9 = sbr.rel target = $region3
  $region8: #{discriminator_forward.12} parent=0 // loop_exit
    _

// kernel: discriminator_forward.13
$region0: #{discriminator_forward.13}
  #allocation0 [shape = 'u32[]', space=smem, size = 0x4, offset = 0x4, fixed_abs, tag = 'smem constant byte address 0x4 - core index']
  #allocation1 [shape = 'u32[144,128]{1,0:T(1,128)}', space=vmem, size = 0x12000, scoped, tag = 'internal scratch']
  #allocation2 [shape = 'f32[8,128]{1,0:T(8,128)}', space=vmem, size = 0x1000, scoped, tag = 'scratch operand']
  %s0 = inlined_call_operand.vmem [shape: bf16[24,128], index: 0, kind: input, shape index: {}]
  %s1 = inlined_call_operand.vmem [shape: bf16[128,128], index: 1, kind: input, shape index: {}]
  %s2 = inlined_call_operand.vmem [shape: f32[1,128], index: 2, kind: input, shape index: {}]
  %s3 = inlined_call_operand.vmem [shape: bf16[24,128], index: 3, kind: output, shape index: {0}]
  %s4 = inlined_call_operand.vmem [shape: f32[3,2,128], index: 4, kind: output, shape index: {1}]
  %5 = xla_tuple %s3, %s4
  %s6 = sld [smem:[#allocation0]]
  $region61: #{discriminator_forward.13} parent=0
    _
  %s8 = ssub.s32 1, %s6
  %s9 = scalar_select 0, %s8, %s6
  loop: start=0, step=1, limit=5
  $region2: #{discriminator_forward.13} parent=0 // loop_pre_header
    _
  $region3: #{discriminator_forward.13} parent=0 // loop_header
    %s11 = sphi 0, %s15
    %p12 = scmp.ge.s32.totalorder %s11, 5
    %s18 = sphi 0, %s37
    %s19 = sphi 0, %s33
    %s20 = sphi 0, %s29
    %s21 = sphi 0, %s18
    %s22 = sphi 0, %s19
    %s23 = sphi 0, %s20
    %s24 = sphi 0, %s21
    %s25 = sphi 0, %s22
    %s26 = sphi 0, %s23
    %s42 = sphi 0, %s44
    %s45 = sphi 0, %s42
    %s46 = sphi 0, %s45
    %s62 = sphi 0, %s46
    %s70 = sphi 0, %s72
    %s73 = sphi 0, %s70
    %s74 = sphi 0, %s73
    %s90 = sphi 0, %s74
    %s96 = sphi 0, %s98
    %s99 = sphi 0, %s96
    %s100 = sphi 0, %s99
    %s116 = sphi 0, %s100
    %s124 = sphi 0, %s126
    %s127 = sphi 0, %s124
    %s128 = sphi 0, %s127
    %s144 = sphi 0, %s128
    %s152 = sphi 0, %s154
    %s155 = sphi 0, %s152
    %s156 = sphi 0, %s155
    %s172 = sphi 0, %s156
  $region4: #{discriminator_forward.13} parent=0 // loop_header_branch
    %14 = sbr.rel (%p12) target = $region8
  $region5: #{discriminator_forward.13} parent=0 // loop_body
    %s16 = ssub.s32 %s11, 1
    %s17 = ssub.s32 %s11, 2
    %s27 = sadd.s32 1, %s20
    %p28 = scmp.ge.s32.totalorder %s27, 1
    %s29 = scalar_select %p28, 0, %s27
    %s30 = sadd.s32 1, %s19
    %s31 = scalar_select %p28, %s30, %s19
    %p32 = scmp.ge.s32.totalorder %s31, 1
    %s33 = scalar_select %p32, 0, %s31
    %s34 = sadd.s32 1, %s18
    %s35 = scalar_select %p32, %s34, %s18
    %p36 = scmp.ge.s32.totalorder %s35, 3
    %s37 = scalar_select %p36, 0, %s35
    %s38 = ssub.s32 %s18, %s37
    %s39 = ssub.s32 %s20, %s29
    %s40 = sor.u32 %s38, %s39
    %p41 = scmp.eq.s32.totalorder %s40, 0
    %s43 = sadd.s32 %s42, 1
    %s44 = scalar_select %p41, %s42, %s43
    %p47 = pneg %p41
    %p48 = scmp.eq.s32.totalorder %s11, 2
    %p49 = por %p47, %p48
    %p50 = scmp.ne.s32.totalorder %s42, %s45
    %p51 = scmp.eq.s32.totalorder %s11, 0
    %p52 = por %p50, %p51
    %p53 = scmp.ne.s32.totalorder %s42, %s45
    %p54 = scmp.eq.s32.totalorder %s16, 2
    %p55 = por %p53, %p54
    %p56 = scmp.ne.s32.totalorder %s45, %s46
    %p57 = scmp.eq.s32.totalorder %s16, 0
    %p58 = por %p56, %p57
    %p59 = scmp.ne.s32.totalorder %s45, %s46
    %p60 = scmp.eq.s32.totalorder %s17, 2
    %p61 = por %p59, %p60
    %p63 = scmp.ne.s32.totalorder %s46, %s62
    %p64 = scmp.eq.s32.totalorder %s17, 0
    %p65 = por %p63, %p64
    %s66 = ssub.s32 %s20, %s29
    %s67 = ssub.s32 %s19, %s33
    %s68 = sor.u32 %s66, %s67
    %p69 = scmp.eq.s32.totalorder %s68, 0
    %s71 = sadd.s32 %s70, 1
    %s72 = scalar_select %p69, %s70, %s71
    %p75 = pneg %p69
    %p76 = scmp.eq.s32.totalorder %s11, 2
    %p77 = por %p75, %p76
    %p78 = scmp.ne.s32.totalorder %s70, %s73
    %p79 = scmp.eq.s32.totalorder %s11, 0
    %p80 = por %p78, %p79
    %p81 = scmp.ne.s32.totalorder %s70, %s73
    %p82 = scmp.eq.s32.totalorder %s16, 2
    %p83 = por %p81, %p82
    %p84 = scmp.ne.s32.totalorder %s73, %s74
    %p85 = scmp.eq.s32.totalorder %s16, 0
    %p86 = por %p84, %p85
    %p87 = scmp.ne.s32.totalorder %s73, %s74
    %p88 = scmp.eq.s32.totalorder %s17, 2
    %p89 = por %p87, %p88
    %p91 = scmp.ne.s32.totalorder %s74, %s90
    %p92 = scmp.eq.s32.totalorder %s17, 0
    %p93 = por %p91, %p92
    %s94 = ssub.s32 %s19, %s33
    %p95 = scmp.eq.s32.totalorder %s94, 0
    %s97 = sadd.s32 %s96, 1
    %s98 = scalar_select %p95, %s96, %s97
    %p101 = pneg %p95
    %p102 = scmp.eq.s32.totalorder %s11, 2
    %p103 = por %p101, %p102
    %p104 = scmp.ne.s32.totalorder %s96, %s99
    %p105 = scmp.eq.s32.totalorder %s11, 0
    %p106 = por %p104, %p105
    %p107 = scmp.ne.s32.totalorder %s96, %s99
    %p108 = scmp.eq.s32.totalorder %s16, 2
    %p109 = por %p107, %p108
    %p110 = scmp.ne.s32.totalorder %s99, %s100
    %p111 = scmp.eq.s32.totalorder %s16, 0
    %p112 = por %p110, %p111
    %p113 = scmp.ne.s32.totalorder %s99, %s100
    %p114 = scmp.eq.s32.totalorder %s17, 2
    %p115 = por %p113, %p114
    %p117 = scmp.ne.s32.totalorder %s100, %s116
    %p118 = scmp.eq.s32.totalorder %s17, 0
    %p119 = por %p117, %p118
    %s120 = ssub.s32 %s18, %s37
    %s121 = ssub.s32 %s19, %s33
    %s122 = sor.u32 %s120, %s121
    %p123 = scmp.eq.s32.totalorder %s122, 0
    %s125 = sadd.s32 %s124, 1
    %s126 = scalar_select %p123, %s124, %s125
    %p129 = pneg %p123
    %p130 = scmp.eq.s32.totalorder %s11, 2
    %p131 = por %p129, %p130
    %p132 = scmp.ne.s32.totalorder %s124, %s127
    %p133 = scmp.eq.s32.totalorder %s11, 0
    %p134 = por %p132, %p133
    %p135 = scmp.ne.s32.totalorder %s124, %s127
    %p136 = scmp.eq.s32.totalorder %s16, 2
    %p137 = por %p135, %p136
    %p138 = scmp.ne.s32.totalorder %s127, %s128
    %p139 = scmp.eq.s32.totalorder %s16, 0
    %p140 = por %p138, %p139
    %p141 = scmp.ne.s32.totalorder %s127, %s128
    %p142 = scmp.eq.s32.totalorder %s17, 2
    %p143 = por %p141, %p142
    %p145 = scmp.ne.s32.totalorder %s128, %s144
    %p146 = scmp.eq.s32.totalorder %s17, 0
    %p147 = por %p145, %p146
    %s148 = ssub.s32 %s18, %s37
    %s149 = ssub.s32 %s19, %s33
    %s150 = sor.u32 %s148, %s149
    %p151 = scmp.eq.s32.totalorder %s150, 0
    %s153 = sadd.s32 %s152, 1
    %s154 = scalar_select %p151, %s152, %s153
    %p157 = pneg %p151
    %p158 = scmp.eq.s32.totalorder %s11, 2
    %p159 = por %p157, %p158
    %p160 = scmp.ne.s32.totalorder %s152, %s155
    %p161 = scmp.eq.s32.totalorder %s11, 0
    %p162 = por %p160, %p161
    %p163 = scmp.ne.s32.totalorder %s152, %s155
    %p164 = scmp.eq.s32.totalorder %s16, 2
    %p165 = por %p163, %p164
    %p166 = scmp.ne.s32.totalorder %s155, %s156
    %p167 = scmp.eq.s32.totalorder %s16, 0
    %p168 = por %p166, %p167
    %p169 = scmp.ne.s32.totalorder %s155, %s156
    %p170 = scmp.eq.s32.totalorder %s17, 2
    %p171 = por %p169, %p170
    %p173 = scmp.ne.s32.totalorder %s156, %s172
    %p174 = scmp.eq.s32.totalorder %s17, 0
    %p175 = por %p173, %p174
    %p176 = scmp.le.s32.totalorder 1, %s11
    %p177 = scmp.lt.s32.totalorder %s11, 4
    %p178 = pnand %p176, %p177
    %p179 = pneg %p178
    // Predicated region
    $region9: #{discriminator_forward.13} parent=5 // pred_check
      _
    $region10: #{discriminator_forward.13} parent=5 // pred_check_branch
      %181 = sbr.rel (%p178) target = $region12
    $region11: #{discriminator_forward.13} parent=5 // pred_region
      %s182 = ssub.s32 %s11, 1
      // Predicated region
      $region13: #{discriminator_forward.13} parent=11 // pred_check
        %p183 = pneg %p86
      $region14: #{discriminator_forward.13} parent=11 // pred_check_branch
        %185 = sbr.rel (%p183) target = $region16
      $region15: #{discriminator_forward.13} parent=11 // pred_region
        %s186 = smul.u32 16, %s23
        %p187 = scmp.lt.s32.totalorder %s186, 15
        %s188 = scalar_select %p187, %s186, 15
        %p189 = scmp.lt.s32.totalorder %s22, 0
        %s190 = scalar_select %p189, %s22, 0
        %s191 = sadd.s32 %s190, %s188
        %s192 = smul.addr %s191, 4
        %s193 = scalar_lea.vmem %s1, %s192
        %s194 = smul.u32 16, %s23
      $region16: #{discriminator_forward.13} parent=11 // pred_fallthru
        _
      // Predicated region
      $region17: #{discriminator_forward.13} parent=11 // pred_check
        %p195 = pneg %p112
      $region18: #{discriminator_forward.13} parent=11 // pred_check_branch
        %197 = sbr.rel (%p195) target = $region20
      $region19: #{discriminator_forward.13} parent=11 // pred_region
        %p198 = scmp.lt.s32.totalorder %s22, 0
        %s199 = scalar_select %p198, %s22, 0
        %s200 = scalar_lea.vmem %s2, %s199
      $region20: #{discriminator_forward.13} parent=11 // pred_fallthru
        _
    $region12: #{discriminator_forward.13} parent=5 // pred_fallthru
      _
    %p201 = scmp.lt.s32.totalorder %s11, 3
    // Predicated region
    $region21: #{discriminator_forward.13} parent=5 // pred_check
      %p202 = pneg %p201
    $region22: #{discriminator_forward.13} parent=5 // pred_check_branch
      %204 = sbr.rel (%p202) target = $region24
    $region23: #{discriminator_forward.13} parent=5 // pred_region
      // Predicated region
      $region25: #{discriminator_forward.13} parent=23 // pred_check
        %p205 = pneg %p52
      $region26: #{discriminator_forward.13} parent=23 // pred_check_branch
        %207 = sbr.rel (%p205) target = $region28
      $region27: #{discriminator_forward.13} parent=23 // pred_region
        %p208 = scmp.lt.s32.totalorder %s18, 2
        %s209 = scalar_select %p208, %s18, 2
        %p210 = scmp.lt.s32.totalorder %s20, 0
        %s211 = scalar_select %p210, %s20, 0
        %s212 = sadd.s32 %s211, %s209
        %s213 = smul.addr %s212, 4
        %s214 = scalar_lea.vmem %s0, %s213
      $region28: #{discriminator_forward.13} parent=23 // pred_fallthru
        _
    $region24: #{discriminator_forward.13} parent=5 // pred_fallthru
      _
    %p215 = scmp.le.s32.totalorder 1, %s11
    %p216 = scmp.lt.s32.totalorder %s11, 4
    %p217 = pnand %p215, %p216
    %p218 = pneg %p217
    // Predicated region
    $region29: #{discriminator_forward.13} parent=5 // pred_check
      _
    $region30: #{discriminator_forward.13} parent=5 // pred_check_branch
      %220 = sbr.rel (%p217) target = $region32
    $region31: #{discriminator_forward.13} parent=5 // pred_region
      %s221 = ssub.s32 %s11, 1
      %p222 = scmp.lt.s32.totalorder %s21, 2
      %s223 = scalar_select %p222, %s21, 2
      %p224 = scmp.lt.s32.totalorder %s23, 0
      %s225 = scalar_select %p224, %s23, 0
      %s226 = sadd.s32 %s225, %s223
      %s227 = smul.addr %s226, 4
      %s228 = scalar_lea.vmem %s0, %s227
      %p229 = pneg %p58
      %p230 = pneg %p55
      %s231 = smul.u32 16, %s23
      %p232 = scmp.lt.s32.totalorder %s231, 15
      %s233 = scalar_select %p232, %s231, 15
      %p234 = scmp.lt.s32.totalorder %s22, 0
      %s235 = scalar_select %p234, %s22, 0
      %s236 = sadd.s32 %s235, %s233
      %s237 = smul.addr %s236, 4
      %s238 = scalar_lea.vmem %s1, %s237
      %p239 = pneg %p86
      %p240 = pneg %p83
      %p241 = scmp.lt.s32.totalorder %s22, 0
      %s242 = scalar_select %p241, %s22, 0
      %s243 = scalar_lea.vmem %s2, %s242
      %p244 = pneg %p112
      %p245 = pneg %p109
      %p246 = pneg %p140
      %p247 = pneg %p137
      %p248 = scmp.lt.s32.totalorder %s21, 2
      %s249 = scalar_select %p248, %s21, 2
      %p250 = scmp.lt.s32.totalorder %s22, 0
      %s251 = scalar_select %p250, %s22, 0
      %s252 = sadd.s32 %s251, %s249
      %s253 = smul.addr %s252, 4
      %s254 = scalar_lea.vmem %s3, %s253
      %p255 = pneg %p168
      %p256 = pneg %p165
      %p257 = scmp.lt.s32.totalorder %s21, 2
      %s258 = scalar_select %p257, %s21, 2
      %p259 = scmp.lt.s32.totalorder %s22, 0
      %s260 = scalar_select %p259, %s22, 0
      %s261 = sadd.s32 %s260, %s258
      %s262 = smul.addr %s261, 2
      %s263 = scalar_lea.vmem %s4, %s262
      %p264 = scmp.lt.s32.totalorder %s21, 2
      %s265 = scalar_select %p264, %s21, 2
      %p266 = scmp.lt.s32.totalorder %s23, 0
      %s267 = scalar_select %p266, %s23, 0
      %s268 = sadd.s32 %s267, %s265
      %s269 = smul.addr %s268, 4
      %s270 = scalar_lea.vmem %s0, %s269
      %s271 = smul.u32 16, %s23
      %p272 = scmp.lt.s32.totalorder %s271, 15
      %s273 = scalar_select %p272, %s271, 15
      %p274 = scmp.lt.s32.totalorder %s22, 0
      %s275 = scalar_select %p274, %s22, 0
      %s276 = sadd.s32 %s275, %s273
      %s277 = smul.addr %s276, 4
      %s278 = scalar_lea.vmem %s1, %s277
      %s279 = smul.u32 16, %s23
      %p280 = scmp.lt.s32.totalorder %s22, 0
      %s281 = scalar_select %p280, %s22, 0
      %s282 = scalar_lea.vmem %s2, %s281
      %p283 = scmp.lt.s32.totalorder %s21, 2
      %s284 = scalar_select %p283, %s21, 2
      %p285 = scmp.lt.s32.totalorder %s22, 0
      %s286 = scalar_select %p285, %s22, 0
      %s287 = sadd.s32 %s286, %s284
      %s288 = smul.addr %s287, 4
      %s289 = scalar_lea.vmem %s3, %s288
      %p290 = scmp.lt.s32.totalorder %s21, 2
      %s291 = scalar_select %p290, %s21, 2
      %p292 = scmp.lt.s32.totalorder %s22, 0
      %s293 = scalar_select %p292, %s22, 0
      %s294 = sadd.s32 %s293, %s291
      %s295 = smul.addr %s294, 2
      %s296 = scalar_lea.vmem %s4, %s295
      %p298 = scmp.eq.s32.totalorder %s23, 0
      // Predicated region
      $region33: #{discriminator_forward.13} parent=31 // pred_check
        %p299 = pneg %p298
      $region34: #{discriminator_forward.13} parent=31 // pred_check_branch
        %301 = sbr.rel (%p299) target = $region36
      $region35: #{discriminator_forward.13} parent=31 // pred_region
        %302 = vst [vmem:[#allocation2] sm:$0xff] 0.0
      $region36: #{discriminator_forward.13} parent=31 // pred_fallthru
        _
      %v303 = vld [vmem:[#allocation2] sm:$0xff]
      %v304 = vld [vmem:[%s270] sm:$0xf]
      %v305 = vld [vmem:[%s278] sm:$0xf]
      %v306 = vld [vmem:[%s278 + $0x4] sm:$0xf]
      %v307 = vld [vmem:[%s278 + $0x8] sm:$0xf]
      %v308 = vld [vmem:[%s278 + $0xc] sm:$0xf]
      %v309 = vld [vmem:[%s278 + $0x10] sm:$0xf]
      %v310 = vld [vmem:[%s278 + $0x14] sm:$0xf]
      %v311 = vld [vmem:[%s278 + $0x18] sm:$0xf]
      %v312 = vld [vmem:[%s278 + $0x1c] sm:$0xf]
      %v313 = vld [vmem:[%s278 + $0x20] sm:$0xf]
      %v314 = vld [vmem:[%s278 + $0x24] sm:$0xf]
      %v315 = vld [vmem:[%s278 + $0x28] sm:$0xf]
      %v316 = vld [vmem:[%s278 + $0x2c] sm:$0xf]
      %v317 = vld [vmem:[%s278 + $0x30] sm:$0xf]
      %v318 = vld [vmem:[%s278 + $0x34] sm:$0xf]
      %v319 = vld [vmem:[%s278 + $0x38] sm:$0xf]
      %v320 = vld [vmem:[%s278 + $0x3c] sm:$0xf]
      %v337 = vunpack.c.l.b16 %v305
      %v338 = vunpack.c.l.b16 %v306
      %v339 = vunpack.c.l.b16 %v307
      %v340 = vunpack.c.l.b16 %v308
      %v341 = vunpack.c.l.b16 %v309
      %v342 = vunpack.c.l.b16 %v310
      %v343 = vunpack.c.l.b16 %v311
      %v344 = vunpack.c.l.b16 %v312
      %v345 = vunpack.c.l.b16 %v313
      %v346 = vunpack.c.l.b16 %v314
      %v347 = vunpack.c.l.b16 %v315
      %v348 = vunpack.c.l.b16 %v316
      %v349 = vunpack.c.l.b16 %v317
      %v350 = vunpack.c.l.b16 %v318
      %v351 = vunpack.c.l.b16 %v319
      %v352 = vunpack.c.l.b16 %v320
      %v353 = vpack.c.b16 %v338, %v337
      %v354 = vpack.c.b16 %v340, %v339
      %v355 = vpack.c.b16 %v342, %v341
      %v356 = vpack.c.b16 %v344, %v343
      %v357 = vpack.c.b16 %v346, %v345
      %v358 = vpack.c.b16 %v348, %v347
      %v359 = vpack.c.b16 %v350, %v349
      %v360 = vpack.c.b16 %v352, %v351
      %369 = vmatprep.subr.bf16.mxu0 0
      %370 = vmatpush1.bf16.msra.mxu0 %v353
      %371 = vmatprep.subr.bf16.mxu0 0
      %372 = vmatpush1.bf16.msra.mxu0 %v354
      %373 = vmatprep.subr.bf16.mxu0 0
      %374 = vmatpush1.bf16.msra.mxu0 %v355
      %375 = vmatprep.subr.bf16.mxu0 0
      %376 = vmatpush1.bf16.msra.mxu0 %v356
      %377 = vmatprep.subr.bf16.mxu0 0
      %378 = vmatpush1.bf16.msra.mxu0 %v357
      %379 = vmatprep.subr.bf16.mxu0 0
      %380 = vmatpush1.bf16.msra.mxu0 %v358
      %381 = vmatprep.subr.bf16.mxu0 0
      %382 = vmatpush1.bf16.msra.mxu0 %v359
      %383 = vmatprep.subr.bf16.mxu0 0
      %384 = vmatpush1.bf16.msra.mxu0 %v360
      %385 = vmatprep.subr.bf16.mxu0 0
      %386 = vmatpush1.bf16.msra.mxu0 0
      %387 = vmatprep.subr.bf16.mxu0 0
      %388 = vmatpush1.bf16.msra.mxu0 0
      %389 = vmatprep.subr.bf16.mxu0 0
      %390 = vmatpush1.bf16.msra.mxu0 0
      %391 = vmatprep.subr.bf16.mxu0 0
      %392 = vmatpush1.bf16.msra.mxu0 0
      %393 = vmatprep.subr.bf16.mxu0 0
      %394 = vmatpush1.bf16.msra.mxu0 0
      %395 = vmatprep.subr.bf16.mxu0 0
      %396 = vmatpush1.bf16.msra.mxu0 0
      %397 = vmatprep.subr.bf16.mxu0 0
      %398 = vmatpush1.bf16.msra.mxu0 0
      %399 = vmatprep.subr.bf16.mxu0 0
      %400 = vmatpush1.bf16.msra.mxu0 0
      %401 = vmatprep.mubr.bf16.mxu0 0
      %402 = vmatmul.mubr.bf16.gmra.mrb[0].mxu0 %v304
      %v403 = vpop.f32.mrb[0].mxu0
      %v404 = vadd.f32 0.0, %v403
      %v405 = vpop.f32.mrb[0].mxu0
      %v406 = vpop.f32.mrb[0].mxu0
      %v407 = vpop.f32.mrb[0].mxu0
      %408 = vdwg.mxu0
      %v409 = vadd.f32 %v303, %v404
      %410 = vst [vmem:[#allocation2] sm:$0xff] %v409
      // Predicated region
      $region37: #{discriminator_forward.13} parent=31 // pred_check
        %p411 = pneg %p298
      $region38: #{discriminator_forward.13} parent=31 // pred_check_branch
        %413 = sbr.rel (%p411) target = $region40
      $region39: #{discriminator_forward.13} parent=31 // pred_region
        %v414 = vld [vmem:[#allocation2] sm:$0xff]
        %v415 = vld [vmem:[%s282] sm:$0x1]
        %v417 = vlaneseq
        %v418 = vshrl.u32 %v417, 7
        %v419 = vsub.s32 0, %v418
        %v420 = vrot.slane %v415, %v419
        %v422 = vadd.f32 %v414, %v420
        %v423 = vpack.c.bf16 %v422, %v422
        %424 = vst [vmem:[%s289] sm:$0xf] %v423
        %v425 = vrot.slane %v414, 4
        %v426 = vadd.f32 %v414, %v425
        %v427 = vrot.slane %v426, 2
        %v428 = vadd.f32 %v426, %v427
        %v429 = vrot.slane %v428, 1
        %v430 = vadd.f32 %v428, %v429
        %v431 = vmul.f32 %v414, %v414
        %v432 = vrot.slane %v431, 4
        %v433 = vadd.f32 %v431, %v432
        %v434 = vrot.slane %v433, 2
        %v435 = vadd.f32 %v433, %v434
        %v436 = vrot.slane %v435, 1
        %v437 = vadd.f32 %v435, %v436
        %438 = vst [vmem:[%s296] sm:$0x1] %v430
        %439 = vst [vmem:[%s296 + $0x1] sm:$0x1] %v437
      $region40: #{discriminator_forward.13} parent=31 // pred_fallthru
        _
      %p440 = scmp.lt.s32.totalorder %s21, 2
      %s441 = scalar_select %p440, %s21, 2
      %p442 = scmp.lt.s32.totalorder %s22, 0
      %s443 = scalar_select %p442, %s22, 0
      %s444 = sadd.s32 %s443, %s441
      %s445 = smul.addr %s444, 4
      %s446 = scalar_lea.vmem %s3, %s445
      %p447 = scmp.lt.s32.totalorder %s21, 2
      %s448 = scalar_select %p447, %s21, 2
      %p449 = scmp.lt.s32.totalorder %s22, 0
      %s450 = scalar_select %p449, %s22, 0
      %s451 = sadd.s32 %s450, %s448
      %s452 = smul.addr %s451, 2
      %s453 = scalar_lea.vmem %s4, %s452
      // Predicated region
      $region41: #{discriminator_forward.13} parent=31 // pred_check
        %p454 = pneg %p137
      $region42: #{discriminator_forward.13} parent=31 // pred_check_branch
        %456 = sbr.rel (%p454) target = $region44
      $region43: #{discriminator_forward.13} parent=31 // pred_region
        _
      $region44: #{discriminator_forward.13} parent=31 // pred_fallthru
        _
      // Predicated region
      $region45: #{discriminator_forward.13} parent=31 // pred_check
        %p457 = pneg %p165
      $region46: #{discriminator_forward.13} parent=31 // pred_check_branch
        %459 = sbr.rel (%p457) target = $region48
      $region47: #{discriminator_forward.13} parent=31 // pred_region
        _
      $region48: #{discriminator_forward.13} parent=31 // pred_fallthru
        _
    $region32: #{discriminator_forward.13} parent=5 // pred_fallthru
      _
    %p460 = scmp.le.s32.totalorder 2, %s11
    // Predicated region
    $region49: #{discriminator_forward.13} parent=5 // pred_check
      %p461 = pneg %p460
    $region50: #{discriminator_forward.13} parent=5 // pred_check_branch
      %463 = sbr.rel (%p461) target = $region52
    $region51: #{discriminator_forward.13} parent=5 // pred_region
      %s464 = ssub.s32 %s11, 2
      // Predicated region
      $region53: #{discriminator_forward.13} parent=51 // pred_check
        %p465 = pneg %p143
      $region54: #{discriminator_forward.13} parent=51 // pred_check_branch
        %467 = sbr.rel (%p465) target = $region56
      $region55: #{discriminator_forward.13} parent=51 // pred_region
        %p468 = scmp.lt.s32.totalorder %s24, 2
        %s469 = scalar_select %p468, %s24, 2
        %p470 = scmp.lt.s32.totalorder %s25, 0
        %s471 = scalar_select %p470, %s25, 0
        %s472 = sadd.s32 %s471, %s469
        %s473 = smul.addr %s472, 4
        %s474 = scalar_lea.vmem %s3, %s473
      $region56: #{discriminator_forward.13} parent=51 // pred_fallthru
        _
      // Predicated region
      $region57: #{discriminator_forward.13} parent=51 // pred_check
        %p475 = pneg %p171
      $region58: #{discriminator_forward.13} parent=51 // pred_check_branch
        %477 = sbr.rel (%p475) target = $region60
      $region59: #{discriminator_forward.13} parent=51 // pred_region
        %p478 = scmp.lt.s32.totalorder %s24, 2
        %s479 = scalar_select %p478, %s24, 2
        %p480 = scmp.lt.s32.totalorder %s25, 0
        %s481 = scalar_select %p480, %s25, 0
        %s482 = sadd.s32 %s481, %s479
        %s483 = smul.addr %s482, 2
        %s484 = scalar_lea.vmem %s4, %s483
      $region60: #{discriminator_forward.13} parent=51 // pred_fallthru
        _
    $region52: #{discriminator_forward.13} parent=5 // pred_fallthru
      _
  $region6: #{discriminator_forward.13} parent=0 // loop_footer
    %s15 = sadd.s32 1, %s11
  $region7: #{discriminator_forward.13} parent=0 // loop_footer_branch
    %10 = sbr.rel target = $region3
  $region8: #{discriminator_forward.13} parent=0 // loop_exit
    _

// kernel: discriminator_forward.14
$region0: #{discriminator_forward.14}
  #allocation0 [shape = 'u32[]', space=smem, size = 0x4, offset = 0x4, fixed_abs, tag = 'smem constant byte address 0x4 - core index']
  #allocation1 [shape = 'u32[144,128]{1,0:T(1,128)}', space=vmem, size = 0x12000, scoped, tag = 'internal scratch']
  %s0 = inlined_call_operand.vmem [shape: f32[3,2,128], index: 0, kind: input, shape index: {}]
  %s1 = inlined_call_operand.vmem [shape: f32[2,128], index: 1, kind: output, shape index: {}]
  %s2 = sld [smem:[#allocation0]]
  $region45: #{discriminator_forward.14} parent=0
    _
  %s4 = ssub.s32 1, %s2
  %s5 = scalar_select 0, %s4, %s2
  loop: start=0, step=1, limit=5
  $region2: #{discriminator_forward.14} parent=0 // loop_pre_header
    _
  $region3: #{discriminator_forward.14} parent=0 // loop_header
    %s7 = sphi 0, %s11
    %p8 = scmp.ge.s32.totalorder %s7, 5
    %s17 = sphi 0, %s19
    %s20 = sphi 0, %s17
    %s21 = sphi 0, %s20
    %s37 = sphi 0, %s21
    %s41 = sphi 0, %s41
    %s43 = sphi 0, %s41
    %s44 = sphi 0, %s43
    %s58 = sphi 0, %s44
  $region4: #{discriminator_forward.14} parent=0 // loop_header_branch
    %10 = sbr.rel (%p8) target = $region8
  $region5: #{discriminator_forward.14} parent=0 // loop_body
    %s12 = ssub.s32 %s7, 1
    %s13 = ssub.s32 %s7, 2
    %s14 = sadd.s32 %s7, 1
    %s15 = ssub.s32 %s7, %s14
    %p16 = scmp.eq.s32.totalorder %s15, 0
    %s18 = sadd.s32 %s17, 1
    %s19 = scalar_select %p16, %s17, %s18
    %p22 = pneg %p16
    %p23 = scmp.eq.s32.totalorder %s7, 2
    %p24 = por %p22, %p23
    %p25 = scmp.ne.s32.totalorder %s17, %s20
    %p26 = scmp.eq.s32.totalorder %s7, 0
    %p27 = por %p25, %p26
    %p28 = scmp.ne.s32.totalorder %s17, %s20
    %p29 = scmp.eq.s32.totalorder %s12, 2
    %p30 = por %p28, %p29
    %p31 = scmp.ne.s32.totalorder %s20, %s21
    %p32 = scmp.eq.s32.totalorder %s12, 0
    %p33 = por %p31, %p32
    %p34 = scmp.ne.s32.totalorder %s20, %s21
    %p35 = scmp.eq.s32.totalorder %s13, 2
    %p36 = por %p34, %p35
    %p38 = scmp.ne.s32.totalorder %s21, %s37
    %p39 = scmp.eq.s32.totalorder %s13, 0
    %p40 = por %p38, %p39
    %s42 = sadd.s32 %s41, 1
    %p45 = scmp.eq.s32.totalorder %s7, 2
    %p46 = scmp.ne.s32.totalorder %s41, %s43
    %p47 = scmp.eq.s32.totalorder %s7, 0
    %p48 = por %p46, %p47
    %p49 = scmp.ne.s32.totalorder %s41, %s43
    %p50 = scmp.eq.s32.totalorder %s12, 2
    %p51 = por %p49, %p50
    %p52 = scmp.ne.s32.totalorder %s43, %s44
    %p53 = scmp.eq.s32.totalorder %s12, 0
    %p54 = por %p52, %p53
    %p55 = scmp.ne.s32.totalorder %s43, %s44
    %p56 = scmp.eq.s32.totalorder %s13, 2
    %p57 = por %p55, %p56
    %p59 = scmp.ne.s32.totalorder %s44, %s58
    %p60 = scmp.eq.s32.totalorder %s13, 0
    %p61 = por %p59, %p60
    %p62 = scmp.le.s32.totalorder 1, %s7
    %p63 = scmp.lt.s32.totalorder %s7, 4
    %p64 = pnand %p62, %p63
    %p65 = pneg %p64
    // Predicated region
    $region9: #{discriminator_forward.14} parent=5 // pred_check
      _
    $region10: #{discriminator_forward.14} parent=5 // pred_check_branch
      %67 = sbr.rel (%p64) target = $region12
    $region11: #{discriminator_forward.14} parent=5 // pred_region
      %s68 = ssub.s32 %s7, 1
    $region12: #{discriminator_forward.14} parent=5 // pred_fallthru
      _
    %p69 = scmp.lt.s32.totalorder %s7, 3
    // Predicated region
    $region13: #{discriminator_forward.14} parent=5 // pred_check
      %p70 = pneg %p69
    $region14: #{discriminator_forward.14} parent=5 // pred_check_branch
      %72 = sbr.rel (%p70) target = $region16
    $region15: #{discriminator_forward.14} parent=5 // pred_region
      // Predicated region
      $region17: #{discriminator_forward.14} parent=15 // pred_check
        %p73 = pneg %p27
      $region18: #{discriminator_forward.14} parent=15 // pred_check_branch
        %75 = sbr.rel (%p73) target = $region20
      $region19: #{discriminator_forward.14} parent=15 // pred_region
        %p76 = scmp.lt.s32.totalorder %s7, 2
        %s77 = scalar_select %p76, %s7, 2
        %s78 = smul.addr %s77, 2
        %s79 = scalar_lea.vmem %s0, %s78
      $region20: #{discriminator_forward.14} parent=15 // pred_fallthru
        _
    $region16: #{discriminator_forward.14} parent=5 // pred_fallthru
      _
    %p80 = scmp.le.s32.totalorder 1, %s7
    %p81 = scmp.lt.s32.totalorder %s7, 4
    %p82 = pnand %p80, %p81
    %p83 = pneg %p82
    // Predicated region
    $region21: #{discriminator_forward.14} parent=5 // pred_check
      _
    $region22: #{discriminator_forward.14} parent=5 // pred_check_branch
      %85 = sbr.rel (%p82) target = $region24
    $region23: #{discriminator_forward.14} parent=5 // pred_region
      %s86 = ssub.s32 %s7, 1
      %p87 = scmp.lt.s32.totalorder %s12, 2
      %s88 = scalar_select %p87, %s12, 2
      %s89 = smul.addr %s88, 2
      %s90 = scalar_lea.vmem %s0, %s89
      %p91 = pneg %p33
      %p92 = pneg %p30
      %p93 = pneg %p54
      %p94 = pneg %p51
      %p95 = scmp.lt.s32.totalorder %s12, 2
      %s96 = scalar_select %p95, %s12, 2
      %s97 = smul.addr %s96, 2
      %s98 = scalar_lea.vmem %s0, %s97
      %p99 = scmp.eq.s32.totalorder %s12, 0
      // Predicated region
      $region25: #{discriminator_forward.14} parent=23 // pred_check
        %p100 = pneg %p99
      $region26: #{discriminator_forward.14} parent=23 // pred_check_branch
        %102 = sbr.rel (%p100) target = $region28
      $region27: #{discriminator_forward.14} parent=23 // pred_region
        %103 = vst [vmem:[%s1] sm:$0x3] 0.0
      $region28: #{discriminator_forward.14} parent=23 // pred_fallthru
        _
      %v104 = vld [vmem:[%s1] sm:$0x3]
      %v105 = vld [vmem:[%s98] sm:$0x3]
      %v106 = vadd.f32 %v104, %v105
      %107 = vst [vmem:[%s1] sm:$0x3] %v106
      %p108 = scmp.eq.s32.totalorder %s12, 2
      // Predicated region
      $region29: #{discriminator_forward.14} parent=23 // pred_check
        %p109 = pneg %p108
      $region30: #{discriminator_forward.14} parent=23 // pred_check_branch
        %111 = sbr.rel (%p109) target = $region32
      $region31: #{discriminator_forward.14} parent=23 // pred_region
        %v112 = vld [vmem:[%s1] sm:$0x1]
        %v113 = vmul.f32 %v112, 0.055555556
        %v114 = vld [vmem:[%s1 + $0x1] sm:$0x1]
        %v115 = vmul.f32 %v114, 0.055555556
        %v116 = vmul.f32 %v113, %v113
        %v117 = vsub.f32 %v115, %v116
        %v118 = vmax.f32 %v117, 0.0
        %119 = vst [vmem:[%s1] sm:$0x1] %v113
        %v120 = vadd.f32 %v118, 1e-05
        %v121 = vrsqrt.pop %v120
        %122 = vst [vmem:[%s1 + $0x1] sm:$0x1] %v121
      $region32: #{discriminator_forward.14} parent=23 // pred_fallthru
        _
      // Predicated region
      $region33: #{discriminator_forward.14} parent=23 // pred_check
        %p123 = pneg %p51
      $region34: #{discriminator_forward.14} parent=23 // pred_check_branch
        %125 = sbr.rel (%p123) target = $region36
      $region35: #{discriminator_forward.14} parent=23 // pred_region
        _
      $region36: #{discriminator_forward.14} parent=23 // pred_fallthru
        _
      // Predicated region
      $region37: #{discriminator_forward.14} parent=23 // pred_check
        %p126 = pneg %p51
      $region38: #{discriminator_forward.14} parent=23 // pred_check_branch
        %128 = sbr.rel (%p126) target = $region40
      $region39: #{discriminator_forward.14} parent=23 // pred_region
        _
      $region40: #{discriminator_forward.14} parent=23 // pred_fallthru
        _
    $region24: #{discriminator_forward.14} parent=5 // pred_fallthru
      _
    %p129 = scmp.le.s32.totalorder 2, %s7
    // Predicated region
    $region41: #{discriminator_forward.14} parent=5 // pred_check
      %p130 = pneg %p129
    $region42: #{discriminator_forward.14} parent=5 // pred_check_branch
      %132 = sbr.rel (%p130) target = $region44
    $region43: #{discriminator_forward.14} parent=5 // pred_region
      %s133 = ssub.s32 %s7, 2
    $region44: #{discriminator_forward.14} parent=5 // pred_fallthru
      _
  $region6: #{discriminator_forward.14} parent=0 // loop_footer
    %s11 = sadd.s32 1, %s7
  $region7: #{discriminator_forward.14} parent=0 // loop_footer_branch
    %6 = sbr.rel target = $region3
  $region8: #{discriminator_forward.14} parent=0 // loop_exit
    _

// kernel: discriminator_forward.15
$region0: #{discriminator_forward.15}
  #allocation0 [shape = 'u32[]', space=smem, size = 0x4, offset = 0x4, fixed_abs, tag = 'smem constant byte address 0x4 - core index']
  #allocation1 [shape = 'u32[144,128]{1,0:T(1,128)}', space=vmem, size = 0x12000, scoped, tag = 'internal scratch']
  %s0 = inlined_call_operand.vmem [shape: bf16[24,128], index: 0, kind: input, shape index: {}, may-alias: {0,4}]
  %s1 = inlined_call_operand.vmem [shape: f32[2,128], index: 1, kind: input, shape index: {}]
  %s2 = inlined_call_operand.vmem [shape: f32[1,128], index: 2, kind: input, shape index: {}]
  %s3 = inlined_call_operand.vmem [shape: f32[1,128], index: 3, kind: input, shape index: {}]
  %s4 = inlined_call_operand.vmem [shape: bf16[24,128], index: 4, kind: output, shape index: {}, may-alias: {0,4}]
  %s5 = sld [smem:[#allocation0]]
  $region49: #{discriminator_forward.15} parent=0
    _
  %s7 = ssub.s32 1, %s5
  %s8 = scalar_select 0, %s7, %s5
  loop: start=0, step=1, limit=5
  $region2: #{discriminator_forward.15} parent=0 // loop_pre_header
    _
  $region3: #{discriminator_forward.15} parent=0 // loop_header
    %s10 = sphi 0, %s14
    %p11 = scmp.ge.s32.totalorder %s10, 5
    %s20 = sphi 0, %s22
    %s23 = sphi 0, %s20
    %s24 = sphi 0, %s23
    %s40 = sphi 0, %s24
    %s44 = sphi 0, %s44
    %s46 = sphi 0, %s44
    %s47 = sphi 0, %s46
    %s61 = sphi 0, %s47
    %s65 = sphi 0, %s65
    %s67 = sphi 0, %s65
    %s68 = sphi 0, %s67
    %s82 = sphi 0, %s68
    %s86 = sphi 0, %s86
    %s88 = sphi 0, %s86
    %s89 = sphi 0, %s88
    %s103 = sphi 0, %s89
    %s109 = sphi 0, %s111
    %s112 = sphi 0, %s109
    %s113 = sphi 0, %s112
    %s129 = sphi 0, %s113
  $region4: #{discriminator_forward.15} parent=0 // loop_header_branch
    %13 = sbr.rel (%p11) target = $region8
  $region5: #{discriminator_forward.15} parent=0 // loop_body
    %s15 = ssub.s32 %s10, 1
    %s16 = ssub.s32 %s10, 2
    %s17 = sadd.s32 %s10, 1
    %s18 = ssub.s32 %s10, %s17
    %p19 = scmp.eq.s32.totalorder %s18, 0
    %s21 = sadd.s32 %s20, 1
    %s22 = scalar_select %p19, %s20, %s21
    %p25 = pneg %p19
    %p26 = scmp.eq.s32.totalorder %s10, 2
    %p27 = por %p25, %p26
    %p28 = scmp.ne.s32.totalorder %s20, %s23
    %p29 = scmp.eq.s32.totalorder %s10, 0
    %p30 = por %p28, %p29
    %p31 = scmp.ne.s32.totalorder %s20, %s23
    %p32 = scmp.eq.s32.totalorder %s15, 2
    %p33 = por %p31, %p32
    %p34 = scmp.ne.s32.totalorder %s23, %s24
    %p35 = scmp.eq.s32.totalorder %s15, 0
    %p36 = por %p34, %p35
    %p37 = scmp.ne.s32.totalorder %s23, %s24
    %p38 = scmp.eq.s32.totalorder %s16, 2
    %p39 = por %p37, %p38
    %p41 = scmp.ne.s32.totalorder %s24, %s40
    %p42 = scmp.eq.s32.totalorder %s16, 0
    %p43 = por %p41, %p42
    %s45 = sadd.s32 %s44, 1
    %p48 = scmp.eq.s32.totalorder %s10, 2
    %p49 = scmp.ne.s32.totalorder %s44, %s46
    %p50 = scmp.eq.s32.totalorder %s10, 0
    %p51 = por %p49, %p50
    %p52 = scmp.ne.s32.totalorder %s44, %s46
    %p53 = scmp.eq.s32.totalorder %s15, 2
    %p54 = por %p52, %p53
    %p55 = scmp.ne.s32.totalorder %s46, %s47
    %p56 = scmp.eq.s32.totalorder %s15, 0
    %p57 = por %p55, %p56
    %p58 = scmp.ne.s32.totalorder %s46, %s47
    %p59 = scmp.eq.s32.totalorder %s16, 2
    %p60 = por %p58, %p59
    %p62 = scmp.ne.s32.totalorder %s47, %s61
    %p63 = scmp.eq.s32.totalorder %s16, 0
    %p64 = por %p62, %p63
    %s66 = sadd.s32 %s65, 1
    %p69 = scmp.eq.s32.totalorder %s10, 2
    %p70 = scmp.ne.s32.totalorder %s65, %s67
    %p71 = scmp.eq.s32.totalorder %s10, 0
    %p72 = por %p70, %p71
    %p73 = scmp.ne.s32.totalorder %s65, %s67
    %p74 = scmp.eq.s32.totalorder %s15, 2
    %p75 = por %p73, %p74
    %p76 = scmp.ne.s32.totalorder %s67, %s68
    %p77 = scmp.eq.s32.totalorder %s15, 0
    %p78 = por %p76, %p77
    %p79 = scmp.ne.s32.totalorder %s67, %s68
    %p80 = scmp.eq.s32.totalorder %s16, 2
    %p81 = por %p79, %p80
    %p83 = scmp.ne.s32.totalorder %s68, %s82
    %p84 = scmp.eq.s32.totalorder %s16, 0
    %p85 = por %p83, %p84
    %s87 = sadd.s32 %s86, 1
    %p90 = scmp.eq.s32.totalorder %s10, 2
    %p91 = scmp.ne.s32.totalorder %s86, %s88
    %p92 = scmp.eq.s32.totalorder %s10, 0
    %p93 = por %p91, %p92
    %p94 = scmp.ne.s32.totalorder %s86, %s88
    %p95 = scmp.eq.s32.totalorder %s15, 2
    %p96 = por %p94, %p95
    %p97 = scmp.ne.s32.totalorder %s88, %s89
    %p98 = scmp.eq.s32.totalorder %s15, 0
    %p99 = por %p97, %p98
    %p100 = scmp.ne.s32.totalorder %s88, %s89
    %p101 = scmp.eq.s32.totalorder %s16, 2
    %p102 = por %p100, %p101
    %p104 = scmp.ne.s32.totalorder %s89, %s103
    %p105 = scmp.eq.s32.totalorder %s16, 0
    %p106 = por %p104, %p105
    %s107 = ssub.s32 %s10, %s17
    %p108 = scmp.eq.s32.totalorder %s107, 0
    %s110 = sadd.s32 %s109, 1
    %s111 = scalar_select %p108, %s109, %s110
    %p114 = pneg %p108
    %p115 = scmp.eq.s32.totalorder %s10, 2
    %p116 = por %p114, %p115
    %p117 = scmp.ne.s32.totalorder %s109, %s112
    %p118 = scmp.eq.s32.totalorder %s10, 0
    %p119 = por %p117, %p118
    %p120 = scmp.ne.s32.totalorder %s109, %s112
    %p121 = scmp.eq.s32.totalorder %s15, 2
    %p122 = por %p120, %p121
    %p123 = scmp.ne.s32.totalorder %s112, %s113
    %p124 = scmp.eq.s32.totalorder %s15, 0
    %p125 = por %p123, %p124
    %p126 = scmp.ne.s32.totalorder %s112, %s113
    %p127 = scmp.eq.s32.totalorder %s16, 2
    %p128 = por %p126, %p127
    %p130 = scmp.ne.s32.totalorder %s113, %s129
    %p131 = scmp.eq.s32.totalorder %s16, 0
    %p132 = por %p130, %p131
    %p133 = scmp.le.s32.totalorder 1, %s10
    %p134 = scmp.lt.s32.totalorder %s10, 4
    %p135 = pnand %p133, %p134
    %p136 = pneg %p135
    // Predicated region
    $region9: #{discriminator_forward.15} parent=5 // pred_check
      _
    $region10: #{discriminator_forward.15} parent=5 // pred_check_branch
      %138 = sbr.rel (%p135) target = $region12
    $region11: #{discriminator_forward.15} parent=5 // pred_region
      %s139 = ssub.s32 %s10, 1
      // Predicated region
      $region13: #{discriminator_forward.15} parent=11 // pred_check
        %p140 = pneg %p57
      $region14: #{discriminator_forward.15} parent=11 // pred_check_branch
        %142 = sbr.rel (%p140) target = $region16
      $region15: #{discriminator_forward.15} parent=11 // pred_region
        _
      $region16: #{discriminator_forward.15} parent=11 // pred_fallthru
        _
      // Predicated region
      $region17: #{discriminator_forward.15} parent=11 // pred_check
        %p143 = pneg %p78
      $region18: #{discriminator_forward.15} parent=11 // pred_check_branch
        %145 = sbr.rel (%p143) target = $region20
      $region19: #{discriminator_forward.15} parent=11 // pred_region
        _
      $region20: #{discriminator_forward.15} parent=11 // pred_fallthru
        _
      // Predicated region
      $region21: #{discriminator_forward.15} parent=11 // pred_check
        %p146 = pneg %p99
      $region22: #{discriminator_forward.15} parent=11 // pred_check_branch
        %148 = sbr.rel (%p146) target = $region24
      $region23: #{discriminator_forward.15} parent=11 // pred_region
        _
      $region24: #{discriminator_forward.15} parent=11 // pred_fallthru
        _
    $region12: #{discriminator_forward.15} parent=5 // pred_fallthru
      _
    %p149 = scmp.lt.s32.totalorder %s10, 3
    // Predicated region
    $region25: #{discriminator_forward.15} parent=5 // pred_check
      %p150 = pneg %p149
    $region26: #{discriminator_forward.15} parent=5 // pred_check_branch
      %152 = sbr.rel (%p150) target = $region28
    $region27: #{discriminator_forward.15} parent=5 // pred_region
      // Predicated region
      $region29: #{discriminator_forward.15} parent=27 // pred_check
        %p153 = pneg %p30
      $region30: #{discriminator_forward.15} parent=27 // pred_check_branch
        %155 = sbr.rel (%p153) target = $region32
      $region31: #{discriminator_forward.15} parent=27 // pred_region
        %p156 = scmp.lt.s32.totalorder %s10, 2
        %s157 = scalar_select %p156, %s10, 2
        %s158 = smul.addr %s157, 4
        %s159 = scalar_lea.vmem %s0, %s158
      $region32: #{discriminator_forward.15} parent=27 // pred_fallthru
        _
    $region28: #{discriminator_forward.15} parent=5 // pred_fallthru
      _
    %p160 = scmp.le.s32.totalorder 1, %s10
    %p161 = scmp.lt.s32.totalorder %s10, 4
    %p162 = pnand %p160, %p161
    %p163 = pneg %p162
    // Predicated region
    $region33: #{discriminator_forward.15} parent=5 // pred_check
      _
    $region34: #{discriminator_forward.15} parent=5 // pred_check_branch
      %165 = sbr.rel (%p162) target = $region36
    $region35: #{discriminator_forward.15} parent=5 // pred_region
      %s166 = ssub.s32 %s10, 1
      %p167 = scmp.lt.s32.totalorder %s15, 2
      %s168 = scalar_select %p167, %s15, 2
      %s169 = smul.addr %s168, 4
      %s170 = scalar_lea.vmem %s0, %s169
      %p171 = pneg %p36
      %p172 = pneg %p33
      %p173 = pneg %p57
      %p174 = pneg %p54
      %p175 = pneg %p78
      %p176 = pneg %p75
      %p177 = pneg %p99
      %p178 = pneg %p96
      %p179 = pneg %p125
      %p180 = pneg %p122
      %p181 = scmp.lt.s32.totalorder %s15, 2
      %s182 = scalar_select %p181, %s15, 2
      %s183 = smul.addr %s182, 4
      %s184 = scalar_lea.vmem %s4, %s183
      %p185 = scmp.lt.s32.totalorder %s15, 2
      %s186 = scalar_select %p185, %s15, 2
      %s187 = smul.addr %s186, 4
      %s188 = scalar_lea.vmem %s0, %s187
      %p189 = scmp.lt.s32.totalorder %s15, 2
      %s190 = scalar_select %p189, %s15, 2
      %s191 = smul.addr %s190, 4
      %s192 = scalar_lea.vmem %s4, %s191
      %v193 = vld [vmem:[%s188] sm:$0xf]
      %v194 = vunpack.c.l.bf16 %v193
      %v195 = vld [vmem:[%s1] sm:$0x1]
      %v196 = vlaneseq
      %v197 = vshrl.u32 %v196, 7
      %v198 = vsub.s32 0, %v197
      %v199 = vrot.slane %v195, %v198
      %v200 = vsub.f32 %v194, %v199
      %v201 = vld [vmem:[%s1 + $0x1] sm:$0x1]
      %v202 = vld [vmem:[%s2] sm:$0x1]
      %v203 = vmul.f32 %v201, %v202
      %v204 = vlaneseq
      %v205 = vshrl.u32 %v204, 7
      %v206 = vsub.s32 0, %v205
      %v207 = vrot.slane %v203, %v206
      %v208 = vmul.f32 %v200, %v207
      %v209 = vld [vmem:[%s3] sm:$0x1]
      %v211 = vlaneseq
      %v212 = vshrl.u32 %v211, 7
      %v213 = vsub.s32 0, %v212
      %v214 = vrot.slane %v209, %v213
      %v216 = vadd.f32 %v208, %v214
      %v217 = vmul.f32 %v216, 0.5
      %v218 = vmul.f32 %v216, 0.044715
      %v219 = vmul.f32 %v218, %v216
      %v220 = vmul.f32 %v219, %v216
      %v221 = vadd.f32 %v216, %v220
      %v222 = vmul.f32 %v221, 0.7978846
      %v223 = vtanh.pop %v222
      %v224 = vadd.f32 %v223, 1.0
      %v225 = vmul.f32 %v217, %v224
      %v226 = vpack.c.bf16 %v225, %v225
      %227 = vst [vmem:[%s192] sm:$0xf] %v226
      %p228 = scmp.lt.s32.totalorder %s15, 2
      %s229 = scalar_select %p228, %s15, 2
      %s230 = smul.addr %s229, 4
      %s231 = scalar_lea.vmem %s4, %s230
      // Predicated region
      $region37: #{discriminator_forward.15} parent=35 // pred_check
        %p232 = pneg %p122
      $region38: #{discriminator_forward.15} parent=35 // pred_check_branch
        %234 = sbr.rel (%p232) target = $region40
      $region39: #{discriminator_forward.15} parent=35 // pred_region
        _
      $region40: #{discriminator_forward.15} parent=35 // pred_fallthru
        _
    $region36: #{discriminator_forward.15} parent=5 // pred_fallthru
      _
    %p235 = scmp.le.s32.totalorder 2, %s10
    // Predicated region
    $region41: #{discriminator_forward.15} parent=5 // pred_check
      %p236 = pneg %p235
    $region42: #{discriminator_forward.15} parent=5 // pred_check_branch
      %238 = sbr.rel (%p236) target = $region44
    $region43: #{discriminator_forward.15} parent=5 // pred_region
      %s239 = ssub.s32 %s10, 2
      // Predicated region
      $region45: #{discriminator_forward.15} parent=43 // pred_check
        %p240 = pneg %p128
      $region46: #{discriminator_forward.15} parent=43 // pred_check_branch
        %242 = sbr.rel (%p240) target = $region48
      $region47: #{discriminator_forward.15} parent=43 // pred_region
        %p243 = scmp.lt.s32.totalorder %s16, 2
        %s244 = scalar_select %p243, %s16, 2
        %s245 = smul.addr %s244, 4
        %s246 = scalar_lea.vmem %s4, %s245
      $region48: #{discriminator_forward.15} parent=43 // pred_fallthru
        _
    $region44: #{discriminator_forward.15} parent=5 // pred_fallthru
      _
  $region6: #{discriminator_forward.15} parent=0 // loop_footer
    %s14 = sadd.s32 1, %s10
  $region7: #{discriminator_forward.15} parent=0 // loop_footer_branch
    %9 = sbr.rel target = $region3
  $region8: #{discriminator_forward.15} parent=0 // loop_exit
    _

// kernel: discriminator_forward.17
$region0: #{discriminator_forward.17}
  #allocation0 [shape = 'u32[]', space=smem, size = 0x4, offset = 0x4, fixed_abs, tag = 'smem constant byte address 0x4 - core index']
  #allocation1 [shape = 'u32[144,128]{1,0:T(1,128)}', space=vmem, size = 0x12000, scoped, tag = 'internal scratch']
  %s0 = inlined_call_operand.vmem [shape: f32[2,4,128], index: 0, kind: input, shape index: {}]
  %s1 = inlined_call_operand.vmem [shape: f32[2,1,128], index: 1, kind: output, shape index: {}]
  %s2 = sld [smem:[#allocation0]]
  $region37: #{discriminator_forward.17} parent=0
    _
  %s4 = ssub.s32 1, %s2
  %s5 = scalar_select 0, %s4, %s2
  loop: start=0, step=1, limit=4
  $region2: #{discriminator_forward.17} parent=0 // loop_pre_header
    _
  $region3: #{discriminator_forward.17} parent=0 // loop_header
    %s7 = sphi 0, %s11
    %p8 = scmp.ge.s32.totalorder %s7, 4
    %s17 = sphi 0, %s19
    %s20 = sphi 0, %s17
    %s21 = sphi 0, %s20
    %s37 = sphi 0, %s21
    %s43 = sphi 0, %s45
    %s46 = sphi 0, %s43
    %s47 = sphi 0, %s46
    %s63 = sphi 0, %s47
  $region4: #{discriminator_forward.17} parent=0 // loop_header_branch
    %10 = sbr.rel (%p8) target = $region8
  $region5: #{discriminator_forward.17} parent=0 // loop_body
    %s12 = ssub.s32 %s7, 1
    %s13 = ssub.s32 %s7, 2
    %s14 = sadd.s32 %s7, 1
    %s15 = ssub.s32 %s7, %s14
    %p16 = scmp.eq.s32.totalorder %s15, 0
    %s18 = sadd.s32 %s17, 1
    %s19 = scalar_select %p16, %s17, %s18
    %p22 = pneg %p16
    %p23 = scmp.eq.s32.totalorder %s7, 1
    %p24 = por %p22, %p23
    %p25 = scmp.ne.s32.totalorder %s17, %s20
    %p26 = scmp.eq.s32.totalorder %s7, 0
    %p27 = por %p25, %p26
    %p28 = scmp.ne.s32.totalorder %s17, %s20
    %p29 = scmp.eq.s32.totalorder %s12, 1
    %p30 = por %p28, %p29
    %p31 = scmp.ne.s32.totalorder %s20, %s21
    %p32 = scmp.eq.s32.totalorder %s12, 0
    %p33 = por %p31, %p32
    %p34 = scmp.ne.s32.totalorder %s20, %s21
    %p35 = scmp.eq.s32.totalorder %s13, 1
    %p36 = por %p34, %p35
    %p38 = scmp.ne.s32.totalorder %s21, %s37
    %p39 = scmp.eq.s32.totalorder %s13, 0
    %p40 = por %p38, %p39
    %s41 = ssub.s32 %s7, %s14
    %p42 = scmp.eq.s32.totalorder %s41, 0
    %s44 = sadd.s32 %s43, 1
    %s45 = scalar_select %p42, %s43, %s44
    %p48 = pneg %p42
    %p49 = scmp.eq.s32.totalorder %s7, 1
    %p50 = por %p48, %p49
    %p51 = scmp.ne.s32.totalorder %s43, %s46
    %p52 = scmp.eq.s32.totalorder %s7, 0
    %p53 = por %p51, %p52
    %p54 = scmp.ne.s32.totalorder %s43, %s46
    %p55 = scmp.eq.s32.totalorder %s12, 1
    %p56 = por %p54, %p55
    %p57 = scmp.ne.s32.totalorder %s46, %s47
    %p58 = scmp.eq.s32.totalorder %s12, 0
    %p59 = por %p57, %p58
    %p60 = scmp.ne.s32.totalorder %s46, %s47
    %p61 = scmp.eq.s32.totalorder %s13, 1
    %p62 = por %p60, %p61
    %p64 = scmp.ne.s32.totalorder %s47, %s63
    %p65 = scmp.eq.s32.totalorder %s13, 0
    %p66 = por %p64, %p65
    %p67 = scmp.le.s32.totalorder 1, %s7
    %p68 = scmp.lt.s32.totalorder %s7, 3
    %p69 = pnand %p67, %p68
    %p70 = pneg %p69
    // Predicated region
    $region9: #{discriminator_forward.17} parent=5 // pred_check
      _
    $region10: #{discriminator_forward.17} parent=5 // pred_check_branch
      %72 = sbr.rel (%p69) target = $region12
    $region11: #{discriminator_forward.17} parent=5 // pred_region
      %s73 = ssub.s32 %s7, 1
    $region12: #{discriminator_forward.17} parent=5 // pred_fallthru
      _
    %p74 = scmp.lt.s32.totalorder %s7, 2
    // Predicated region
    $region13: #{discriminator_forward.17} parent=5 // pred_check
      %p75 = pneg %p74
    $region14: #{discriminator_forward.17} parent=5 // pred_check_branch
      %77 = sbr.rel (%p75) target = $region16
    $region15: #{discriminator_forward.17} parent=5 // pred_region
      // Predicated region
      $region17: #{discriminator_forward.17} parent=15 // pred_check
        %p78 = pneg %p27
      $region18: #{discriminator_forward.17} parent=15 // pred_check_branch
        %80 = sbr.rel (%p78) target = $region20
      $region19: #{discriminator_forward.17} parent=15 // pred_region
        %p81 = scmp.lt.s32.totalorder %s7, 1
        %s82 = scalar_select %p81, %s7, 1
        %s83 = smul.addr %s82, 4
        %s84 = scalar_lea.vmem %s0, %s83
      $region20: #{discriminator_forward.17} parent=15 // pred_fallthru
        _
    $region16: #{discriminator_forward.17} parent=5 // pred_fallthru
      _
    %p85 = scmp.le.s32.totalorder 1, %s7
    %p86 = scmp.lt.s32.totalorder %s7, 3
    %p87 = pnand %p85, %p86
    %p88 = pneg %p87
    // Predicated region
    $region21: #{discriminator_forward.17} parent=5 // pred_check
      _
    $region22: #{discriminator_forward.17} parent=5 // pred_check_branch
      %90 = sbr.rel (%p87) target = $region24
    $region23: #{discriminator_forward.17} parent=5 // pred_region
      %s91 = ssub.s32 %s7, 1
      %p92 = scmp.lt.s32.totalorder %s12, 1
      %s93 = scalar_select %p92, %s12, 1
      %s94 = smul.addr %s93, 4
      %s95 = scalar_lea.vmem %s0, %s94
      %p96 = pneg %p33
      %p97 = pneg %p30
      %p98 = pneg %p59
      %p99 = pneg %p56
      %p100 = scmp.lt.s32.totalorder %s12, 1
      %s101 = scalar_select %p100, %s12, 1
      %s102 = scalar_lea.vmem %s1, %s101
      %p103 = scmp.lt.s32.totalorder %s12, 1
      %s104 = scalar_select %p103, %s12, 1
      %s105 = smul.addr %s104, 4
      %s106 = scalar_lea.vmem %s0, %s105
      %p107 = scmp.lt.s32.totalorder %s12, 1
      %s108 = scalar_select %p107, %s12, 1
      %s109 = scalar_lea.vmem %s1, %s108
      %v110 = vld [vmem:[%s106] sm:$0xf]
      %vm111 = vcmask 1043456
      %v112 = vsel %vm111, %v110, 0.0
      %v113 = vrot.slane %v112, 4
      %v114 = vadd.f32 %v112, %v113
      %v115 = vrot.slane %v114, 2
      %v116 = vadd.f32 %v114, %v115
      %v117 = vrot.slane %v116, 1
      %v118 = vadd.f32 %v116, %v117
      %v119 = vrcp.pop 4.0
      %v120 = vmul.f32 %v118, %v119
      %121 = vst [vmem:[%s109] sm:$0x1] %v120
      %p122 = scmp.lt.s32.totalorder %s12, 1
      %s123 = scalar_select %p122, %s12, 1
      %s124 = scalar_lea.vmem %s1, %s123
      // Predicated region
      $region25: #{discriminator_forward.17} parent=23 // pred_check
        %p125 = pneg %p56
      $region26: #{discriminator_forward.17} parent=23 // pred_check_branch
        %127 = sbr.rel (%p125) target = $region28
      $region27: #{discriminator_forward.17} parent=23 // pred_region
        _
      $region28: #{discriminator_forward.17} parent=23 // pred_fallthru
        _
    $region24: #{discriminator_forward.17} parent=5 // pred_fallthru
      _
    %p128 = scmp.le.s32.totalorder 2, %s7
    // Predicated region
    $region29: #{discriminator_forward.17} parent=5 // pred_check
      %p129 = pneg %p128
    $region30: #{discriminator_forward.17} parent=5 // pred_check_branch
      %131 = sbr.rel (%p129) target = $region32
    $region31: #{discriminator_forward.17} parent=5 // pred_region
      %s132 = ssub.s32 %s7, 2
      // Predicated region
      $region33: #{discriminator_forward.17} parent=31 // pred_check
        %p133 = pneg %p62
      $region34: #{discriminator_forward.17} parent=31 // pred_check_branch
        %135 = sbr.rel (%p133) target = $region36
      $region35: #{discriminator_forward.17} parent=31 // pred_region
        %p136 = scmp.lt.s32.totalorder %s13, 1
        %s137 = scalar_select %p136, %s13, 1
        %s138 = scalar_lea.vmem %s1, %s137
      $region36: #{discriminator_forward.17} parent=31 // pred_fallthru
        _
    $region32: #{discriminator_forward.17} parent=5 // pred_fallthru
      _
  $region6: #{discriminator_forward.17} parent=0 // loop_footer
    %s11 = sadd.s32 1, %s7
  $region7: #{discriminator_forward.17} parent=0 // loop_footer_branch
    %6 = sbr.rel target = $region3
  $region8: #{discriminator_forward.17} parent=0 // loop_exit
    _

// kernel: discriminator_forward.16
$region0: #{discriminator_forward.16}
  #allocation0 [shape = 'u32[]', space=smem, size = 0x4, offset = 0x4, fixed_abs, tag = 'smem constant byte address 0x4 - core index']
  #allocation1 [shape = 'u32[144,128]{1,0:T(1,128)}', space=vmem, size = 0x12000, scoped, tag = 'internal scratch']
  #allocation2 [shape = 'f32[8,128]{1,0:T(8,128)}', space=vmem, size = 0x1000, scoped, tag = 'scratch operand']
  %s0 = inlined_call_operand.vmem [shape: bf16[8,128], index: 0, kind: input, shape index: {}]
  %s1 = inlined_call_operand.vmem [shape: bf16[128,128], index: 1, kind: input, shape index: {}]
  %s2 = inlined_call_operand.vmem [shape: f32[1,128], index: 2, kind: input, shape index: {}]
  %s3 = inlined_call_operand.vmem [shape: f32[8,128], index: 3, kind: output, shape index: {}]
  %s4 = sld [smem:[#allocation0]]
  $region30: #{discriminator_forward.16} parent=0
    _
  %s6 = ssub.s32 1, %s4
  %s7 = scalar_select 0, %s6, %s4
  // Predicated region
  $region2: #{discriminator_forward.16} parent=0 // pred_check
    _
  $region3: #{discriminator_forward.16} parent=0 // pred_check_branch
    %9 = sbr.rel (0) target = $region5
  $region4: #{discriminator_forward.16} parent=0 // pred_region
    _
  $region5: #{discriminator_forward.16} parent=0 // pred_fallthru
    _
  // Predicated region
  $region6: #{discriminator_forward.16} parent=0 // pred_check
    _
  $region7: #{discriminator_forward.16} parent=0 // pred_check_branch
    %11 = sbr.rel (0) target = $region9
  $region8: #{discriminator_forward.16} parent=0 // pred_region
    _
  $region9: #{discriminator_forward.16} parent=0 // pred_fallthru
    _
  // Predicated region
  $region10: #{discriminator_forward.16} parent=0 // pred_check
    _
  $region11: #{discriminator_forward.16} parent=0 // pred_check_branch
    %13 = sbr.rel (0) target = $region13
  $region12: #{discriminator_forward.16} parent=0 // pred_region
    _
  $region13: #{discriminator_forward.16} parent=0 // pred_fallthru
    _
  %p15 = scmp.eq.s32.totalorder 0, 0
  // Predicated region
  $region14: #{discriminator_forward.16} parent=0 // pred_check
    %p16 = pneg %p15
  $region15: #{discriminator_forward.16} parent=0 // pred_check_branch
    %18 = sbr.rel (%p16) target = $region17
  $region16: #{discriminator_forward.16} parent=0 // pred_region
    %19 = vst [vmem:[#allocation2] sm:$0xff] 0.0
  $region17: #{discriminator_forward.16} parent=0 // pred_fallthru
    _
  %v20 = vld [vmem:[#allocation2] sm:$0xff]
  %v21 = vld [vmem:[%s0] sm:$0xf]
  %v22 = vld [vmem:[%s1] sm:$0xf]
  %v23 = vld [vmem:[%s1 + $0x4] sm:$0xf]
  %v24 = vld [vmem:[%s1 + $0x8] sm:$0xf]
  %v25 = vld [vmem:[%s1 + $0xc] sm:$0xf]
  %v26 = vld [vmem:[%s1 + $0x10] sm:$0xf]
  %v27 = vld [vmem:[%s1 + $0x14] sm:$0xf]
  %v28 = vld [vmem:[%s1 + $0x18] sm:$0xf]
  %v29 = vld [vmem:[%s1 + $0x1c] sm:$0xf]
  %v30 = vld [vmem:[%s1 + $0x20] sm:$0xf]
  %v31 = vld [vmem:[%s1 + $0x24] sm:$0xf]
  %v32 = vld [vmem:[%s1 + $0x28] sm:$0xf]
  %v33 = vld [vmem:[%s1 + $0x2c] sm:$0xf]
  %v34 = vld [vmem:[%s1 + $0x30] sm:$0xf]
  %v35 = vld [vmem:[%s1 + $0x34] sm:$0xf]
  %v36 = vld [vmem:[%s1 + $0x38] sm:$0xf]
  %v37 = vld [vmem:[%s1 + $0x3c] sm:$0xf]
  %v54 = vunpack.c.l.b16 %v22
  %v55 = vunpack.c.l.b16 %v23
  %v56 = vunpack.c.l.b16 %v24
  %v57 = vunpack.c.l.b16 %v25
  %v58 = vunpack.c.l.b16 %v26
  %v59 = vunpack.c.l.b16 %v27
  %v60 = vunpack.c.l.b16 %v28
  %v61 = vunpack.c.l.b16 %v29
  %v62 = vunpack.c.l.b16 %v30
  %v63 = vunpack.c.l.b16 %v31
  %v64 = vunpack.c.l.b16 %v32
  %v65 = vunpack.c.l.b16 %v33
  %v66 = vunpack.c.l.b16 %v34
  %v67 = vunpack.c.l.b16 %v35
  %v68 = vunpack.c.l.b16 %v36
  %v69 = vunpack.c.l.b16 %v37
  %v70 = vpack.c.b16 %v55, %v54
  %v71 = vpack.c.b16 %v57, %v56
  %v72 = vpack.c.b16 %v59, %v58
  %v73 = vpack.c.b16 %v61, %v60
  %v74 = vpack.c.b16 %v63, %v62
  %v75 = vpack.c.b16 %v65, %v64
  %v76 = vpack.c.b16 %v67, %v66
  %v77 = vpack.c.b16 %v69, %v68
  %86 = vmatprep.subr.bf16.mxu0 0
  %87 = vmatpush1.bf16.msra.mxu0 %v70
  %88 = vmatprep.subr.bf16.mxu0 0
  %89 = vmatpush1.bf16.msra.mxu0 %v71
  %90 = vmatprep.subr.bf16.mxu0 0
  %91 = vmatpush1.bf16.msra.mxu0 %v72
  %92 = vmatprep.subr.bf16.mxu0 0
  %93 = vmatpush1.bf16.msra.mxu0 %v73
  %94 = vmatprep.subr.bf16.mxu0 0
  %95 = vmatpush1.bf16.msra.mxu0 %v74
  %96 = vmatprep.subr.bf16.mxu0 0
  %97 = vmatpush1.bf16.msra.mxu0 %v75
  %98 = vmatprep.subr.bf16.mxu0 0
  %99 = vmatpush1.bf16.msra.mxu0 %v76
  %100 = vmatprep.subr.bf16.mxu0 0
  %101 = vmatpush1.bf16.msra.mxu0 %v77
  %102 = vmatprep.subr.bf16.mxu0 0
  %103 = vmatpush1.bf16.msra.mxu0 0
  %104 = vmatprep.subr.bf16.mxu0 0
  %105 = vmatpush1.bf16.msra.mxu0 0
  %106 = vmatprep.subr.bf16.mxu0 0
  %107 = vmatpush1.bf16.msra.mxu0 0
  %108 = vmatprep.subr.bf16.mxu0 0
  %109 = vmatpush1.bf16.msra.mxu0 0
  %110 = vmatprep.subr.bf16.mxu0 0
  %111 = vmatpush1.bf16.msra.mxu0 0
  %112 = vmatprep.subr.bf16.mxu0 0
  %113 = vmatpush1.bf16.msra.mxu0 0
  %114 = vmatprep.subr.bf16.mxu0 0
  %115 = vmatpush1.bf16.msra.mxu0 0
  %116 = vmatprep.subr.bf16.mxu0 0
  %117 = vmatpush1.bf16.msra.mxu0 0
  %118 = vmatprep.mubr.bf16.mxu0 0
  %119 = vmatmul.mubr.bf16.gmra.mrb[0].mxu0 %v21
  %v120 = vpop.f32.mrb[0].mxu0
  %v121 = vadd.f32 0.0, %v120
  %v122 = vpop.f32.mrb[0].mxu0
  %v123 = vpop.f32.mrb[0].mxu0
  %v124 = vpop.f32.mrb[0].mxu0
  %125 = vdwg.mxu0
  %v126 = vadd.f32 %v20, %v121
  %127 = vst [vmem:[#allocation2] sm:$0xff] %v126
  // Predicated region
  $region18: #{discriminator_forward.16} parent=0 // pred_check
    %p128 = pneg %p15
  $region19: #{discriminator_forward.16} parent=0 // pred_check_branch
    %130 = sbr.rel (%p128) target = $region21
  $region20: #{discriminator_forward.16} parent=0 // pred_region
    %v131 = vld [vmem:[#allocation2] sm:$0xff]
    %v132 = vld [vmem:[%s2] sm:$0x1]
    %v134 = vlaneseq
    %v135 = vshrl.u32 %v134, 7
    %v136 = vsub.s32 0, %v135
    %v137 = vrot.slane %v132, %v136
    %v139 = vadd.f32 %v131, %v137
    %140 = vst [vmem:[%s3] sm:$0xff] %v139
  $region21: #{discriminator_forward.16} parent=0 // pred_fallthru
    _
  // Predicated region
  $region22: #{discriminator_forward.16} parent=0 // pred_check
    _
  $region23: #{discriminator_forward.16} parent=0 // pred_check_branch
    %142 = sbr.rel (0) target = $region25
  $region24: #{discriminator_forward.16} parent=0 // pred_region
    _
  $region25: #{discriminator_forward.16} parent=0 // pred_fallthru
    _
  // Predicated region
  $region26: #{discriminator_forward.16} parent=0 // pred_check
    _
  $region27: #{discriminator_forward.16} parent=0 // pred_check_branch
    %144 = sbr.rel (0) target = $region29
  $region28: #{discriminator_forward.16} parent=0 // pred_region
    _
  $region29: #{discriminator_forward.16} parent=0 // pred_fallthru
    _

</llo_original>
